<compile_context>
chip_gen: v6e
topology: v6e:2x2x1
jax: 0.10.0
libtpu: 0.0.40
codegen_flags: <defaults>
</compile_context>

<pallas_src>
import functools
import math

import jax
import jax.numpy as jnp
from jax.experimental import pallas as pl
from jax.experimental.pallas import tpu as pltpu


# ----------------------------------------------------------------------------
# Trace-time helpers (plain JAX, evaluated once under jit)
# ----------------------------------------------------------------------------
def _attn_mask(G, Tq, Tk, *, causal):
    """Additive 0 / -1e30 mask over the flattened [G*Tq, G*Tk] score matrix.

    Rows/cols are group-major, time-minor, so the mask enforces the per
    (batch*city) block-diagonal structure (and causality for the decoder
    self-attention). Built once at trace time; no iota/compare in the kernel.
    """
    r = jnp.arange(G * Tq)
    c = jnp.arange(G * Tk)
    valid = (r[:, None] // Tq) == (c[None, :] // Tk)
    if causal:
        valid = valid & ((c[None, :] % Tk) <= (r[:, None] % Tq))
    return jnp.where(valid, 0.0, -1e30).astype(jnp.float32)


# ----------------------------------------------------------------------------
# Fused decoder kernel
# ----------------------------------------------------------------------------
def _decoder_kernel(emb_ref, pos_ref, kv_ref, sa_mask_ref, ed_mask_ref,
                    w_qkv1_ref, b_qkv1_ref,     # fc_in folded into self-attn QKV
                    w_oq2_ref, b_oq2_ref,       # Wo1 -> fc_enc_dec -> Wq2 folded
                    w_kv2_ref, b_kv2_ref,       # enc-dec K|V fused
                    w_o2_ref, b_o2_ref,         # enc-dec output projection
                    w_out_ref, b_out_ref,       # fc_out
                    o_ref, *, heads):
    G, T, E = emb_ref.shape
    Tk = kv_ref.shape[1]
    d1 = w_oq2_ref.shape[0]          # 2 * emb_dim
    hdim = w_o2_ref.shape[0]         # hid_dim
    M, Mk = G * T, G * Tk
    dh1, dh2 = d1 // heads, hdim // heads
    scale1 = jnp.float32(1.0 / math.sqrt(dh1))
    scale2 = jnp.float32(1.0 / math.sqrt(dh2))

    # embeddings (positional broadcast over the group); fc_in is folded into
    # w_qkv1 so this is a single [M, E] x [E, 3*D1] MXU matmul.
    x = (emb_ref[...] + pos_ref[...]).reshape(M, E)           # layout no-op
    qkv1 = jnp.dot(x, w_qkv1_ref[...],
                   preferred_element_type=jnp.float32) + b_qkv1_ref[...]

    # masked self-attention over forecast time, per (batch*city) row.
    # Per-head outputs fold straight into the (Wo1 @ W_enc_dec @ Wq2) chain,
    # producing the enc-dec queries directly.
    sa_mask = sa_mask_ref[...]
    q2 = jnp.zeros((M, hdim), jnp.float32)
    for h in range(heads):                                     # static unroll
        hq = slice(h * dh1, (h + 1) * dh1)
        hk = slice(d1 + h * dh1, d1 + (h + 1) * dh1)
        hv = slice(2 * d1 + h * dh1, 2 * d1 + (h + 1) * dh1)
        s = jax.lax.dot_general(qkv1[:, hq], qkv1[:, hk],
                                (((1,), (1,)), ((), ())),
                                preferred_element_type=jnp.float32)
        s = s * scale1 + sa_mask
        s = s - jnp.max(s, axis=-1, keepdims=True)
        p = jnp.exp(s)
        p = p * pl.reciprocal(jnp.sum(p, axis=-1, keepdims=True), approx=True)
        o_h = jnp.dot(p, qkv1[:, hv], preferred_element_type=jnp.float32)
        q2 = q2 + jnp.dot(o_h, w_oq2_ref[hq, :],
                          preferred_element_type=jnp.float32)
    q2 = q2 + b_oq2_ref[...]

    # encoder-decoder attention (keys/values from the encoder output)
    kv = kv_ref[...].reshape(Mk, hdim)                         # layout no-op
    kv2 = jnp.dot(kv, w_kv2_ref[...],
                  preferred_element_type=jnp.float32) + b_kv2_ref[...]
    ed_mask = ed_mask_ref[...]
    acc = jnp.zeros((M, hdim), jnp.float32)
    for h in range(heads):
        hq = slice(h * dh2, (h + 1) * dh2)
        hv = slice(hdim + h * dh2, hdim + (h + 1) * dh2)
        s = jax.lax.dot_general(q2[:, hq], kv2[:, hq],
                                (((1,), (1,)), ((), ())),
                                preferred_element_type=jnp.float32)
        s = s * scale2 + ed_mask
        s = s - jnp.max(s, axis=-1, keepdims=True)
        p = jnp.exp(s)
        p = p * pl.reciprocal(jnp.sum(p, axis=-1, keepdims=True), approx=True)
        o_h = jnp.dot(p, kv2[:, hv], preferred_element_type=jnp.float32)
        acc = acc + jnp.dot(o_h, w_o2_ref[hq, :],
                            preferred_element_type=jnp.float32)
    acc = acc + b_o2_ref[...]

    # fc_out fused as a VPU multiply + lane reduction -> lane-dense [G, T]
    w_out = w_out_ref[...].reshape(1, 1, hdim)
    y = jnp.sum(acc.reshape(G, T, hdim) * w_out, axis=-1) + b_out_ref[...]
    o_ref[...] = y.astype(o_ref.dtype)


# ----------------------------------------------------------------------------
# Parameter initialization (deterministic, synthetic)
# ----------------------------------------------------------------------------
def init_params(key, *, emb_dim, hid_dim, num_embeddings, forecast_len):
    ks = iter(jax.random.split(key, 32))

    def w(shape):
        return jax.random.normal(next(ks), shape, jnp.float32) * 0.1

    d_sa = 2 * emb_dim
    d_ed = hid_dim
    return {
        "pos_emb": w((forecast_len, emb_dim)),
        "spt_emb": w((num_embeddings, emb_dim)),
        "fc_in_w": w((emb_dim, 2 * emb_dim)),
        "fc_in_b": w((2 * emb_dim,)),
        "sa": tuple(w(s) for s in
                    [(d_sa, d_sa), (d_sa,), (d_sa, d_sa), (d_sa,),
                     (d_sa, d_sa), (d_sa,), (d_sa, d_sa), (d_sa,)]),
        "fc_ed_w": w((2 * emb_dim, hid_dim)),
        "fc_ed_b": w((hid_dim,)),
        "eda": tuple(w(s) for s in
                     [(d_ed, d_ed), (d_ed,), (d_ed, d_ed), (d_ed,),
                      (d_ed, d_ed), (d_ed,), (d_ed, d_ed), (d_ed,)]),
        "fc_out_w": w((hid_dim, 1)),
        "fc_out_b": w((1,)),
    }


# ----------------------------------------------------------------------------
# Decoder forward (single fused pallas_call + tiny JAX glue)
# ----------------------------------------------------------------------------
def decoder_forward(X, enc_out, params, *, batch_size, city_num, hist_len,
                    forecast_len, emb_dim, hid_dim, heads=4):
    B, N, T, E, H = batch_size, city_num, forecast_len, emb_dim, hid_dim
    D1 = 2 * E
    T_enc = enc_out.shape[1]
    BN = B * N

    # ---- plain-JAX glue: embedding gathers + tiny layout shuffles ----------
    ids = X[:, hist_len:, :, -1].astype(jnp.int32)              # [B, T, N]
    ids = ids.transpose(0, 2, 1).reshape(BN, T)                 # (b,n)-major rows
    spt = jnp.take(params["spt_emb"], ids, axis=0)              # [BN, T, E]
    pos = params["pos_emb"][:T].reshape(1, T, E)                # added in-kernel
    kv = enc_out.transpose(0, 2, 1, 3).reshape(BN, T_enc, H)    # [BN, T_enc, H]

    # ---- fold the pure-linear chains at trace time (exact) -----------------
    sa_wq, sa_bq, sa_wk, sa_bk, sa_wv, sa_bv, sa_wo, sa_bo = params["sa"]
    ed_wq, ed_bq, ed_wk, ed_bk, ed_wv, ed_bv, ed_wo, ed_bo = params["eda"]
    w_in, b_in = params["fc_in_w"], params["fc_in_b"]
    w_ed, b_ed = params["fc_ed_w"], params["fc_ed_b"]

    w_qkv_cat = jnp.concatenate([sa_wq, sa_wk, sa_wv], axis=1)        # [D1,3*D1]
    b_qkv_cat = jnp.concatenate([sa_bq, sa_bk, sa_bv])
    w_qkv1 = w_in @ w_qkv_cat                                          # [E,3*D1]
    b_qkv1 = (b_in @ w_qkv_cat + b_qkv_cat).reshape(1, 3 * D1)

    w_oq2 = sa_wo @ w_ed @ ed_wq                                       # [D1, H]
    b_oq2 = ((sa_bo @ w_ed + b_ed) @ ed_wq + ed_bq).reshape(1, H)

    w_kv2 = jnp.concatenate([ed_wk, ed_wv], axis=1)                    # [H, 2H]
    b_kv2 = jnp.concatenate([ed_bk, ed_bv]).reshape(1, 2 * H)

    # ---- group several (batch*city) rows per grid step ---------------------
    G = math.gcd(BN, max(1, 128 // max(T, 1)))     # target M = G*T ~ 128 rows
    n_groups = BN // G

    sa_mask = _attn_mask(G, T, T, causal=True)          # [G*T, G*T]
    ed_mask = _attn_mask(G, T, T_enc, causal=False)     # [G*T, G*T_enc]

    def rep(shape):          # fully-resident operand (weights / masks / pos)
        return pl.BlockSpec(shape, lambda i, _s=shape: (0,) * len(_s))

    in_specs = [
        pl.BlockSpec((G, T, E), lambda i: (i, 0, 0)),        # spatial embeddings
        rep((1, T, E)),                                      # positional embeddings
        pl.BlockSpec((G, T_enc, H), lambda i: (i, 0, 0)),    # encoder output
        rep((G * T, G * T)),                                 # self-attn mask
        rep((G * T, G * T_enc)),                             # enc-dec mask
        rep((E, 3 * D1)), rep((1, 3 * D1)),                  # fused fc_in+QKV
        rep((D1, H)), rep((1, H)),                           # fused Wo1+fc_ed+Wq2
        rep((H, 2 * H)), rep((1, 2 * H)),                    # fused K|V
        rep((H, H)), rep((1, H)),                            # enc-dec out proj
        rep((1, H)), rep((1, 1)),                            # fc_out
    ]

    args = (
        spt, pos, kv, sa_mask, ed_mask,
        w_qkv1, b_qkv1,
        w_oq2, b_oq2,
        w_kv2, b_kv2,
        ed_wo, ed_bo.reshape(1, H),
        params["fc_out_w"].reshape(1, H), params["fc_out_b"].reshape(1, 1),
    )

    y = pl.pallas_call(
        functools.partial(_decoder_kernel, heads=heads),
        out_shape=jax.ShapeDtypeStruct((BN, T), jnp.float32),
        grid=(n_groups,),
        in_specs=in_specs,
        out_specs=pl.BlockSpec((G, T), lambda i: (i, 0)),
        compiler_params=pltpu.CompilerParams(
            dimension_semantics=("parallel",)),   # v7x: shard groups across TCs
    )(*args)

    # [BN, T] -> [B, T, N, 1]  (64-element reshuffle, matches PyTorch output)
    return y.reshape(B, N, T).transpose(0, 2, 1)[..., None]


# ----------------------------------------------------------------------------
if __name__ == "__main__":
    # Small shapes consistent with the module (hist_len == forecast_len is
    # required by the reference pos_emb reshape).
    batch_size = 2
    city_num = 4
    hist_len = 8
    forecast_len = 8
    in_dim = 3
    emb_dim = 16
    hid_dim = 32
    num_embeddings = 10

    key = jax.random.PRNGKey(0)
    k_par, k_feat, k_idx, k_enc = jax.random.split(key, 4)

    params = init_params(k_par, emb_dim=emb_dim, hid_dim=hid_dim,
                         num_embeddings=num_embeddings,
                         forecast_len=forecast_len)

    total_len = hist_len + forecast_len
    # X: continuous features; last feature is an integer category id (as float).
    feats = jax.random.normal(k_feat,
                              (batch_size, total_len, city_num, in_dim - 1),
                              jnp.float32)
    ids = jax.random.randint(k_idx, (batch_size, total_len, city_num, 1),
                             0, num_embeddings).astype(jnp.float32)
    X = jnp.concatenate([feats, ids], axis=-1)                 # [2, 16, 4, 3]
    enc_out = jax.random.normal(k_enc,
                                (batch_size, hist_len, city_num, hid_dim),
                                jnp.float32)                   # [2, 8, 4, 32]

    fwd = jax.jit(functools.partial(
        decoder_forward,
        batch_size=batch_size, city_num=city_num, hist_len=hist_len,
        forecast_len=forecast_len, emb_dim=emb_dim, hid_dim=hid_dim))

    preds = jax.block_until_ready(fwd(X, enc_out, params))
    assert preds.shape == (batch_size, forecast_len, city_num, 1)
    print("KERNEL_OK")
</pallas_src>

<mosaic_0001>
module attributes {stable_mosaic.version = 11 : i64} {
  func.func @_decoder_kernel(%arg0: i32, %arg1: memref<8x8x16xf32, #tpu.memory_space<vmem>>, %arg2: memref<1x8x16xf32, #tpu.memory_space<vmem>>, %arg3: memref<8x8x32xf32, #tpu.memory_space<vmem>>, %arg4: memref<64x64xf32, #tpu.memory_space<vmem>>, %arg5: memref<64x64xf32, #tpu.memory_space<vmem>>, %arg6: memref<16x96xf32, #tpu.memory_space<vmem>>, %arg7: memref<1x96xf32, #tpu.memory_space<vmem>>, %arg8: memref<32x32xf32, #tpu.memory_space<vmem>>, %arg9: memref<1x32xf32, #tpu.memory_space<vmem>>, %arg10: memref<32x64xf32, #tpu.memory_space<vmem>>, %arg11: memref<1x64xf32, #tpu.memory_space<vmem>>, %arg12: memref<32x32xf32, #tpu.memory_space<vmem>>, %arg13: memref<1x32xf32, #tpu.memory_space<vmem>>, %arg14: memref<1x32xf32, #tpu.memory_space<vmem>>, %arg15: memref<1x1xf32, #tpu.memory_space<vmem>>, %arg16: memref<8x8xf32, #tpu.memory_space<vmem>>) attributes {dimension_semantics = [#tpu.dimension_semantics<parallel>], iteration_bounds = array<i64: 1>, scalar_prefetch = 0 : i64, scratch_operands = 0 : i64, tpu.core_type = #tpu.core_type<tc>, window_params = [{transform_indices = @transform_0, window_bounds = array<i64: 8, 8, 16>}, {pipeline_mode = #tpu.pipeline_mode<synchronous>, transform_indices = @transform_1, window_bounds = array<i64: 1, 8, 16>}, {transform_indices = @transform_2, window_bounds = array<i64: 8, 8, 32>}, {pipeline_mode = #tpu.pipeline_mode<synchronous>, transform_indices = @transform_3, window_bounds = array<i64: 64, 64>}, {pipeline_mode = #tpu.pipeline_mode<synchronous>, transform_indices = @transform_4, window_bounds = array<i64: 64, 64>}, {pipeline_mode = #tpu.pipeline_mode<synchronous>, transform_indices = @transform_5, window_bounds = array<i64: 16, 96>}, {pipeline_mode = #tpu.pipeline_mode<synchronous>, transform_indices = @transform_6, window_bounds = array<i64: 1, 96>}, {pipeline_mode = #tpu.pipeline_mode<synchronous>, transform_indices = @transform_7, window_bounds = array<i64: 32, 32>}, {pipeline_mode = #tpu.pipeline_mode<synchronous>, transform_indices = @transform_8, window_bounds = array<i64: 1, 32>}, {pipeline_mode = #tpu.pipeline_mode<synchronous>, transform_indices = @transform_9, window_bounds = array<i64: 32, 64>}, {pipeline_mode = #tpu.pipeline_mode<synchronous>, transform_indices = @transform_10, window_bounds = array<i64: 1, 64>}, {pipeline_mode = #tpu.pipeline_mode<synchronous>, transform_indices = @transform_11, window_bounds = array<i64: 32, 32>}, {pipeline_mode = #tpu.pipeline_mode<synchronous>, transform_indices = @transform_12, window_bounds = array<i64: 1, 32>}, {pipeline_mode = #tpu.pipeline_mode<synchronous>, transform_indices = @transform_13, window_bounds = array<i64: 1, 32>}, {pipeline_mode = #tpu.pipeline_mode<synchronous>, transform_indices = @transform_14, window_bounds = array<i64: 1, 1>}, {transform_indices = @transform_15, window_bounds = array<i64: 8, 8>}]} {
    %c0 = arith.constant 0 : index
    %c0_0 = arith.constant 0 : index
    %c0_1 = arith.constant 0 : index
    %0 = vector.load %arg1[%c0, %c0_0, %c0_1] : memref<8x8x16xf32, #tpu.memory_space<vmem>>, vector<8x8x16xf32>
    %c0_2 = arith.constant 0 : index
    %c0_3 = arith.constant 0 : index
    %c0_4 = arith.constant 0 : index
    %1 = vector.load %arg2[%c0_2, %c0_3, %c0_4] : memref<1x8x16xf32, #tpu.memory_space<vmem>>, vector<1x8x16xf32>
    %2 = vector.broadcast %1 : vector<1x8x16xf32> to vector<8x8x16xf32>
    %3 = arith.addf %0, %2 : vector<8x8x16xf32>
    %4 = vector.shape_cast %3 : vector<8x8x16xf32> to vector<64x16xf32>
    %c0_5 = arith.constant 0 : index
    %c0_6 = arith.constant 0 : index
    %5 = vector.load %arg6[%c0_5, %c0_6] : memref<16x96xf32, #tpu.memory_space<vmem>>, vector<16x96xf32>
    %cst = arith.constant dense<0.000000e+00> : vector<64x96xf32>
    %6 = tpu.matmul %4, %5, %cst {dimension_numbers = #tpu.dot_dimension_numbers<[1], [0], [0], [1], [0, 0, 1, 1], [], []>} : vector<64x16xf32>, vector<16x96xf32>, vector<64x96xf32> -> vector<64x96xf32>
    %c0_7 = arith.constant 0 : index
    %c0_8 = arith.constant 0 : index
    %7 = vector.load %arg7[%c0_7, %c0_8] : memref<1x96xf32, #tpu.memory_space<vmem>>, vector<1x96xf32>
    %8 = vector.broadcast %7 : vector<1x96xf32> to vector<64x96xf32>
    %9 = arith.addf %6, %8 : vector<64x96xf32>
    %c0_9 = arith.constant 0 : index
    %c0_10 = arith.constant 0 : index
    %10 = vector.load %arg4[%c0_9, %c0_10] : memref<64x64xf32, #tpu.memory_space<vmem>>, vector<64x64xf32>
    %cst_11 = arith.constant 0.000000e+00 : f32
    %11 = vector.broadcast %cst_11 : f32 to vector<64x32xf32>
    %12 = vector.extract_strided_slice %9 {offsets = [0, 0], sizes = [64, 8], strides = [1, 1]} : vector<64x96xf32> to vector<64x8xf32>
    %13 = vector.extract_strided_slice %9 {offsets = [0, 32], sizes = [64, 8], strides = [1, 1]} : vector<64x96xf32> to vector<64x8xf32>
    %cst_12 = arith.constant dense<0.000000e+00> : vector<64x64xf32>
    %14 = tpu.matmul %12, %13, %cst_12 {dimension_numbers = #tpu.dot_dimension_numbers<[1], [1], [0], [0], [0, 0, 1, 0], [], []>} : vector<64x8xf32>, vector<64x8xf32>, vector<64x64xf32> -> vector<64x64xf32>
    %cst_13 = arith.constant 0.353553385 : f32
    %15 = vector.broadcast %cst_13 : f32 to vector<64x64xf32>
    %16 = arith.mulf %14, %15 : vector<64x64xf32>
    %17 = arith.addf %16, %10 : vector<64x64xf32>
    %cst_14 = arith.constant dense<0xFF800000> : vector<64xf32>
    %18 = vector.multi_reduction <maximumf>, %17, %cst_14 [1] : vector<64x64xf32> to vector<64xf32>
    %19 = vector.shape_cast %18 : vector<64xf32> to vector<64x1xf32>
    %20 = vector.broadcast %19 : vector<64x1xf32> to vector<64x64xf32>
    %21 = arith.subf %17, %20 : vector<64x64xf32>
    %22 = math.exp %21 : vector<64x64xf32>
    %cst_15 = arith.constant dense<0.000000e+00> : vector<64xf32>
    %23 = vector.multi_reduction <add>, %22, %cst_15 [1] : vector<64x64xf32> to vector<64xf32>
    %24 = vector.shape_cast %23 : vector<64xf32> to vector<64x1xf32>
    %25 = tpu.reciprocal %24 {approx = true} : vector<64x1xf32> -> vector<64x1xf32>
    %26 = vector.broadcast %25 : vector<64x1xf32> to vector<64x64xf32>
    %27 = arith.mulf %22, %26 : vector<64x64xf32>
    %28 = vector.extract_strided_slice %9 {offsets = [0, 64], sizes = [64, 8], strides = [1, 1]} : vector<64x96xf32> to vector<64x8xf32>
    %cst_16 = arith.constant dense<0.000000e+00> : vector<64x8xf32>
    %29 = tpu.matmul %27, %28, %cst_16 {dimension_numbers = #tpu.dot_dimension_numbers<[1], [0], [0], [1], [0, 0, 1, 1], [], []>} : vector<64x64xf32>, vector<64x8xf32>, vector<64x8xf32> -> vector<64x8xf32>
    %c0_17 = arith.constant 0 : index
    %c0_18 = arith.constant 0 : index
    %30 = vector.load %arg8[%c0_17, %c0_18] : memref<32x32xf32, #tpu.memory_space<vmem>>, vector<8x32xf32>
    %cst_19 = arith.constant dense<0.000000e+00> : vector<64x32xf32>
    %31 = tpu.matmul %29, %30, %cst_19 {dimension_numbers = #tpu.dot_dimension_numbers<[1], [0], [0], [1], [0, 0, 1, 1], [], []>} : vector<64x8xf32>, vector<8x32xf32>, vector<64x32xf32> -> vector<64x32xf32>
    %32 = arith.addf %11, %31 : vector<64x32xf32>
    %33 = vector.extract_strided_slice %9 {offsets = [0, 8], sizes = [64, 8], strides = [1, 1]} : vector<64x96xf32> to vector<64x8xf32>
    %34 = vector.extract_strided_slice %9 {offsets = [0, 40], sizes = [64, 8], strides = [1, 1]} : vector<64x96xf32> to vector<64x8xf32>
    %cst_20 = arith.constant dense<0.000000e+00> : vector<64x64xf32>
    %35 = tpu.matmul %33, %34, %cst_20 {dimension_numbers = #tpu.dot_dimension_numbers<[1], [1], [0], [0], [0, 0, 1, 0], [], []>} : vector<64x8xf32>, vector<64x8xf32>, vector<64x64xf32> -> vector<64x64xf32>
    %cst_21 = arith.constant 0.353553385 : f32
    %36 = vector.broadcast %cst_21 : f32 to vector<64x64xf32>
    %37 = arith.mulf %35, %36 : vector<64x64xf32>
    %38 = arith.addf %37, %10 : vector<64x64xf32>
    %cst_22 = arith.constant dense<0xFF800000> : vector<64xf32>
    %39 = vector.multi_reduction <maximumf>, %38, %cst_22 [1] : vector<64x64xf32> to vector<64xf32>
    %40 = vector.shape_cast %39 : vector<64xf32> to vector<64x1xf32>
    %41 = vector.broadcast %40 : vector<64x1xf32> to vector<64x64xf32>
    %42 = arith.subf %38, %41 : vector<64x64xf32>
    %43 = math.exp %42 : vector<64x64xf32>
    %cst_23 = arith.constant dense<0.000000e+00> : vector<64xf32>
    %44 = vector.multi_reduction <add>, %43, %cst_23 [1] : vector<64x64xf32> to vector<64xf32>
    %45 = vector.shape_cast %44 : vector<64xf32> to vector<64x1xf32>
    %46 = tpu.reciprocal %45 {approx = true} : vector<64x1xf32> -> vector<64x1xf32>
    %47 = vector.broadcast %46 : vector<64x1xf32> to vector<64x64xf32>
    %48 = arith.mulf %43, %47 : vector<64x64xf32>
    %49 = vector.extract_strided_slice %9 {offsets = [0, 72], sizes = [64, 8], strides = [1, 1]} : vector<64x96xf32> to vector<64x8xf32>
    %cst_24 = arith.constant dense<0.000000e+00> : vector<64x8xf32>
    %50 = tpu.matmul %48, %49, %cst_24 {dimension_numbers = #tpu.dot_dimension_numbers<[1], [0], [0], [1], [0, 0, 1, 1], [], []>} : vector<64x64xf32>, vector<64x8xf32>, vector<64x8xf32> -> vector<64x8xf32>
    %c8 = arith.constant 8 : index
    %c0_25 = arith.constant 0 : index
    %51 = vector.load %arg8[%c8, %c0_25] : memref<32x32xf32, #tpu.memory_space<vmem>>, vector<8x32xf32>
    %cst_26 = arith.constant dense<0.000000e+00> : vector<64x32xf32>
    %52 = tpu.matmul %50, %51, %cst_26 {dimension_numbers = #tpu.dot_dimension_numbers<[1], [0], [0], [1], [0, 0, 1, 1], [], []>} : vector<64x8xf32>, vector<8x32xf32>, vector<64x32xf32> -> vector<64x32xf32>
    %53 = arith.addf %32, %52 : vector<64x32xf32>
    %54 = vector.extract_strided_slice %9 {offsets = [0, 16], sizes = [64, 8], strides = [1, 1]} : vector<64x96xf32> to vector<64x8xf32>
    %55 = vector.extract_strided_slice %9 {offsets = [0, 48], sizes = [64, 8], strides = [1, 1]} : vector<64x96xf32> to vector<64x8xf32>
    %cst_27 = arith.constant dense<0.000000e+00> : vector<64x64xf32>
    %56 = tpu.matmul %54, %55, %cst_27 {dimension_numbers = #tpu.dot_dimension_numbers<[1], [1], [0], [0], [0, 0, 1, 0], [], []>} : vector<64x8xf32>, vector<64x8xf32>, vector<64x64xf32> -> vector<64x64xf32>
    %cst_28 = arith.constant 0.353553385 : f32
    %57 = vector.broadcast %cst_28 : f32 to vector<64x64xf32>
    %58 = arith.mulf %56, %57 : vector<64x64xf32>
    %59 = arith.addf %58, %10 : vector<64x64xf32>
    %cst_29 = arith.constant dense<0xFF800000> : vector<64xf32>
    %60 = vector.multi_reduction <maximumf>, %59, %cst_29 [1] : vector<64x64xf32> to vector<64xf32>
    %61 = vector.shape_cast %60 : vector<64xf32> to vector<64x1xf32>
    %62 = vector.broadcast %61 : vector<64x1xf32> to vector<64x64xf32>
    %63 = arith.subf %59, %62 : vector<64x64xf32>
    %64 = math.exp %63 : vector<64x64xf32>
    %cst_30 = arith.constant dense<0.000000e+00> : vector<64xf32>
    %65 = vector.multi_reduction <add>, %64, %cst_30 [1] : vector<64x64xf32> to vector<64xf32>
    %66 = vector.shape_cast %65 : vector<64xf32> to vector<64x1xf32>
    %67 = tpu.reciprocal %66 {approx = true} : vector<64x1xf32> -> vector<64x1xf32>
    %68 = vector.broadcast %67 : vector<64x1xf32> to vector<64x64xf32>
    %69 = arith.mulf %64, %68 : vector<64x64xf32>
    %70 = vector.extract_strided_slice %9 {offsets = [0, 80], sizes = [64, 8], strides = [1, 1]} : vector<64x96xf32> to vector<64x8xf32>
    %cst_31 = arith.constant dense<0.000000e+00> : vector<64x8xf32>
    %71 = tpu.matmul %69, %70, %cst_31 {dimension_numbers = #tpu.dot_dimension_numbers<[1], [0], [0], [1], [0, 0, 1, 1], [], []>} : vector<64x64xf32>, vector<64x8xf32>, vector<64x8xf32> -> vector<64x8xf32>
    %c16 = arith.constant 16 : index
    %c0_32 = arith.constant 0 : index
    %72 = vector.load %arg8[%c16, %c0_32] : memref<32x32xf32, #tpu.memory_space<vmem>>, vector<8x32xf32>
    %cst_33 = arith.constant dense<0.000000e+00> : vector<64x32xf32>
    %73 = tpu.matmul %71, %72, %cst_33 {dimension_numbers = #tpu.dot_dimension_numbers<[1], [0], [0], [1], [0, 0, 1, 1], [], []>} : vector<64x8xf32>, vector<8x32xf32>, vector<64x32xf32> -> vector<64x32xf32>
    %74 = arith.addf %53, %73 : vector<64x32xf32>
    %75 = vector.extract_strided_slice %9 {offsets = [0, 24], sizes = [64, 8], strides = [1, 1]} : vector<64x96xf32> to vector<64x8xf32>
    %76 = vector.extract_strided_slice %9 {offsets = [0, 56], sizes = [64, 8], strides = [1, 1]} : vector<64x96xf32> to vector<64x8xf32>
    %cst_34 = arith.constant dense<0.000000e+00> : vector<64x64xf32>
    %77 = tpu.matmul %75, %76, %cst_34 {dimension_numbers = #tpu.dot_dimension_numbers<[1], [1], [0], [0], [0, 0, 1, 0], [], []>} : vector<64x8xf32>, vector<64x8xf32>, vector<64x64xf32> -> vector<64x64xf32>
    %cst_35 = arith.constant 0.353553385 : f32
    %78 = vector.broadcast %cst_35 : f32 to vector<64x64xf32>
    %79 = arith.mulf %77, %78 : vector<64x64xf32>
    %80 = arith.addf %79, %10 : vector<64x64xf32>
    %cst_36 = arith.constant dense<0xFF800000> : vector<64xf32>
    %81 = vector.multi_reduction <maximumf>, %80, %cst_36 [1] : vector<64x64xf32> to vector<64xf32>
    %82 = vector.shape_cast %81 : vector<64xf32> to vector<64x1xf32>
    %83 = vector.broadcast %82 : vector<64x1xf32> to vector<64x64xf32>
    %84 = arith.subf %80, %83 : vector<64x64xf32>
    %85 = math.exp %84 : vector<64x64xf32>
    %cst_37 = arith.constant dense<0.000000e+00> : vector<64xf32>
    %86 = vector.multi_reduction <add>, %85, %cst_37 [1] : vector<64x64xf32> to vector<64xf32>
    %87 = vector.shape_cast %86 : vector<64xf32> to vector<64x1xf32>
    %88 = tpu.reciprocal %87 {approx = true} : vector<64x1xf32> -> vector<64x1xf32>
    %89 = vector.broadcast %88 : vector<64x1xf32> to vector<64x64xf32>
    %90 = arith.mulf %85, %89 : vector<64x64xf32>
    %91 = vector.extract_strided_slice %9 {offsets = [0, 88], sizes = [64, 8], strides = [1, 1]} : vector<64x96xf32> to vector<64x8xf32>
    %cst_38 = arith.constant dense<0.000000e+00> : vector<64x8xf32>
    %92 = tpu.matmul %90, %91, %cst_38 {dimension_numbers = #tpu.dot_dimension_numbers<[1], [0], [0], [1], [0, 0, 1, 1], [], []>} : vector<64x64xf32>, vector<64x8xf32>, vector<64x8xf32> -> vector<64x8xf32>
    %c24 = arith.constant 24 : index
    %c0_39 = arith.constant 0 : index
    %93 = vector.load %arg8[%c24, %c0_39] : memref<32x32xf32, #tpu.memory_space<vmem>>, vector<8x32xf32>
    %cst_40 = arith.constant dense<0.000000e+00> : vector<64x32xf32>
    %94 = tpu.matmul %92, %93, %cst_40 {dimension_numbers = #tpu.dot_dimension_numbers<[1], [0], [0], [1], [0, 0, 1, 1], [], []>} : vector<64x8xf32>, vector<8x32xf32>, vector<64x32xf32> -> vector<64x32xf32>
    %95 = arith.addf %74, %94 : vector<64x32xf32>
    %c0_41 = arith.constant 0 : index
    %c0_42 = arith.constant 0 : index
    %96 = vector.load %arg9[%c0_41, %c0_42] : memref<1x32xf32, #tpu.memory_space<vmem>>, vector<1x32xf32>
    %97 = vector.broadcast %96 : vector<1x32xf32> to vector<64x32xf32>
    %98 = arith.addf %95, %97 : vector<64x32xf32>
    %c0_43 = arith.constant 0 : index
    %c0_44 = arith.constant 0 : index
    %c0_45 = arith.constant 0 : index
    %99 = vector.load %arg3[%c0_43, %c0_44, %c0_45] : memref<8x8x32xf32, #tpu.memory_space<vmem>>, vector<8x8x32xf32>
    %100 = vector.shape_cast %99 : vector<8x8x32xf32> to vector<64x32xf32>
    %c0_46 = arith.constant 0 : index
    %c0_47 = arith.constant 0 : index
    %101 = vector.load %arg10[%c0_46, %c0_47] : memref<32x64xf32, #tpu.memory_space<vmem>>, vector<32x64xf32>
    %cst_48 = arith.constant dense<0.000000e+00> : vector<64x64xf32>
    %102 = tpu.matmul %100, %101, %cst_48 {dimension_numbers = #tpu.dot_dimension_numbers<[1], [0], [0], [1], [0, 0, 1, 1], [], []>} : vector<64x32xf32>, vector<32x64xf32>, vector<64x64xf32> -> vector<64x64xf32>
    %c0_49 = arith.constant 0 : index
    %c0_50 = arith.constant 0 : index
    %103 = vector.load %arg11[%c0_49, %c0_50] : memref<1x64xf32, #tpu.memory_space<vmem>>, vector<1x64xf32>
    %104 = vector.broadcast %103 : vector<1x64xf32> to vector<64x64xf32>
    %105 = arith.addf %102, %104 : vector<64x64xf32>
    %c0_51 = arith.constant 0 : index
    %c0_52 = arith.constant 0 : index
    %106 = vector.load %arg5[%c0_51, %c0_52] : memref<64x64xf32, #tpu.memory_space<vmem>>, vector<64x64xf32>
    %cst_53 = arith.constant 0.000000e+00 : f32
    %107 = vector.broadcast %cst_53 : f32 to vector<64x32xf32>
    %108 = vector.extract_strided_slice %98 {offsets = [0, 0], sizes = [64, 8], strides = [1, 1]} : vector<64x32xf32> to vector<64x8xf32>
    %109 = vector.extract_strided_slice %105 {offsets = [0, 0], sizes = [64, 8], strides = [1, 1]} : vector<64x64xf32> to vector<64x8xf32>
    %cst_54 = arith.constant dense<0.000000e+00> : vector<64x64xf32>
    %110 = tpu.matmul %108, %109, %cst_54 {dimension_numbers = #tpu.dot_dimension_numbers<[1], [1], [0], [0], [0, 0, 1, 0], [], []>} : vector<64x8xf32>, vector<64x8xf32>, vector<64x64xf32> -> vector<64x64xf32>
    %cst_55 = arith.constant 0.353553385 : f32
    %111 = vector.broadcast %cst_55 : f32 to vector<64x64xf32>
    %112 = arith.mulf %110, %111 : vector<64x64xf32>
    %113 = arith.addf %112, %106 : vector<64x64xf32>
    %cst_56 = arith.constant dense<0xFF800000> : vector<64xf32>
    %114 = vector.multi_reduction <maximumf>, %113, %cst_56 [1] : vector<64x64xf32> to vector<64xf32>
    %115 = vector.shape_cast %114 : vector<64xf32> to vector<64x1xf32>
    %116 = vector.broadcast %115 : vector<64x1xf32> to vector<64x64xf32>
    %117 = arith.subf %113, %116 : vector<64x64xf32>
    %118 = math.exp %117 : vector<64x64xf32>
    %cst_57 = arith.constant dense<0.000000e+00> : vector<64xf32>
    %119 = vector.multi_reduction <add>, %118, %cst_57 [1] : vector<64x64xf32> to vector<64xf32>
    %120 = vector.shape_cast %119 : vector<64xf32> to vector<64x1xf32>
    %121 = tpu.reciprocal %120 {approx = true} : vector<64x1xf32> -> vector<64x1xf32>
    %122 = vector.broadcast %121 : vector<64x1xf32> to vector<64x64xf32>
    %123 = arith.mulf %118, %122 : vector<64x64xf32>
    %124 = vector.extract_strided_slice %105 {offsets = [0, 32], sizes = [64, 8], strides = [1, 1]} : vector<64x64xf32> to vector<64x8xf32>
    %cst_58 = arith.constant dense<0.000000e+00> : vector<64x8xf32>
    %125 = tpu.matmul %123, %124, %cst_58 {dimension_numbers = #tpu.dot_dimension_numbers<[1], [0], [0], [1], [0, 0, 1, 1], [], []>} : vector<64x64xf32>, vector<64x8xf32>, vector<64x8xf32> -> vector<64x8xf32>
    %c0_59 = arith.constant 0 : index
    %c0_60 = arith.constant 0 : index
    %126 = vector.load %arg12[%c0_59, %c0_60] : memref<32x32xf32, #tpu.memory_space<vmem>>, vector<8x32xf32>
    %cst_61 = arith.constant dense<0.000000e+00> : vector<64x32xf32>
    %127 = tpu.matmul %125, %126, %cst_61 {dimension_numbers = #tpu.dot_dimension_numbers<[1], [0], [0], [1], [0, 0, 1, 1], [], []>} : vector<64x8xf32>, vector<8x32xf32>, vector<64x32xf32> -> vector<64x32xf32>
    %128 = arith.addf %107, %127 : vector<64x32xf32>
    %129 = vector.extract_strided_slice %98 {offsets = [0, 8], sizes = [64, 8], strides = [1, 1]} : vector<64x32xf32> to vector<64x8xf32>
    %130 = vector.extract_strided_slice %105 {offsets = [0, 8], sizes = [64, 8], strides = [1, 1]} : vector<64x64xf32> to vector<64x8xf32>
    %cst_62 = arith.constant dense<0.000000e+00> : vector<64x64xf32>
    %131 = tpu.matmul %129, %130, %cst_62 {dimension_numbers = #tpu.dot_dimension_numbers<[1], [1], [0], [0], [0, 0, 1, 0], [], []>} : vector<64x8xf32>, vector<64x8xf32>, vector<64x64xf32> -> vector<64x64xf32>
    %cst_63 = arith.constant 0.353553385 : f32
    %132 = vector.broadcast %cst_63 : f32 to vector<64x64xf32>
    %133 = arith.mulf %131, %132 : vector<64x64xf32>
    %134 = arith.addf %133, %106 : vector<64x64xf32>
    %cst_64 = arith.constant dense<0xFF800000> : vector<64xf32>
    %135 = vector.multi_reduction <maximumf>, %134, %cst_64 [1] : vector<64x64xf32> to vector<64xf32>
    %136 = vector.shape_cast %135 : vector<64xf32> to vector<64x1xf32>
    %137 = vector.broadcast %136 : vector<64x1xf32> to vector<64x64xf32>
    %138 = arith.subf %134, %137 : vector<64x64xf32>
    %139 = math.exp %138 : vector<64x64xf32>
    %cst_65 = arith.constant dense<0.000000e+00> : vector<64xf32>
    %140 = vector.multi_reduction <add>, %139, %cst_65 [1] : vector<64x64xf32> to vector<64xf32>
    %141 = vector.shape_cast %140 : vector<64xf32> to vector<64x1xf32>
    %142 = tpu.reciprocal %141 {approx = true} : vector<64x1xf32> -> vector<64x1xf32>
    %143 = vector.broadcast %142 : vector<64x1xf32> to vector<64x64xf32>
    %144 = arith.mulf %139, %143 : vector<64x64xf32>
    %145 = vector.extract_strided_slice %105 {offsets = [0, 40], sizes = [64, 8], strides = [1, 1]} : vector<64x64xf32> to vector<64x8xf32>
    %cst_66 = arith.constant dense<0.000000e+00> : vector<64x8xf32>
    %146 = tpu.matmul %144, %145, %cst_66 {dimension_numbers = #tpu.dot_dimension_numbers<[1], [0], [0], [1], [0, 0, 1, 1], [], []>} : vector<64x64xf32>, vector<64x8xf32>, vector<64x8xf32> -> vector<64x8xf32>
    %c8_67 = arith.constant 8 : index
    %c0_68 = arith.constant 0 : index
    %147 = vector.load %arg12[%c8_67, %c0_68] : memref<32x32xf32, #tpu.memory_space<vmem>>, vector<8x32xf32>
    %cst_69 = arith.constant dense<0.000000e+00> : vector<64x32xf32>
    %148 = tpu.matmul %146, %147, %cst_69 {dimension_numbers = #tpu.dot_dimension_numbers<[1], [0], [0], [1], [0, 0, 1, 1], [], []>} : vector<64x8xf32>, vector<8x32xf32>, vector<64x32xf32> -> vector<64x32xf32>
    %149 = arith.addf %128, %148 : vector<64x32xf32>
    %150 = vector.extract_strided_slice %98 {offsets = [0, 16], sizes = [64, 8], strides = [1, 1]} : vector<64x32xf32> to vector<64x8xf32>
    %151 = vector.extract_strided_slice %105 {offsets = [0, 16], sizes = [64, 8], strides = [1, 1]} : vector<64x64xf32> to vector<64x8xf32>
    %cst_70 = arith.constant dense<0.000000e+00> : vector<64x64xf32>
    %152 = tpu.matmul %150, %151, %cst_70 {dimension_numbers = #tpu.dot_dimension_numbers<[1], [1], [0], [0], [0, 0, 1, 0], [], []>} : vector<64x8xf32>, vector<64x8xf32>, vector<64x64xf32> -> vector<64x64xf32>
    %cst_71 = arith.constant 0.353553385 : f32
    %153 = vector.broadcast %cst_71 : f32 to vector<64x64xf32>
    %154 = arith.mulf %152, %153 : vector<64x64xf32>
    %155 = arith.addf %154, %106 : vector<64x64xf32>
    %cst_72 = arith.constant dense<0xFF800000> : vector<64xf32>
    %156 = vector.multi_reduction <maximumf>, %155, %cst_72 [1] : vector<64x64xf32> to vector<64xf32>
    %157 = vector.shape_cast %156 : vector<64xf32> to vector<64x1xf32>
    %158 = vector.broadcast %157 : vector<64x1xf32> to vector<64x64xf32>
    %159 = arith.subf %155, %158 : vector<64x64xf32>
    %160 = math.exp %159 : vector<64x64xf32>
    %cst_73 = arith.constant dense<0.000000e+00> : vector<64xf32>
    %161 = vector.multi_reduction <add>, %160, %cst_73 [1] : vector<64x64xf32> to vector<64xf32>
    %162 = vector.shape_cast %161 : vector<64xf32> to vector<64x1xf32>
    %163 = tpu.reciprocal %162 {approx = true} : vector<64x1xf32> -> vector<64x1xf32>
    %164 = vector.broadcast %163 : vector<64x1xf32> to vector<64x64xf32>
    %165 = arith.mulf %160, %164 : vector<64x64xf32>
    %166 = vector.extract_strided_slice %105 {offsets = [0, 48], sizes = [64, 8], strides = [1, 1]} : vector<64x64xf32> to vector<64x8xf32>
    %cst_74 = arith.constant dense<0.000000e+00> : vector<64x8xf32>
    %167 = tpu.matmul %165, %166, %cst_74 {dimension_numbers = #tpu.dot_dimension_numbers<[1], [0], [0], [1], [0, 0, 1, 1], [], []>} : vector<64x64xf32>, vector<64x8xf32>, vector<64x8xf32> -> vector<64x8xf32>
    %c16_75 = arith.constant 16 : index
    %c0_76 = arith.constant 0 : index
    %168 = vector.load %arg12[%c16_75, %c0_76] : memref<32x32xf32, #tpu.memory_space<vmem>>, vector<8x32xf32>
    %cst_77 = arith.constant dense<0.000000e+00> : vector<64x32xf32>
    %169 = tpu.matmul %167, %168, %cst_77 {dimension_numbers = #tpu.dot_dimension_numbers<[1], [0], [0], [1], [0, 0, 1, 1], [], []>} : vector<64x8xf32>, vector<8x32xf32>, vector<64x32xf32> -> vector<64x32xf32>
    %170 = arith.addf %149, %169 : vector<64x32xf32>
    %171 = vector.extract_strided_slice %98 {offsets = [0, 24], sizes = [64, 8], strides = [1, 1]} : vector<64x32xf32> to vector<64x8xf32>
    %172 = vector.extract_strided_slice %105 {offsets = [0, 24], sizes = [64, 8], strides = [1, 1]} : vector<64x64xf32> to vector<64x8xf32>
    %cst_78 = arith.constant dense<0.000000e+00> : vector<64x64xf32>
    %173 = tpu.matmul %171, %172, %cst_78 {dimension_numbers = #tpu.dot_dimension_numbers<[1], [1], [0], [0], [0, 0, 1, 0], [], []>} : vector<64x8xf32>, vector<64x8xf32>, vector<64x64xf32> -> vector<64x64xf32>
    %cst_79 = arith.constant 0.353553385 : f32
    %174 = vector.broadcast %cst_79 : f32 to vector<64x64xf32>
    %175 = arith.mulf %173, %174 : vector<64x64xf32>
    %176 = arith.addf %175, %106 : vector<64x64xf32>
    %cst_80 = arith.constant dense<0xFF800000> : vector<64xf32>
    %177 = vector.multi_reduction <maximumf>, %176, %cst_80 [1] : vector<64x64xf32> to vector<64xf32>
    %178 = vector.shape_cast %177 : vector<64xf32> to vector<64x1xf32>
    %179 = vector.broadcast %178 : vector<64x1xf32> to vector<64x64xf32>
    %180 = arith.subf %176, %179 : vector<64x64xf32>
    %181 = math.exp %180 : vector<64x64xf32>
    %cst_81 = arith.constant dense<0.000000e+00> : vector<64xf32>
    %182 = vector.multi_reduction <add>, %181, %cst_81 [1] : vector<64x64xf32> to vector<64xf32>
    %183 = vector.shape_cast %182 : vector<64xf32> to vector<64x1xf32>
    %184 = tpu.reciprocal %183 {approx = true} : vector<64x1xf32> -> vector<64x1xf32>
    %185 = vector.broadcast %184 : vector<64x1xf32> to vector<64x64xf32>
    %186 = arith.mulf %181, %185 : vector<64x64xf32>
    %187 = vector.extract_strided_slice %105 {offsets = [0, 56], sizes = [64, 8], strides = [1, 1]} : vector<64x64xf32> to vector<64x8xf32>
    %cst_82 = arith.constant dense<0.000000e+00> : vector<64x8xf32>
    %188 = tpu.matmul %186, %187, %cst_82 {dimension_numbers = #tpu.dot_dimension_numbers<[1], [0], [0], [1], [0, 0, 1, 1], [], []>} : vector<64x64xf32>, vector<64x8xf32>, vector<64x8xf32> -> vector<64x8xf32>
    %c24_83 = arith.constant 24 : index
    %c0_84 = arith.constant 0 : index
    %189 = vector.load %arg12[%c24_83, %c0_84] : memref<32x32xf32, #tpu.memory_space<vmem>>, vector<8x32xf32>
    %cst_85 = arith.constant dense<0.000000e+00> : vector<64x32xf32>
    %190 = tpu.matmul %188, %189, %cst_85 {dimension_numbers = #tpu.dot_dimension_numbers<[1], [0], [0], [1], [0, 0, 1, 1], [], []>} : vector<64x8xf32>, vector<8x32xf32>, vector<64x32xf32> -> vector<64x32xf32>
    %191 = arith.addf %170, %190 : vector<64x32xf32>
    %c0_86 = arith.constant 0 : index
    %c0_87 = arith.constant 0 : index
    %192 = vector.load %arg13[%c0_86, %c0_87] : memref<1x32xf32, #tpu.memory_space<vmem>>, vector<1x32xf32>
    %193 = vector.broadcast %192 : vector<1x32xf32> to vector<64x32xf32>
    %194 = arith.addf %191, %193 : vector<64x32xf32>
    %c0_88 = arith.constant 0 : index
    %c0_89 = arith.constant 0 : index
    %195 = vector.load %arg14[%c0_88, %c0_89] : memref<1x32xf32, #tpu.memory_space<vmem>>, vector<1x32xf32>
    %196 = vector.shape_cast %195 : vector<1x32xf32> to vector<1x1x32xf32>
    %197 = vector.shape_cast %194 : vector<64x32xf32> to vector<8x8x32xf32>
    %198 = vector.broadcast %196 : vector<1x1x32xf32> to vector<8x8x32xf32>
    %199 = arith.mulf %197, %198 : vector<8x8x32xf32>
    %cst_90 = arith.constant dense<0.000000e+00> : vector<8x8xf32>
    %200 = vector.multi_reduction <add>, %199, %cst_90 [2] : vector<8x8x32xf32> to vector<8x8xf32>
    %c0_91 = arith.constant 0 : index
    %c0_92 = arith.constant 0 : index
    %201 = vector.load %arg15[%c0_91, %c0_92] : memref<1x1xf32, #tpu.memory_space<vmem>>, vector<1x1xf32>
    %202 = vector.broadcast %201 : vector<1x1xf32> to vector<8x8xf32>
    %203 = arith.addf %200, %202 : vector<8x8xf32>
    %c0_93 = arith.constant 0 : index
    %c0_94 = arith.constant 0 : index
    %204 = vector.load %arg16[%c0_93, %c0_94] : memref<8x8xf32, #tpu.memory_space<vmem>>, vector<8x8xf32>
    tpu.vector_store %arg16[%c0_93, %c0_94], %203 {strides = array<i32>} : memref<8x8xf32, #tpu.memory_space<vmem>>, vector<8x8xf32>,
    return
  }
  func.func @transform_0(%arg0: i32) -> (i32, i32, i32) {
    %c0_i32 = arith.constant 0 : i32
    %c0_i32_0 = arith.constant 0 : i32
    %c0_i32_1 = arith.constant 0 : i32
    return %arg0, %c0_i32, %c0_i32_0 : i32, i32, i32
  }
  func.func @transform_1(%arg0: i32) -> (i32, i32, i32) {
    %c0_i32 = arith.constant 0 : i32
    %c0_i32_0 = arith.constant 0 : i32
    %c0_i32_1 = arith.constant 0 : i32
    %c0_i32_2 = arith.constant 0 : i32
    return %c0_i32, %c0_i32_0, %c0_i32_1 : i32, i32, i32
  }
  func.func @transform_2(%arg0: i32) -> (i32, i32, i32) {
    %c0_i32 = arith.constant 0 : i32
    %c0_i32_0 = arith.constant 0 : i32
    %c0_i32_1 = arith.constant 0 : i32
    return %arg0, %c0_i32, %c0_i32_0 : i32, i32, i32
  }
  func.func @transform_3(%arg0: i32) -> (i32, i32) {
    %c0_i32 = arith.constant 0 : i32
    %c0_i32_0 = arith.constant 0 : i32
    %c0_i32_1 = arith.constant 0 : i32
    return %c0_i32, %c0_i32_0 : i32, i32
  }
  func.func @transform_4(%arg0: i32) -> (i32, i32) {
    %c0_i32 = arith.constant 0 : i32
    %c0_i32_0 = arith.constant 0 : i32
    %c0_i32_1 = arith.constant 0 : i32
    return %c0_i32, %c0_i32_0 : i32, i32
  }
  func.func @transform_5(%arg0: i32) -> (i32, i32) {
    %c0_i32 = arith.constant 0 : i32
    %c0_i32_0 = arith.constant 0 : i32
    %c0_i32_1 = arith.constant 0 : i32
    return %c0_i32, %c0_i32_0 : i32, i32
  }
  func.func @transform_6(%arg0: i32) -> (i32, i32) {
    %c0_i32 = arith.constant 0 : i32
    %c0_i32_0 = arith.constant 0 : i32
    %c0_i32_1 = arith.constant 0 : i32
    return %c0_i32, %c0_i32_0 : i32, i32
  }
  func.func @transform_7(%arg0: i32) -> (i32, i32) {
    %c0_i32 = arith.constant 0 : i32
    %c0_i32_0 = arith.constant 0 : i32
    %c0_i32_1 = arith.constant 0 : i32
    return %c0_i32, %c0_i32_0 : i32, i32
  }
  func.func @transform_8(%arg0: i32) -> (i32, i32) {
    %c0_i32 = arith.constant 0 : i32
    %c0_i32_0 = arith.constant 0 : i32
    %c0_i32_1 = arith.constant 0 : i32
    return %c0_i32, %c0_i32_0 : i32, i32
  }
  func.func @transform_9(%arg0: i32) -> (i32, i32) {
    %c0_i32 = arith.constant 0 : i32
    %c0_i32_0 = arith.constant 0 : i32
    %c0_i32_1 = arith.constant 0 : i32
    return %c0_i32, %c0_i32_0 : i32, i32
  }
  func.func @transform_10(%arg0: i32) -> (i32, i32) {
    %c0_i32 = arith.constant 0 : i32
    %c0_i32_0 = arith.constant 0 : i32
    %c0_i32_1 = arith.constant 0 : i32
    return %c0_i32, %c0_i32_0 : i32, i32
  }
  func.func @transform_11(%arg0: i32) -> (i32, i32) {
    %c0_i32 = arith.constant 0 : i32
    %c0_i32_0 = arith.constant 0 : i32
    %c0_i32_1 = arith.constant 0 : i32
    return %c0_i32, %c0_i32_0 : i32, i32
  }
  func.func @transform_12(%arg0: i32) -> (i32, i32) {
    %c0_i32 = arith.constant 0 : i32
    %c0_i32_0 = arith.constant 0 : i32
    %c0_i32_1 = arith.constant 0 : i32
    return %c0_i32, %c0_i32_0 : i32, i32
  }
  func.func @transform_13(%arg0: i32) -> (i32, i32) {
    %c0_i32 = arith.constant 0 : i32
    %c0_i32_0 = arith.constant 0 : i32
    %c0_i32_1 = arith.constant 0 : i32
    return %c0_i32, %c0_i32_0 : i32, i32
  }
  func.func @transform_14(%arg0: i32) -> (i32, i32) {
    %c0_i32 = arith.constant 0 : i32
    %c0_i32_0 = arith.constant 0 : i32
    %c0_i32_1 = arith.constant 0 : i32
    return %c0_i32, %c0_i32_0 : i32, i32
  }
  func.func @transform_15(%arg0: i32) -> (i32, i32) {
    %c0_i32 = arith.constant 0 : i32
    %c0_i32_0 = arith.constant 0 : i32
    return %arg0, %c0_i32 : i32, i32
  }
}

</mosaic_0001>

<llo_original>
// kernel: decoder_forward.1
$region0: #{decoder_forward.1}
  #allocation0 [shape = 'u32[]', space=smem, size = 0x4, offset = 0x4, fixed_abs, tag = 'smem constant byte address 0x4 - core index']
  #allocation1 [shape = 'u32[144,128]{1,0:T(1,128)}', space=vmem, size = 0x12000, scoped, tag = 'internal scratch']
  #allocation2 [shape = 'f32[1,1]{1,0:T(1,128)S(1)}', space=vmem, size = 0x200, scoped, tag = 'scoped memory for decoder_forward.1']
  %s0 = inlined_call_operand.vmem [shape: f32[8,8,16], index: 0, kind: input, shape index: {}]
  %s1 = inlined_call_operand.vmem [shape: f32[1,8,16], index: 1, kind: input, shape index: {}]
  %s2 = inlined_call_operand.vmem [shape: f32[8,8,32], index: 2, kind: input, shape index: {}]
  %s3 = inlined_call_operand.vmem [shape: f32[64,64], index: 3, kind: input, shape index: {}]
  %s4 = inlined_call_operand.vmem [shape: f32[64,64], index: 4, kind: input, shape index: {}]
  %s5 = inlined_call_operand.vmem [shape: f32[16,96], index: 5, kind: input, shape index: {}]
  %s6 = inlined_call_operand.vmem [shape: f32[1,96], index: 6, kind: input, shape index: {}]
  %s7 = inlined_call_operand.vmem [shape: f32[32,32], index: 7, kind: input, shape index: {}]
  %s8 = inlined_call_operand.vmem [shape: f32[1,32], index: 8, kind: input, shape index: {}]
  %s9 = inlined_call_operand.vmem [shape: f32[32,64], index: 9, kind: input, shape index: {}]
  %s10 = inlined_call_operand.vmem [shape: f32[1,64], index: 10, kind: input, shape index: {}]
  %s11 = inlined_call_operand.vmem [shape: f32[32,32], index: 11, kind: input, shape index: {}]
  %s12 = inlined_call_operand.vmem [shape: f32[1,32], index: 12, kind: input, shape index: {}]
  %s13 = inlined_call_operand.vmem [shape: f32[1,32], index: 13, kind: input, shape index: {}]
  %s14 = inlined_call_operand.<no memory space> [shape: f32[1,1], index: 14, kind: input, shape index: {}]
  %s15 = inlined_call_operand.hbm [shape: f32[8,8], index: 15, kind: output, shape index: {}]
  %s16 = sld [smem:[#allocation0]]
  $region70: #{decoder_forward.1} parent=0
    _
  %s18 = ssub.s32 1, %s16
  %s19 = scalar_select 0, %s18, %s16
  %v20 = vstv %s14
  %21 = vst [vmem:[#allocation2] sm:$0x1] %v20
  $region1: #{decoder_forward.1} parent=0
    #allocation3 [shape = 'u8[4096]{0}', space=vmem, size = 0x1000, scoped, tag = 'output window, operand 0, single buffered']
    #allocation4 [shape = 's32[1]{0}', space=sflag, size = 0x4, scoped, tag = 'scoped memory for decoder_forward.1']
    %22 = vsyncpa [#allocation4], 0
    // Predicated region
    $region2: #{decoder_forward.1} parent=1 // pred_check
      _
    $region3: #{decoder_forward.1} parent=1 // pred_check_branch
      %24 = sbr.rel (0) target = $region5
    $region4: #{decoder_forward.1} parent=1 // pred_region
      _
    $region5: #{decoder_forward.1} parent=1 // pred_fallthru
      _
    // Predicated region
    $region6: #{decoder_forward.1} parent=1 // pred_check
      _
    $region7: #{decoder_forward.1} parent=1 // pred_check_branch
      %26 = sbr.rel (0) target = $region9
    $region8: #{decoder_forward.1} parent=1 // pred_region
      _
    $region9: #{decoder_forward.1} parent=1 // pred_fallthru
      _
    // Predicated region
    $region10: #{decoder_forward.1} parent=1 // pred_check
      _
    $region11: #{decoder_forward.1} parent=1 // pred_check_branch
      %28 = sbr.rel (0) target = $region13
    $region12: #{decoder_forward.1} parent=1 // pred_region
      _
    $region13: #{decoder_forward.1} parent=1 // pred_fallthru
      _
    // Predicated region
    $region14: #{decoder_forward.1} parent=1 // pred_check
      _
    $region15: #{decoder_forward.1} parent=1 // pred_check_branch
      %30 = sbr.rel (0) target = $region17
    $region16: #{decoder_forward.1} parent=1 // pred_region
      _
    $region17: #{decoder_forward.1} parent=1 // pred_fallthru
      _
    // Predicated region
    $region18: #{decoder_forward.1} parent=1 // pred_check
      _
    $region19: #{decoder_forward.1} parent=1 // pred_check_branch
      %32 = sbr.rel (0) target = $region21
    $region20: #{decoder_forward.1} parent=1 // pred_region
      _
    $region21: #{decoder_forward.1} parent=1 // pred_fallthru
      _
    // Predicated region
    $region22: #{decoder_forward.1} parent=1 // pred_check
      _
    $region23: #{decoder_forward.1} parent=1 // pred_check_branch
      %34 = sbr.rel (0) target = $region25
    $region24: #{decoder_forward.1} parent=1 // pred_region
      _
    $region25: #{decoder_forward.1} parent=1 // pred_fallthru
      _
    // Predicated region
    $region26: #{decoder_forward.1} parent=1 // pred_check
      _
    $region27: #{decoder_forward.1} parent=1 // pred_check_branch
      %36 = sbr.rel (0) target = $region29
    $region28: #{decoder_forward.1} parent=1 // pred_region
      _
    $region29: #{decoder_forward.1} parent=1 // pred_fallthru
      _
    // Predicated region
    $region30: #{decoder_forward.1} parent=1 // pred_check
      _
    $region31: #{decoder_forward.1} parent=1 // pred_check_branch
      %38 = sbr.rel (0) target = $region33
    $region32: #{decoder_forward.1} parent=1 // pred_region
      _
    $region33: #{decoder_forward.1} parent=1 // pred_fallthru
      _
    // Predicated region
    $region34: #{decoder_forward.1} parent=1 // pred_check
      _
    $region35: #{decoder_forward.1} parent=1 // pred_check_branch
      %40 = sbr.rel (0) target = $region37
    $region36: #{decoder_forward.1} parent=1 // pred_region
      _
    $region37: #{decoder_forward.1} parent=1 // pred_fallthru
      _
    // Predicated region
    $region38: #{decoder_forward.1} parent=1 // pred_check
      _
    $region39: #{decoder_forward.1} parent=1 // pred_check_branch
      %42 = sbr.rel (0) target = $region41
    $region40: #{decoder_forward.1} parent=1 // pred_region
      _
    $region41: #{decoder_forward.1} parent=1 // pred_fallthru
      _
    // Predicated region
    $region42: #{decoder_forward.1} parent=1 // pred_check
      _
    $region43: #{decoder_forward.1} parent=1 // pred_check_branch
      %44 = sbr.rel (0) target = $region45
    $region44: #{decoder_forward.1} parent=1 // pred_region
      _
    $region45: #{decoder_forward.1} parent=1 // pred_fallthru
      _
    // Predicated region
    $region46: #{decoder_forward.1} parent=1 // pred_check
      _
    $region47: #{decoder_forward.1} parent=1 // pred_check_branch
      %46 = sbr.rel (0) target = $region49
    $region48: #{decoder_forward.1} parent=1 // pred_region
      _
    $region49: #{decoder_forward.1} parent=1 // pred_fallthru
      _
    // Predicated region
    $region50: #{decoder_forward.1} parent=1 // pred_check
      _
    $region51: #{decoder_forward.1} parent=1 // pred_check_branch
      %48 = sbr.rel (0) target = $region53
    $region52: #{decoder_forward.1} parent=1 // pred_region
      _
    $region53: #{decoder_forward.1} parent=1 // pred_fallthru
      _
    // Predicated region
    $region54: #{decoder_forward.1} parent=1 // pred_check
      _
    $region55: #{decoder_forward.1} parent=1 // pred_check_branch
      %50 = sbr.rel (0) target = $region57
    $region56: #{decoder_forward.1} parent=1 // pred_region
      _
    $region57: #{decoder_forward.1} parent=1 // pred_fallthru
      _
    // Predicated region
    $region58: #{decoder_forward.1} parent=1 // pred_check
      _
    $region59: #{decoder_forward.1} parent=1 // pred_check_branch
      %52 = sbr.rel (0) target = $region61
    $region60: #{decoder_forward.1} parent=1 // pred_region
      _
    $region61: #{decoder_forward.1} parent=1 // pred_fallthru
      _
    %v53 = vld [vmem:[%s0] sm:$0xff]
    %v54 = vld [vmem:[%s0 + $0x8] sm:$0xff]
    %v55 = vld [vmem:[%s0 + $0x10] sm:$0xff]
    %v56 = vld [vmem:[%s0 + $0x18] sm:$0xff]
    %v57 = vld [vmem:[%s0 + $0x20] sm:$0xff]
    %v58 = vld [vmem:[%s0 + $0x28] sm:$0xff]
    %v59 = vld [vmem:[%s0 + $0x30] sm:$0xff]
    %v60 = vld [vmem:[%s0 + $0x38] sm:$0xff]
    %v61 = vld [vmem:[%s1] sm:$0xff]
    %v62 = vadd.f32 %v53, %v61
    %v63 = vadd.f32 %v54, %v61
    %v64 = vadd.f32 %v55, %v61
    %v65 = vadd.f32 %v56, %v61
    %v66 = vadd.f32 %v57, %v61
    %v67 = vadd.f32 %v58, %v61
    %v68 = vadd.f32 %v59, %v61
    %v69 = vadd.f32 %v60, %v61
    %v70 = vld [vmem:[%s5] sm:$0xff]
    %v71 = vld [vmem:[%s5 + $0x8] sm:$0xff]
    %v72 = vld [vmem:[%s6] sm:$0x1]
    %v74 = vlaneseq
    %v75 = vshrl.u32 %v74, 7
    %v76 = vsub.s32 0, %v75
    %v77 = vrot.slane %v72, %v76
    %vm79 = vcmask 130048
    %v81 = vsel %vm79, %v62, 0
    %v84 = vsel %vm79, %v63, 0
    %v87 = vsel %vm79, %v64, 0
    %v90 = vsel %vm79, %v65, 0
    %v93 = vsel %vm79, %v66, 0
    %v96 = vsel %vm79, %v67, 0
    %v99 = vsel %vm79, %v68, 0
    %v102 = vsel %vm79, %v69, 0
    %104 = vmatprep.subr.mxu0 0.0
    %105 = vmatpush1.msra.mxu0 0.0
    %106 = vmatprep.subr.mxu0 0.0
    %107 = vmatpush1.msra.mxu0 0.0
    %108 = vmatprep.subr.mxu0 0.0
    %109 = vmatpush1.msra.mxu0 0.0
    %110 = vmatprep.subr.mxu0 0.0
    %111 = vmatpush1.msra.mxu0 0.0
    %112 = vmatprep.subr.mxu0 0.0
    %113 = vmatpush1.msra.mxu0 0.0
    %114 = vmatprep.subr.mxu0 0.0
    %115 = vmatpush1.msra.mxu0 0.0
    %116 = vmatprep.subr.mxu0 0.0
    %117 = vmatpush1.msra.mxu0 0.0
    %118 = vmatprep.subr.mxu0 0.0
    %119 = vmatpush1.msra.mxu0 0.0
    %120 = vmatprep.subr.mxu0 0.0
    %121 = vmatpush1.msra.mxu0 0.0
    %122 = vmatprep.subr.mxu0 0.0
    %123 = vmatpush1.msra.mxu0 0.0
    %124 = vmatprep.subr.mxu0 0.0
    %125 = vmatpush1.msra.mxu0 0.0
    %126 = vmatprep.subr.mxu0 0.0
    %127 = vmatpush1.msra.mxu0 0.0
    %128 = vmatprep.subr.mxu0 0.0
    %129 = vmatpush1.msra.mxu0 0.0
    %130 = vmatprep.subr.mxu0 0.0
    %131 = vmatpush1.msra.mxu0 0.0
    %132 = vmatprep.subr.mxu0 0.0
    %133 = vmatpush1.msra.mxu0 %v71
    %134 = vmatprep.subr.mxu0 0.0
    %135 = vmatpush1.msra.mxu0 %v70
    %136 = vmatprep.subr.mxu0 0.0
    %137 = vmatpush2.msra.mxu0 0.0
    %138 = vmatprep.subr.mxu0 0.0
    %139 = vmatpush2.msra.mxu0 0.0
    %140 = vmatprep.subr.mxu0 0.0
    %141 = vmatpush2.msra.mxu0 0.0
    %142 = vmatprep.subr.mxu0 0.0
    %143 = vmatpush2.msra.mxu0 0.0
    %144 = vmatprep.subr.mxu0 0.0
    %145 = vmatpush2.msra.mxu0 0.0
    %146 = vmatprep.subr.mxu0 0.0
    %147 = vmatpush2.msra.mxu0 0.0
    %148 = vmatprep.subr.mxu0 0.0
    %149 = vmatpush2.msra.mxu0 0.0
    %150 = vmatprep.subr.mxu0 0.0
    %151 = vmatpush2.msra.mxu0 0.0
    %152 = vmatprep.subr.mxu0 0.0
    %153 = vmatpush2.msra.mxu0 0.0
    %154 = vmatprep.subr.mxu0 0.0
    %155 = vmatpush2.msra.mxu0 0.0
    %156 = vmatprep.subr.mxu0 0.0
    %157 = vmatpush2.msra.mxu0 0.0
    %158 = vmatprep.subr.mxu0 0.0
    %159 = vmatpush2.msra.mxu0 0.0
    %160 = vmatprep.subr.mxu0 0.0
    %161 = vmatpush2.msra.mxu0 0.0
    %162 = vmatprep.subr.mxu0 0.0
    %163 = vmatpush2.msra.mxu0 0.0
    %164 = vmatprep.subr.mxu0 0.0
    %165 = vmatpush2.msra.mxu0 0.0
    %166 = vmatprep.subr.mxu0 0.0
    %167 = vmatpush2.msra.mxu0 0.0
    %168 = vmatprep.mubr.f32.mxu0 0.0
    %169 = vmatmul.mubr.f32.gmra.mxu0 %v81
    %v170 = vpop.f32.mrf.mxu0
    %v171 = vadd.f32 %v77, %v170
    %v172 = vpop.f32.mrf.mxu0
    %173 = vmatprep.mubr.f32.mxu0 0.0
    %174 = vmatmul.mubr.f32.gmra.mxu0 %v84
    %v175 = vpop.f32.mrf.mxu0
    %v176 = vadd.f32 %v77, %v175
    %v177 = vpop.f32.mrf.mxu0
    %178 = vmatprep.mubr.f32.mxu0 0.0
    %179 = vmatmul.mubr.f32.gmra.mxu0 %v87
    %v180 = vpop.f32.mrf.mxu0
    %v181 = vadd.f32 %v77, %v180
    %v182 = vpop.f32.mrf.mxu0
    %183 = vmatprep.mubr.f32.mxu0 0.0
    %184 = vmatmul.mubr.f32.gmra.mxu0 %v90
    %v185 = vpop.f32.mrf.mxu0
    %v186 = vadd.f32 %v77, %v185
    %v187 = vpop.f32.mrf.mxu0
    %188 = vmatprep.mubr.f32.mxu0 0.0
    %189 = vmatmul.mubr.f32.gmra.mxu0 %v93
    %v190 = vpop.f32.mrf.mxu0
    %v191 = vadd.f32 %v77, %v190
    %v192 = vpop.f32.mrf.mxu0
    %193 = vmatprep.mubr.f32.mxu0 0.0
    %194 = vmatmul.mubr.f32.gmra.mxu0 %v96
    %v195 = vpop.f32.mrf.mxu0
    %v196 = vadd.f32 %v77, %v195
    %v197 = vpop.f32.mrf.mxu0
    %198 = vmatprep.mubr.f32.mxu0 0.0
    %199 = vmatmul.mubr.f32.gmra.mxu0 %v99
    %v200 = vpop.f32.mrf.mxu0
    %v201 = vadd.f32 %v77, %v200
    %v202 = vpop.f32.mrf.mxu0
    %203 = vmatprep.mubr.f32.mxu0 0.0
    %204 = vmatmul.mubr.f32.gmra.mxu0 %v102
    %v205 = vpop.f32.mrf.mxu0
    %v206 = vadd.f32 %v77, %v205
    %v207 = vpop.f32.mrf.mxu0
    %208 = vdwg.mxu0
    %v209 = vld [vmem:[%s3] sm:$0xff]
    %v210 = vld [vmem:[%s3 + $0x8] sm:$0xff]
    %v211 = vld [vmem:[%s3 + $0x10] sm:$0xff]
    %v212 = vld [vmem:[%s3 + $0x18] sm:$0xff]
    %v213 = vld [vmem:[%s3 + $0x20] sm:$0xff]
    %v214 = vld [vmem:[%s3 + $0x28] sm:$0xff]
    %v215 = vld [vmem:[%s3 + $0x30] sm:$0xff]
    %v216 = vld [vmem:[%s3 + $0x38] sm:$0xff]
    %225 = vrot.lane.b32.xlu0 %v171, 96
    %v226 = vpop.permute.xlu0 %225
    %227 = vrot.lane.b32.xlu0 %v176, 96
    %v228 = vpop.permute.xlu0 %227
    %229 = vrot.lane.b32.xlu0 %v181, 96
    %v230 = vpop.permute.xlu0 %229
    %231 = vrot.lane.b32.xlu0 %v186, 96
    %v232 = vpop.permute.xlu0 %231
    %233 = vrot.lane.b32.xlu0 %v191, 96
    %v234 = vpop.permute.xlu0 %233
    %235 = vrot.lane.b32.xlu0 %v196, 96
    %v236 = vpop.permute.xlu0 %235
    %237 = vrot.lane.b32.xlu0 %v201, 96
    %v238 = vpop.permute.xlu0 %237
    %239 = vrot.lane.b32.xlu0 %v206, 96
    %v240 = vpop.permute.xlu0 %239
    %vm241 = vcmask 64512
    %v242 = vsel %vm241, %v171, 0
    %v244 = vsel %vm241, %v176, 0
    %v246 = vsel %vm241, %v181, 0
    %v248 = vsel %vm241, %v186, 0
    %v250 = vsel %vm241, %v191, 0
    %v252 = vsel %vm241, %v196, 0
    %v254 = vsel %vm241, %v201, 0
    %v256 = vsel %vm241, %v206, 0
    %v258 = vsel %vm241, %v226, 0
    %v260 = vsel %vm241, %v228, 0
    %v262 = vsel %vm241, %v230, 0
    %v264 = vsel %vm241, %v232, 0
    %v266 = vsel %vm241, %v234, 0
    %v268 = vsel %vm241, %v236, 0
    %v270 = vsel %vm241, %v238, 0
    %v272 = vsel %vm241, %v240, 0
    %274 = vmatprep.subr.mxu0 0.0
    %275 = vmatpush1.xpose.msra.mxu0 0.0
    %276 = vmatprep.subr.mxu0 0.0
    %277 = vmatpush1.xpose.msra.mxu0 0.0
    %278 = vmatprep.subr.mxu0 0.0
    %279 = vmatpush1.xpose.msra.mxu0 0.0
    %280 = vmatprep.subr.mxu0 0.0
    %281 = vmatpush1.xpose.msra.mxu0 0.0
    %282 = vmatprep.subr.mxu0 0.0
    %283 = vmatpush1.xpose.msra.mxu0 0.0
    %284 = vmatprep.subr.mxu0 0.0
    %285 = vmatpush1.xpose.msra.mxu0 0.0
    %286 = vmatprep.subr.mxu0 0.0
    %287 = vmatpush1.xpose.msra.mxu0 0.0
    %288 = vmatprep.subr.mxu0 0.0
    %289 = vmatpush1.xpose.msra.mxu0 0.0
    %290 = vmatprep.subr.mxu0 0.0
    %291 = vmatpush1.xpose.msra.mxu0 %v272
    %292 = vmatprep.subr.mxu0 0.0
    %293 = vmatpush1.xpose.msra.mxu0 %v270
    %294 = vmatprep.subr.mxu0 0.0
    %295 = vmatpush1.xpose.msra.mxu0 %v268
    %296 = vmatprep.subr.mxu0 0.0
    %297 = vmatpush1.xpose.msra.mxu0 %v266
    %298 = vmatprep.subr.mxu0 0.0
    %299 = vmatpush1.xpose.msra.mxu0 %v264
    %300 = vmatprep.subr.mxu0 0.0
    %301 = vmatpush1.xpose.msra.mxu0 %v262
    %302 = vmatprep.subr.mxu0 0.0
    %303 = vmatpush1.xpose.msra.mxu0 %v260
    %304 = vmatprep.subr.mxu0 0.0
    %305 = vmatpush1.xpose.msra.mxu0 %v258
    %306 = vmatprep.subr.mxu0 0.0
    %307 = vmatpush2.xpose.msra.mxu0 0.0
    %308 = vmatprep.subr.mxu0 0.0
    %309 = vmatpush2.xpose.msra.mxu0 0.0
    %310 = vmatprep.subr.mxu0 0.0
    %311 = vmatpush2.xpose.msra.mxu0 0.0
    %312 = vmatprep.subr.mxu0 0.0
    %313 = vmatpush2.xpose.msra.mxu0 0.0
    %314 = vmatprep.subr.mxu0 0.0
    %315 = vmatpush2.xpose.msra.mxu0 0.0
    %316 = vmatprep.subr.mxu0 0.0
    %317 = vmatpush2.xpose.msra.mxu0 0.0
    %318 = vmatprep.subr.mxu0 0.0
    %319 = vmatpush2.xpose.msra.mxu0 0.0
    %320 = vmatprep.subr.mxu0 0.0
    %321 = vmatpush2.xpose.msra.mxu0 0.0
    %322 = vmatprep.subr.mxu0 0.0
    %323 = vmatpush2.xpose.msra.mxu0 0.0
    %324 = vmatprep.subr.mxu0 0.0
    %325 = vmatpush2.xpose.msra.mxu0 0.0
    %326 = vmatprep.subr.mxu0 0.0
    %327 = vmatpush2.xpose.msra.mxu0 0.0
    %328 = vmatprep.subr.mxu0 0.0
    %329 = vmatpush2.xpose.msra.mxu0 0.0
    %330 = vmatprep.subr.mxu0 0.0
    %331 = vmatpush2.xpose.msra.mxu0 0.0
    %332 = vmatprep.subr.mxu0 0.0
    %333 = vmatpush2.xpose.msra.mxu0 0.0
    %334 = vmatprep.subr.mxu0 0.0
    %335 = vmatpush2.xpose.msra.mxu0 0.0
    %336 = vmatprep.subr.mxu0 0.0
    %337 = vmatpush2.xpose.msra.mxu0 0.0
    %338 = vmatprep.mubr.f32.mxu0 0.0
    %339 = vmatmul.mubr.f32.gmra.mxu0 %v242
    %v340 = vpop.f32.mrf.mxu0
    %v341 = vadd.f32 0.0, %v340
    %v342 = vpop.f32.mrf.mxu0
    %343 = vmatprep.mubr.f32.mxu0 0.0
    %344 = vmatmul.mubr.f32.gmra.mxu0 %v244
    %v345 = vpop.f32.mrf.mxu0
    %v346 = vadd.f32 0.0, %v345
    %v347 = vpop.f32.mrf.mxu0
    %348 = vmatprep.mubr.f32.mxu0 0.0
    %349 = vmatmul.mubr.f32.gmra.mxu0 %v246
    %v350 = vpop.f32.mrf.mxu0
    %v351 = vadd.f32 0.0, %v350
    %v352 = vpop.f32.mrf.mxu0
    %353 = vmatprep.mubr.f32.mxu0 0.0
    %354 = vmatmul.mubr.f32.gmra.mxu0 %v248
    %v355 = vpop.f32.mrf.mxu0
    %v356 = vadd.f32 0.0, %v355
    %v357 = vpop.f32.mrf.mxu0
    %358 = vmatprep.mubr.f32.mxu0 0.0
    %359 = vmatmul.mubr.f32.gmra.mxu0 %v250
    %v360 = vpop.f32.mrf.mxu0
    %v361 = vadd.f32 0.0, %v360
    %v362 = vpop.f32.mrf.mxu0
    %363 = vmatprep.mubr.f32.mxu0 0.0
    %364 = vmatmul.mubr.f32.gmra.mxu0 %v252
    %v365 = vpop.f32.mrf.mxu0
    %v366 = vadd.f32 0.0, %v365
    %v367 = vpop.f32.mrf.mxu0
    %368 = vmatprep.mubr.f32.mxu0 0.0
    %369 = vmatmul.mubr.f32.gmra.mxu0 %v254
    %v370 = vpop.f32.mrf.mxu0
    %v371 = vadd.f32 0.0, %v370
    %v372 = vpop.f32.mrf.mxu0
    %373 = vmatprep.mubr.f32.mxu0 0.0
    %374 = vmatmul.mubr.f32.gmra.mxu0 %v256
    %v375 = vpop.f32.mrf.mxu0
    %v376 = vadd.f32 0.0, %v375
    %v377 = vpop.f32.mrf.mxu0
    %378 = vdwg.mxu0
    %v379 = vmul.f32 %v341, 0.35355338
    %v380 = vmul.f32 %v346, 0.35355338
    %v381 = vmul.f32 %v351, 0.35355338
    %v382 = vmul.f32 %v356, 0.35355338
    %v383 = vmul.f32 %v361, 0.35355338
    %v384 = vmul.f32 %v366, 0.35355338
    %v385 = vmul.f32 %v371, 0.35355338
    %v386 = vmul.f32 %v376, 0.35355338
    %v387 = vadd.f32 %v379, %v209
    %v388 = vadd.f32 %v380, %v210
    %v389 = vadd.f32 %v381, %v211
    %v390 = vadd.f32 %v382, %v212
    %v391 = vadd.f32 %v383, %v213
    %v392 = vadd.f32 %v384, %v214
    %v393 = vadd.f32 %v385, %v215
    %v394 = vadd.f32 %v386, %v216
    %vm395 = vcmask 523264
    %v396 = vsel %vm395, %v387, -inf
    %397 = vmax.xlane.f32.xlu0 %v396
    %v398 = vpop.xlane.xlu0 %397
    %v399 = vsel %vm395, %v388, -inf
    %400 = vmax.xlane.f32.xlu0 %v399
    %v401 = vpop.xlane.xlu0 %400
    %v402 = vsel %vm395, %v389, -inf
    %403 = vmax.xlane.f32.xlu0 %v402
    %v404 = vpop.xlane.xlu0 %403
    %v405 = vsel %vm395, %v390, -inf
    %406 = vmax.xlane.f32.xlu0 %v405
    %v407 = vpop.xlane.xlu0 %406
    %v408 = vsel %vm395, %v391, -inf
    %409 = vmax.xlane.f32.xlu0 %v408
    %v410 = vpop.xlane.xlu0 %409
    %v411 = vsel %vm395, %v392, -inf
    %412 = vmax.xlane.f32.xlu0 %v411
    %v413 = vpop.xlane.xlu0 %412
    %v414 = vsel %vm395, %v393, -inf
    %415 = vmax.xlane.f32.xlu0 %v414
    %v416 = vpop.xlane.xlu0 %415
    %v417 = vsel %vm395, %v394, -inf
    %418 = vmax.xlane.f32.xlu0 %v417
    %v419 = vpop.xlane.xlu0 %418
    %v420 = vsub.f32 %v387, %v398
    %v421 = vsub.f32 %v388, %v401
    %v422 = vsub.f32 %v389, %v404
    %v423 = vsub.f32 %v390, %v407
    %v424 = vsub.f32 %v391, %v410
    %v425 = vsub.f32 %v392, %v413
    %v426 = vsub.f32 %v393, %v416
    %v427 = vsub.f32 %v394, %v419
    %v428 = vmul.f32 %v420, 1.442695
    %v429 = vpow.pop %v428
    %v430 = vmul.f32 %v421, 1.442695
    %v431 = vpow.pop %v430
    %v432 = vmul.f32 %v422, 1.442695
    %v433 = vpow.pop %v432
    %v434 = vmul.f32 %v423, 1.442695
    %v435 = vpow.pop %v434
    %v436 = vmul.f32 %v424, 1.442695
    %v437 = vpow.pop %v436
    %v438 = vmul.f32 %v425, 1.442695
    %v439 = vpow.pop %v438
    %v440 = vmul.f32 %v426, 1.442695
    %v441 = vpow.pop %v440
    %v442 = vmul.f32 %v427, 1.442695
    %v443 = vpow.pop %v442
    %v444 = vsel %vm395, %v429, 0.0
    %445 = vadd.xlane.f32.xlu0 %v444
    %v446 = vpop.xlane.xlu0 %445
    %v447 = vsel %vm395, %v431, 0.0
    %448 = vadd.xlane.f32.xlu0 %v447
    %v449 = vpop.xlane.xlu0 %448
    %v450 = vsel %vm395, %v433, 0.0
    %451 = vadd.xlane.f32.xlu0 %v450
    %v452 = vpop.xlane.xlu0 %451
    %v453 = vsel %vm395, %v435, 0.0
    %454 = vadd.xlane.f32.xlu0 %v453
    %v455 = vpop.xlane.xlu0 %454
    %v456 = vsel %vm395, %v437, 0.0
    %457 = vadd.xlane.f32.xlu0 %v456
    %v458 = vpop.xlane.xlu0 %457
    %v459 = vsel %vm395, %v439, 0.0
    %460 = vadd.xlane.f32.xlu0 %v459
    %v461 = vpop.xlane.xlu0 %460
    %v462 = vsel %vm395, %v441, 0.0
    %463 = vadd.xlane.f32.xlu0 %v462
    %v464 = vpop.xlane.xlu0 %463
    %v465 = vsel %vm395, %v443, 0.0
    %466 = vadd.xlane.f32.xlu0 %v465
    %v467 = vpop.xlane.xlu0 %466
    %v468 = vrcp.pop %v446
    %v469 = vrcp.pop %v449
    %v470 = vrcp.pop %v452
    %v471 = vrcp.pop %v455
    %v472 = vrcp.pop %v458
    %v473 = vrcp.pop %v461
    %v474 = vrcp.pop %v464
    %v475 = vrcp.pop %v467
    %v476 = vmul.f32 %v429, %v468
    %v477 = vmul.f32 %v431, %v469
    %v478 = vmul.f32 %v433, %v470
    %v479 = vmul.f32 %v435, %v471
    %v480 = vmul.f32 %v437, %v472
    %v481 = vmul.f32 %v439, %v473
    %v482 = vmul.f32 %v441, %v474
    %v483 = vmul.f32 %v443, %v475
    %484 = vrot.lane.b32.xlu0 %v171, 64
    %v485 = vpop.permute.xlu0 %484
    %486 = vrot.lane.b32.xlu0 %v176, 64
    %v487 = vpop.permute.xlu0 %486
    %488 = vrot.lane.b32.xlu0 %v181, 64
    %v489 = vpop.permute.xlu0 %488
    %490 = vrot.lane.b32.xlu0 %v186, 64
    %v491 = vpop.permute.xlu0 %490
    %492 = vrot.lane.b32.xlu0 %v191, 64
    %v493 = vpop.permute.xlu0 %492
    %494 = vrot.lane.b32.xlu0 %v196, 64
    %v495 = vpop.permute.xlu0 %494
    %496 = vrot.lane.b32.xlu0 %v201, 64
    %v497 = vpop.permute.xlu0 %496
    %498 = vrot.lane.b32.xlu0 %v206, 64
    %v499 = vpop.permute.xlu0 %498
    %v509 = vsel %vm395, %v476, 0
    %v512 = vsel %vm395, %v477, 0
    %v515 = vsel %vm395, %v478, 0
    %v518 = vsel %vm395, %v479, 0
    %v521 = vsel %vm395, %v480, 0
    %v524 = vsel %vm395, %v481, 0
    %v527 = vsel %vm395, %v482, 0
    %v530 = vsel %vm395, %v483, 0
    %532 = vmatprep.subr.mxu0 0.0
    %533 = vmatpush1.msra.mxu0 0.0
    %534 = vmatprep.subr.mxu0 0.0
    %535 = vmatpush1.msra.mxu0 0.0
    %536 = vmatprep.subr.mxu0 0.0
    %537 = vmatpush1.msra.mxu0 0.0
    %538 = vmatprep.subr.mxu0 0.0
    %539 = vmatpush1.msra.mxu0 0.0
    %540 = vmatprep.subr.mxu0 0.0
    %541 = vmatpush1.msra.mxu0 0.0
    %542 = vmatprep.subr.mxu0 0.0
    %543 = vmatpush1.msra.mxu0 0.0
    %544 = vmatprep.subr.mxu0 0.0
    %545 = vmatpush1.msra.mxu0 0.0
    %546 = vmatprep.subr.mxu0 0.0
    %547 = vmatpush1.msra.mxu0 0.0
    %548 = vmatprep.subr.mxu0 0.0
    %549 = vmatpush1.msra.mxu0 %v499
    %550 = vmatprep.subr.mxu0 0.0
    %551 = vmatpush1.msra.mxu0 %v497
    %552 = vmatprep.subr.mxu0 0.0
    %553 = vmatpush1.msra.mxu0 %v495
    %554 = vmatprep.subr.mxu0 0.0
    %555 = vmatpush1.msra.mxu0 %v493
    %556 = vmatprep.subr.mxu0 0.0
    %557 = vmatpush1.msra.mxu0 %v491
    %558 = vmatprep.subr.mxu0 0.0
    %559 = vmatpush1.msra.mxu0 %v489
    %560 = vmatprep.subr.mxu0 0.0
    %561 = vmatpush1.msra.mxu0 %v487
    %562 = vmatprep.subr.mxu0 0.0
    %563 = vmatpush1.msra.mxu0 %v485
    %564 = vmatprep.subr.mxu0 0.0
    %565 = vmatpush2.msra.mxu0 0.0
    %566 = vmatprep.subr.mxu0 0.0
    %567 = vmatpush2.msra.mxu0 0.0
    %568 = vmatprep.subr.mxu0 0.0
    %569 = vmatpush2.msra.mxu0 0.0
    %570 = vmatprep.subr.mxu0 0.0
    %571 = vmatpush2.msra.mxu0 0.0
    %572 = vmatprep.subr.mxu0 0.0
    %573 = vmatpush2.msra.mxu0 0.0
    %574 = vmatprep.subr.mxu0 0.0
    %575 = vmatpush2.msra.mxu0 0.0
    %576 = vmatprep.subr.mxu0 0.0
    %577 = vmatpush2.msra.mxu0 0.0
    %578 = vmatprep.subr.mxu0 0.0
    %579 = vmatpush2.msra.mxu0 0.0
    %580 = vmatprep.subr.mxu0 0.0
    %581 = vmatpush2.msra.mxu0 0.0
    %582 = vmatprep.subr.mxu0 0.0
    %583 = vmatpush2.msra.mxu0 0.0
    %584 = vmatprep.subr.mxu0 0.0
    %585 = vmatpush2.msra.mxu0 0.0
    %586 = vmatprep.subr.mxu0 0.0
    %587 = vmatpush2.msra.mxu0 0.0
    %588 = vmatprep.subr.mxu0 0.0
    %589 = vmatpush2.msra.mxu0 0.0
    %590 = vmatprep.subr.mxu0 0.0
    %591 = vmatpush2.msra.mxu0 0.0
    %592 = vmatprep.subr.mxu0 0.0
    %593 = vmatpush2.msra.mxu0 0.0
    %594 = vmatprep.subr.mxu0 0.0
    %595 = vmatpush2.msra.mxu0 0.0
    %596 = vmatprep.mubr.f32.mxu0 0.0
    %597 = vmatmul.mubr.f32.gmra.mxu0 %v509
    %v598 = vpop.f32.mrf.mxu0
    %v599 = vadd.f32 0.0, %v598
    %v600 = vpop.f32.mrf.mxu0
    %601 = vmatprep.mubr.f32.mxu0 0.0
    %602 = vmatmul.mubr.f32.gmra.mxu0 %v512
    %v603 = vpop.f32.mrf.mxu0
    %v604 = vadd.f32 0.0, %v603
    %v605 = vpop.f32.mrf.mxu0
    %606 = vmatprep.mubr.f32.mxu0 0.0
    %607 = vmatmul.mubr.f32.gmra.mxu0 %v515
    %v608 = vpop.f32.mrf.mxu0
    %v609 = vadd.f32 0.0, %v608
    %v610 = vpop.f32.mrf.mxu0
    %611 = vmatprep.mubr.f32.mxu0 0.0
    %612 = vmatmul.mubr.f32.gmra.mxu0 %v518
    %v613 = vpop.f32.mrf.mxu0
    %v614 = vadd.f32 0.0, %v613
    %v615 = vpop.f32.mrf.mxu0
    %616 = vmatprep.mubr.f32.mxu0 0.0
    %617 = vmatmul.mubr.f32.gmra.mxu0 %v521
    %v618 = vpop.f32.mrf.mxu0
    %v619 = vadd.f32 0.0, %v618
    %v620 = vpop.f32.mrf.mxu0
    %621 = vmatprep.mubr.f32.mxu0 0.0
    %622 = vmatmul.mubr.f32.gmra.mxu0 %v524
    %v623 = vpop.f32.mrf.mxu0
    %v624 = vadd.f32 0.0, %v623
    %v625 = vpop.f32.mrf.mxu0
    %626 = vmatprep.mubr.f32.mxu0 0.0
    %627 = vmatmul.mubr.f32.gmra.mxu0 %v527
    %v628 = vpop.f32.mrf.mxu0
    %v629 = vadd.f32 0.0, %v628
    %v630 = vpop.f32.mrf.mxu0
    %631 = vmatprep.mubr.f32.mxu0 0.0
    %632 = vmatmul.mubr.f32.gmra.mxu0 %v530
    %v633 = vpop.f32.mrf.mxu0
    %v634 = vadd.f32 0.0, %v633
    %v635 = vpop.f32.mrf.mxu0
    %636 = vdwg.mxu0
    %v637 = vld [vmem:[%s7] sm:$0xff]
    %638 = vrot.lane.b32.xlu0 %v171, 120
    %v639 = vpop.permute.xlu0 %638
    %640 = vrot.lane.b32.xlu0 %v176, 120
    %v641 = vpop.permute.xlu0 %640
    %642 = vrot.lane.b32.xlu0 %v181, 120
    %v643 = vpop.permute.xlu0 %642
    %644 = vrot.lane.b32.xlu0 %v186, 120
    %v645 = vpop.permute.xlu0 %644
    %646 = vrot.lane.b32.xlu0 %v191, 120
    %v647 = vpop.permute.xlu0 %646
    %648 = vrot.lane.b32.xlu0 %v196, 120
    %v649 = vpop.permute.xlu0 %648
    %650 = vrot.lane.b32.xlu0 %v201, 120
    %v651 = vpop.permute.xlu0 %650
    %652 = vrot.lane.b32.xlu0 %v206, 120
    %v653 = vpop.permute.xlu0 %652
    %654 = vrot.lane.b32.xlu0 %v171, 88
    %v655 = vpop.permute.xlu0 %654
    %656 = vrot.lane.b32.xlu0 %v176, 88
    %v657 = vpop.permute.xlu0 %656
    %658 = vrot.lane.b32.xlu0 %v181, 88
    %v659 = vpop.permute.xlu0 %658
    %660 = vrot.lane.b32.xlu0 %v186, 88
    %v661 = vpop.permute.xlu0 %660
    %662 = vrot.lane.b32.xlu0 %v191, 88
    %v663 = vpop.permute.xlu0 %662
    %664 = vrot.lane.b32.xlu0 %v196, 88
    %v665 = vpop.permute.xlu0 %664
    %666 = vrot.lane.b32.xlu0 %v201, 88
    %v667 = vpop.permute.xlu0 %666
    %668 = vrot.lane.b32.xlu0 %v206, 88
    %v669 = vpop.permute.xlu0 %668
    %v670 = vsel %vm241, %v639, 0
    %v672 = vsel %vm241, %v641, 0
    %v674 = vsel %vm241, %v643, 0
    %v676 = vsel %vm241, %v645, 0
    %v678 = vsel %vm241, %v647, 0
    %v680 = vsel %vm241, %v649, 0
    %v682 = vsel %vm241, %v651, 0
    %v684 = vsel %vm241, %v653, 0
    %v686 = vsel %vm241, %v655, 0
    %v688 = vsel %vm241, %v657, 0
    %v690 = vsel %vm241, %v659, 0
    %v692 = vsel %vm241, %v661, 0
    %v694 = vsel %vm241, %v663, 0
    %v696 = vsel %vm241, %v665, 0
    %v698 = vsel %vm241, %v667, 0
    %v700 = vsel %vm241, %v669, 0
    %702 = vmatprep.subr.mxu0 0.0
    %703 = vmatpush1.xpose.msra.mxu0 0.0
    %704 = vmatprep.subr.mxu0 0.0
    %705 = vmatpush1.xpose.msra.mxu0 0.0
    %706 = vmatprep.subr.mxu0 0.0
    %707 = vmatpush1.xpose.msra.mxu0 0.0
    %708 = vmatprep.subr.mxu0 0.0
    %709 = vmatpush1.xpose.msra.mxu0 0.0
    %710 = vmatprep.subr.mxu0 0.0
    %711 = vmatpush1.xpose.msra.mxu0 0.0
    %712 = vmatprep.subr.mxu0 0.0
    %713 = vmatpush1.xpose.msra.mxu0 0.0
    %714 = vmatprep.subr.mxu0 0.0
    %715 = vmatpush1.xpose.msra.mxu0 0.0
    %716 = vmatprep.subr.mxu0 0.0
    %717 = vmatpush1.xpose.msra.mxu0 0.0
    %718 = vmatprep.subr.mxu0 0.0
    %719 = vmatpush1.xpose.msra.mxu0 %v700
    %720 = vmatprep.subr.mxu0 0.0
    %721 = vmatpush1.xpose.msra.mxu0 %v698
    %722 = vmatprep.subr.mxu0 0.0
    %723 = vmatpush1.xpose.msra.mxu0 %v696
    %724 = vmatprep.subr.mxu0 0.0
    %725 = vmatpush1.xpose.msra.mxu0 %v694
    %726 = vmatprep.subr.mxu0 0.0
    %727 = vmatpush1.xpose.msra.mxu0 %v692
    %728 = vmatprep.subr.mxu0 0.0
    %729 = vmatpush1.xpose.msra.mxu0 %v690
    %730 = vmatprep.subr.mxu0 0.0
    %731 = vmatpush1.xpose.msra.mxu0 %v688
    %732 = vmatprep.subr.mxu0 0.0
    %733 = vmatpush1.xpose.msra.mxu0 %v686
    %734 = vmatprep.subr.mxu0 0.0
    %735 = vmatpush2.xpose.msra.mxu0 0.0
    %736 = vmatprep.subr.mxu0 0.0
    %737 = vmatpush2.xpose.msra.mxu0 0.0
    %738 = vmatprep.subr.mxu0 0.0
    %739 = vmatpush2.xpose.msra.mxu0 0.0
    %740 = vmatprep.subr.mxu0 0.0
    %741 = vmatpush2.xpose.msra.mxu0 0.0
    %742 = vmatprep.subr.mxu0 0.0
    %743 = vmatpush2.xpose.msra.mxu0 0.0
    %744 = vmatprep.subr.mxu0 0.0
    %745 = vmatpush2.xpose.msra.mxu0 0.0
    %746 = vmatprep.subr.mxu0 0.0
    %747 = vmatpush2.xpose.msra.mxu0 0.0
    %748 = vmatprep.subr.mxu0 0.0
    %749 = vmatpush2.xpose.msra.mxu0 0.0
    %750 = vmatprep.subr.mxu0 0.0
    %751 = vmatpush2.xpose.msra.mxu0 0.0
    %752 = vmatprep.subr.mxu0 0.0
    %753 = vmatpush2.xpose.msra.mxu0 0.0
    %754 = vmatprep.subr.mxu0 0.0
    %755 = vmatpush2.xpose.msra.mxu0 0.0
    %756 = vmatprep.subr.mxu0 0.0
    %757 = vmatpush2.xpose.msra.mxu0 0.0
    %758 = vmatprep.subr.mxu0 0.0
    %759 = vmatpush2.xpose.msra.mxu0 0.0
    %760 = vmatprep.subr.mxu0 0.0
    %761 = vmatpush2.xpose.msra.mxu0 0.0
    %762 = vmatprep.subr.mxu0 0.0
    %763 = vmatpush2.xpose.msra.mxu0 0.0
    %764 = vmatprep.subr.mxu0 0.0
    %765 = vmatpush2.xpose.msra.mxu0 0.0
    %766 = vmatprep.mubr.f32.mxu0 0.0
    %767 = vmatmul.mubr.f32.gmra.mxu0 %v670
    %v768 = vpop.f32.mrf.mxu0
    %v769 = vadd.f32 0.0, %v768
    %v770 = vpop.f32.mrf.mxu0
    %771 = vmatprep.mubr.f32.mxu0 0.0
    %772 = vmatmul.mubr.f32.gmra.mxu0 %v672
    %v773 = vpop.f32.mrf.mxu0
    %v774 = vadd.f32 0.0, %v773
    %v775 = vpop.f32.mrf.mxu0
    %776 = vmatprep.mubr.f32.mxu0 0.0
    %777 = vmatmul.mubr.f32.gmra.mxu0 %v674
    %v778 = vpop.f32.mrf.mxu0
    %v779 = vadd.f32 0.0, %v778
    %v780 = vpop.f32.mrf.mxu0
    %781 = vmatprep.mubr.f32.mxu0 0.0
    %782 = vmatmul.mubr.f32.gmra.mxu0 %v676
    %v783 = vpop.f32.mrf.mxu0
    %v784 = vadd.f32 0.0, %v783
    %v785 = vpop.f32.mrf.mxu0
    %786 = vmatprep.mubr.f32.mxu0 0.0
    %787 = vmatmul.mubr.f32.gmra.mxu0 %v678
    %v788 = vpop.f32.mrf.mxu0
    %v789 = vadd.f32 0.0, %v788
    %v790 = vpop.f32.mrf.mxu0
    %791 = vmatprep.mubr.f32.mxu0 0.0
    %792 = vmatmul.mubr.f32.gmra.mxu0 %v680
    %v793 = vpop.f32.mrf.mxu0
    %v794 = vadd.f32 0.0, %v793
    %v795 = vpop.f32.mrf.mxu0
    %796 = vmatprep.mubr.f32.mxu0 0.0
    %797 = vmatmul.mubr.f32.gmra.mxu0 %v682
    %v798 = vpop.f32.mrf.mxu0
    %v799 = vadd.f32 0.0, %v798
    %v800 = vpop.f32.mrf.mxu0
    %801 = vmatprep.mubr.f32.mxu0 0.0
    %802 = vmatmul.mubr.f32.gmra.mxu0 %v684
    %v803 = vpop.f32.mrf.mxu0
    %v804 = vadd.f32 0.0, %v803
    %v805 = vpop.f32.mrf.mxu0
    %806 = vdwg.mxu0
    %v807 = vmul.f32 %v769, 0.35355338
    %v808 = vmul.f32 %v774, 0.35355338
    %v809 = vmul.f32 %v779, 0.35355338
    %v810 = vmul.f32 %v784, 0.35355338
    %v811 = vmul.f32 %v789, 0.35355338
    %v812 = vmul.f32 %v794, 0.35355338
    %v813 = vmul.f32 %v799, 0.35355338
    %v814 = vmul.f32 %v804, 0.35355338
    %v815 = vadd.f32 %v807, %v209
    %v816 = vadd.f32 %v808, %v210
    %v817 = vadd.f32 %v809, %v211
    %v818 = vadd.f32 %v810, %v212
    %v819 = vadd.f32 %v811, %v213
    %v820 = vadd.f32 %v812, %v214
    %v821 = vadd.f32 %v813, %v215
    %v822 = vadd.f32 %v814, %v216
    %v823 = vsel %vm395, %v815, -inf
    %824 = vmax.xlane.f32.xlu0 %v823
    %v825 = vpop.xlane.xlu0 %824
    %v826 = vsel %vm395, %v816, -inf
    %827 = vmax.xlane.f32.xlu0 %v826
    %v828 = vpop.xlane.xlu0 %827
    %v829 = vsel %vm395, %v817, -inf
    %830 = vmax.xlane.f32.xlu0 %v829
    %v831 = vpop.xlane.xlu0 %830
    %v832 = vsel %vm395, %v818, -inf
    %833 = vmax.xlane.f32.xlu0 %v832
    %v834 = vpop.xlane.xlu0 %833
    %v835 = vsel %vm395, %v819, -inf
    %836 = vmax.xlane.f32.xlu0 %v835
    %v837 = vpop.xlane.xlu0 %836
    %v838 = vsel %vm395, %v820, -inf
    %839 = vmax.xlane.f32.xlu0 %v838
    %v840 = vpop.xlane.xlu0 %839
    %v841 = vsel %vm395, %v821, -inf
    %842 = vmax.xlane.f32.xlu0 %v841
    %v843 = vpop.xlane.xlu0 %842
    %v844 = vsel %vm395, %v822, -inf
    %845 = vmax.xlane.f32.xlu0 %v844
    %v846 = vpop.xlane.xlu0 %845
    %v847 = vsub.f32 %v815, %v825
    %v848 = vsub.f32 %v816, %v828
    %v849 = vsub.f32 %v817, %v831
    %v850 = vsub.f32 %v818, %v834
    %v851 = vsub.f32 %v819, %v837
    %v852 = vsub.f32 %v820, %v840
    %v853 = vsub.f32 %v821, %v843
    %v854 = vsub.f32 %v822, %v846
    %v855 = vmul.f32 %v847, 1.442695
    %v856 = vpow.pop %v855
    %v857 = vmul.f32 %v848, 1.442695
    %v858 = vpow.pop %v857
    %v859 = vmul.f32 %v849, 1.442695
    %v860 = vpow.pop %v859
    %v861 = vmul.f32 %v850, 1.442695
    %v862 = vpow.pop %v861
    %v863 = vmul.f32 %v851, 1.442695
    %v864 = vpow.pop %v863
    %v865 = vmul.f32 %v852, 1.442695
    %v866 = vpow.pop %v865
    %v867 = vmul.f32 %v853, 1.442695
    %v868 = vpow.pop %v867
    %v869 = vmul.f32 %v854, 1.442695
    %v870 = vpow.pop %v869
    %v871 = vsel %vm395, %v856, 0.0
    %872 = vadd.xlane.f32.xlu0 %v871
    %v873 = vpop.xlane.xlu0 %872
    %v874 = vsel %vm395, %v858, 0.0
    %875 = vadd.xlane.f32.xlu0 %v874
    %v876 = vpop.xlane.xlu0 %875
    %v877 = vsel %vm395, %v860, 0.0
    %878 = vadd.xlane.f32.xlu0 %v877
    %v879 = vpop.xlane.xlu0 %878
    %v880 = vsel %vm395, %v862, 0.0
    %881 = vadd.xlane.f32.xlu0 %v880
    %v882 = vpop.xlane.xlu0 %881
    %v883 = vsel %vm395, %v864, 0.0
    %884 = vadd.xlane.f32.xlu0 %v883
    %v885 = vpop.xlane.xlu0 %884
    %v886 = vsel %vm395, %v866, 0.0
    %887 = vadd.xlane.f32.xlu0 %v886
    %v888 = vpop.xlane.xlu0 %887
    %v889 = vsel %vm395, %v868, 0.0
    %890 = vadd.xlane.f32.xlu0 %v889
    %v891 = vpop.xlane.xlu0 %890
    %v892 = vsel %vm395, %v870, 0.0
    %893 = vadd.xlane.f32.xlu0 %v892
    %v894 = vpop.xlane.xlu0 %893
    %v895 = vrcp.pop %v873
    %v896 = vrcp.pop %v876
    %v897 = vrcp.pop %v879
    %v898 = vrcp.pop %v882
    %v899 = vrcp.pop %v885
    %v900 = vrcp.pop %v888
    %v901 = vrcp.pop %v891
    %v902 = vrcp.pop %v894
    %v903 = vmul.f32 %v856, %v895
    %v904 = vmul.f32 %v858, %v896
    %v905 = vmul.f32 %v860, %v897
    %v906 = vmul.f32 %v862, %v898
    %v907 = vmul.f32 %v864, %v899
    %v908 = vmul.f32 %v866, %v900
    %v909 = vmul.f32 %v868, %v901
    %v910 = vmul.f32 %v870, %v902
    %911 = vrot.lane.b32.xlu0 %v171, 56
    %v912 = vpop.permute.xlu0 %911
    %913 = vrot.lane.b32.xlu0 %v176, 56
    %v914 = vpop.permute.xlu0 %913
    %915 = vrot.lane.b32.xlu0 %v181, 56
    %v916 = vpop.permute.xlu0 %915
    %917 = vrot.lane.b32.xlu0 %v186, 56
    %v918 = vpop.permute.xlu0 %917
    %919 = vrot.lane.b32.xlu0 %v191, 56
    %v920 = vpop.permute.xlu0 %919
    %921 = vrot.lane.b32.xlu0 %v196, 56
    %v922 = vpop.permute.xlu0 %921
    %923 = vrot.lane.b32.xlu0 %v201, 56
    %v924 = vpop.permute.xlu0 %923
    %925 = vrot.lane.b32.xlu0 %v206, 56
    %v926 = vpop.permute.xlu0 %925
    %v936 = vsel %vm395, %v903, 0
    %v939 = vsel %vm395, %v904, 0
    %v942 = vsel %vm395, %v905, 0
    %v945 = vsel %vm395, %v906, 0
    %v948 = vsel %vm395, %v907, 0
    %v951 = vsel %vm395, %v908, 0
    %v954 = vsel %vm395, %v909, 0
    %v957 = vsel %vm395, %v910, 0
    %959 = vmatprep.subr.mxu0 0.0
    %960 = vmatpush1.msra.mxu0 0.0
    %961 = vmatprep.subr.mxu0 0.0
    %962 = vmatpush1.msra.mxu0 0.0
    %963 = vmatprep.subr.mxu0 0.0
    %964 = vmatpush1.msra.mxu0 0.0
    %965 = vmatprep.subr.mxu0 0.0
    %966 = vmatpush1.msra.mxu0 0.0
    %967 = vmatprep.subr.mxu0 0.0
    %968 = vmatpush1.msra.mxu0 0.0
    %969 = vmatprep.subr.mxu0 0.0
    %970 = vmatpush1.msra.mxu0 0.0
    %971 = vmatprep.subr.mxu0 0.0
    %972 = vmatpush1.msra.mxu0 0.0
    %973 = vmatprep.subr.mxu0 0.0
    %974 = vmatpush1.msra.mxu0 0.0
    %975 = vmatprep.subr.mxu0 0.0
    %976 = vmatpush1.msra.mxu0 %v926
    %977 = vmatprep.subr.mxu0 0.0
    %978 = vmatpush1.msra.mxu0 %v924
    %979 = vmatprep.subr.mxu0 0.0
    %980 = vmatpush1.msra.mxu0 %v922
    %981 = vmatprep.subr.mxu0 0.0
    %982 = vmatpush1.msra.mxu0 %v920
    %983 = vmatprep.subr.mxu0 0.0
    %984 = vmatpush1.msra.mxu0 %v918
    %985 = vmatprep.subr.mxu0 0.0
    %986 = vmatpush1.msra.mxu0 %v916
    %987 = vmatprep.subr.mxu0 0.0
    %988 = vmatpush1.msra.mxu0 %v914
    %989 = vmatprep.subr.mxu0 0.0
    %990 = vmatpush1.msra.mxu0 %v912
    %991 = vmatprep.subr.mxu0 0.0
    %992 = vmatpush2.msra.mxu0 0.0
    %993 = vmatprep.subr.mxu0 0.0
    %994 = vmatpush2.msra.mxu0 0.0
    %995 = vmatprep.subr.mxu0 0.0
    %996 = vmatpush2.msra.mxu0 0.0
    %997 = vmatprep.subr.mxu0 0.0
    %998 = vmatpush2.msra.mxu0 0.0
    %999 = vmatprep.subr.mxu0 0.0
    %1000 = vmatpush2.msra.mxu0 0.0
    %1001 = vmatprep.subr.mxu0 0.0
    %1002 = vmatpush2.msra.mxu0 0.0
    %1003 = vmatprep.subr.mxu0 0.0
    %1004 = vmatpush2.msra.mxu0 0.0
    %1005 = vmatprep.subr.mxu0 0.0
    %1006 = vmatpush2.msra.mxu0 0.0
    %1007 = vmatprep.subr.mxu0 0.0
    %1008 = vmatpush2.msra.mxu0 0.0
    %1009 = vmatprep.subr.mxu0 0.0
    %1010 = vmatpush2.msra.mxu0 0.0
    %1011 = vmatprep.subr.mxu0 0.0
    %1012 = vmatpush2.msra.mxu0 0.0
    %1013 = vmatprep.subr.mxu0 0.0
    %1014 = vmatpush2.msra.mxu0 0.0
    %1015 = vmatprep.subr.mxu0 0.0
    %1016 = vmatpush2.msra.mxu0 0.0
    %1017 = vmatprep.subr.mxu0 0.0
    %1018 = vmatpush2.msra.mxu0 0.0
    %1019 = vmatprep.subr.mxu0 0.0
    %1020 = vmatpush2.msra.mxu0 0.0
    %1021 = vmatprep.subr.mxu0 0.0
    %1022 = vmatpush2.msra.mxu0 0.0
    %1023 = vmatprep.mubr.f32.mxu0 0.0
    %1024 = vmatmul.mubr.f32.gmra.mxu0 %v936
    %v1025 = vpop.f32.mrf.mxu0
    %v1026 = vadd.f32 0.0, %v1025
    %v1027 = vpop.f32.mrf.mxu0
    %1028 = vmatprep.mubr.f32.mxu0 0.0
    %1029 = vmatmul.mubr.f32.gmra.mxu0 %v939
    %v1030 = vpop.f32.mrf.mxu0
    %v1031 = vadd.f32 0.0, %v1030
    %v1032 = vpop.f32.mrf.mxu0
    %1033 = vmatprep.mubr.f32.mxu0 0.0
    %1034 = vmatmul.mubr.f32.gmra.mxu0 %v942
    %v1035 = vpop.f32.mrf.mxu0
    %v1036 = vadd.f32 0.0, %v1035
    %v1037 = vpop.f32.mrf.mxu0
    %1038 = vmatprep.mubr.f32.mxu0 0.0
    %1039 = vmatmul.mubr.f32.gmra.mxu0 %v945
    %v1040 = vpop.f32.mrf.mxu0
    %v1041 = vadd.f32 0.0, %v1040
    %v1042 = vpop.f32.mrf.mxu0
    %1043 = vmatprep.mubr.f32.mxu0 0.0
    %1044 = vmatmul.mubr.f32.gmra.mxu0 %v948
    %v1045 = vpop.f32.mrf.mxu0
    %v1046 = vadd.f32 0.0, %v1045
    %v1047 = vpop.f32.mrf.mxu0
    %1048 = vmatprep.mubr.f32.mxu0 0.0
    %1049 = vmatmul.mubr.f32.gmra.mxu0 %v951
    %v1050 = vpop.f32.mrf.mxu0
    %v1051 = vadd.f32 0.0, %v1050
    %v1052 = vpop.f32.mrf.mxu0
    %1053 = vmatprep.mubr.f32.mxu0 0.0
    %1054 = vmatmul.mubr.f32.gmra.mxu0 %v954
    %v1055 = vpop.f32.mrf.mxu0
    %v1056 = vadd.f32 0.0, %v1055
    %v1057 = vpop.f32.mrf.mxu0
    %1058 = vmatprep.mubr.f32.mxu0 0.0
    %1059 = vmatmul.mubr.f32.gmra.mxu0 %v957
    %v1060 = vpop.f32.mrf.mxu0
    %v1061 = vadd.f32 0.0, %v1060
    %v1062 = vpop.f32.mrf.mxu0
    %1063 = vdwg.mxu0
    %v1064 = vld [vmem:[%s7 + $0x8] sm:$0xff]
    %v1066 = vsel %vm241, %v1026, 0
    %v1069 = vsel %vm241, %v1031, 0
    %v1072 = vsel %vm241, %v1036, 0
    %v1075 = vsel %vm241, %v1041, 0
    %v1078 = vsel %vm241, %v1046, 0
    %v1081 = vsel %vm241, %v1051, 0
    %v1084 = vsel %vm241, %v1056, 0
    %v1087 = vsel %vm241, %v1061, 0
    %1089 = vmatprep.subr.mxu0 0.0
    %1090 = vmatpush1.msra.mxu0 0.0
    %1091 = vmatprep.subr.mxu0 0.0
    %1092 = vmatpush1.msra.mxu0 0.0
    %1093 = vmatprep.subr.mxu0 0.0
    %1094 = vmatpush1.msra.mxu0 0.0
    %1095 = vmatprep.subr.mxu0 0.0
    %1096 = vmatpush1.msra.mxu0 0.0
    %1097 = vmatprep.subr.mxu0 0.0
    %1098 = vmatpush1.msra.mxu0 0.0
    %1099 = vmatprep.subr.mxu0 0.0
    %1100 = vmatpush1.msra.mxu0 0.0
    %1101 = vmatprep.subr.mxu0 0.0
    %1102 = vmatpush1.msra.mxu0 0.0
    %1103 = vmatprep.subr.mxu0 0.0
    %1104 = vmatpush1.msra.mxu0 0.0
    %1105 = vmatprep.subr.mxu0 0.0
    %1106 = vmatpush1.msra.mxu0 0.0
    %1107 = vmatprep.subr.mxu0 0.0
    %1108 = vmatpush1.msra.mxu0 0.0
    %1109 = vmatprep.subr.mxu0 0.0
    %1110 = vmatpush1.msra.mxu0 0.0
    %1111 = vmatprep.subr.mxu0 0.0
    %1112 = vmatpush1.msra.mxu0 0.0
    %1113 = vmatprep.subr.mxu0 0.0
    %1114 = vmatpush1.msra.mxu0 0.0
    %1115 = vmatprep.subr.mxu0 0.0
    %1116 = vmatpush1.msra.mxu0 0.0
    %1117 = vmatprep.subr.mxu0 0.0
    %1118 = vmatpush1.msra.mxu0 0.0
    %1119 = vmatprep.subr.mxu0 0.0
    %1120 = vmatpush1.msra.mxu0 %v1064
    %1121 = vmatprep.subr.mxu0 0.0
    %1122 = vmatpush2.msra.mxu0 0.0
    %1123 = vmatprep.subr.mxu0 0.0
    %1124 = vmatpush2.msra.mxu0 0.0
    %1125 = vmatprep.subr.mxu0 0.0
    %1126 = vmatpush2.msra.mxu0 0.0
    %1127 = vmatprep.subr.mxu0 0.0
    %1128 = vmatpush2.msra.mxu0 0.0
    %1129 = vmatprep.subr.mxu0 0.0
    %1130 = vmatpush2.msra.mxu0 0.0
    %1131 = vmatprep.subr.mxu0 0.0
    %1132 = vmatpush2.msra.mxu0 0.0
    %1133 = vmatprep.subr.mxu0 0.0
    %1134 = vmatpush2.msra.mxu0 0.0
    %1135 = vmatprep.subr.mxu0 0.0
    %1136 = vmatpush2.msra.mxu0 0.0
    %1137 = vmatprep.subr.mxu0 0.0
    %1138 = vmatpush2.msra.mxu0 0.0
    %1139 = vmatprep.subr.mxu0 0.0
    %1140 = vmatpush2.msra.mxu0 0.0
    %1141 = vmatprep.subr.mxu0 0.0
    %1142 = vmatpush2.msra.mxu0 0.0
    %1143 = vmatprep.subr.mxu0 0.0
    %1144 = vmatpush2.msra.mxu0 0.0
    %1145 = vmatprep.subr.mxu0 0.0
    %1146 = vmatpush2.msra.mxu0 0.0
    %1147 = vmatprep.subr.mxu0 0.0
    %1148 = vmatpush2.msra.mxu0 0.0
    %1149 = vmatprep.subr.mxu0 0.0
    %1150 = vmatpush2.msra.mxu0 0.0
    %1151 = vmatprep.subr.mxu0 0.0
    %1152 = vmatpush2.msra.mxu0 0.0
    %1153 = vmatprep.mubr.f32.mxu0 0.0
    %1154 = vmatmul.mubr.f32.gmra.mxu0 %v1066
    %v1155 = vpop.f32.mrf.mxu0
    %v1156 = vadd.f32 0.0, %v1155
    %v1157 = vpop.f32.mrf.mxu0
    %1158 = vmatprep.mubr.f32.mxu0 0.0
    %1159 = vmatmul.mubr.f32.gmra.mxu0 %v1069
    %v1160 = vpop.f32.mrf.mxu0
    %v1161 = vadd.f32 0.0, %v1160
    %v1162 = vpop.f32.mrf.mxu0
    %1163 = vmatprep.mubr.f32.mxu0 0.0
    %1164 = vmatmul.mubr.f32.gmra.mxu0 %v1072
    %v1165 = vpop.f32.mrf.mxu0
    %v1166 = vadd.f32 0.0, %v1165
    %v1167 = vpop.f32.mrf.mxu0
    %1168 = vmatprep.mubr.f32.mxu0 0.0
    %1169 = vmatmul.mubr.f32.gmra.mxu0 %v1075
    %v1170 = vpop.f32.mrf.mxu0
    %v1171 = vadd.f32 0.0, %v1170
    %v1172 = vpop.f32.mrf.mxu0
    %1173 = vmatprep.mubr.f32.mxu0 0.0
    %1174 = vmatmul.mubr.f32.gmra.mxu0 %v1078
    %v1175 = vpop.f32.mrf.mxu0
    %v1176 = vadd.f32 0.0, %v1175
    %v1177 = vpop.f32.mrf.mxu0
    %1178 = vmatprep.mubr.f32.mxu0 0.0
    %1179 = vmatmul.mubr.f32.gmra.mxu0 %v1081
    %v1180 = vpop.f32.mrf.mxu0
    %v1181 = vadd.f32 0.0, %v1180
    %v1182 = vpop.f32.mrf.mxu0
    %1183 = vmatprep.mubr.f32.mxu0 0.0
    %1184 = vmatmul.mubr.f32.gmra.mxu0 %v1084
    %v1185 = vpop.f32.mrf.mxu0
    %v1186 = vadd.f32 0.0, %v1185
    %v1187 = vpop.f32.mrf.mxu0
    %1188 = vmatprep.mubr.f32.mxu0 0.0
    %1189 = vmatmul.mubr.f32.gmra.mxu0 %v1087
    %v1190 = vpop.f32.mrf.mxu0
    %v1191 = vadd.f32 0.0, %v1190
    %v1192 = vpop.f32.mrf.mxu0
    %1193 = vdwg.mxu0
    %v1195 = vsel %vm241, %v599, 0
    %v1198 = vsel %vm241, %v604, 0
    %v1201 = vsel %vm241, %v609, 0
    %v1204 = vsel %vm241, %v614, 0
    %v1207 = vsel %vm241, %v619, 0
    %v1210 = vsel %vm241, %v624, 0
    %v1213 = vsel %vm241, %v629, 0
    %v1216 = vsel %vm241, %v634, 0
    %1218 = vmatprep.subr.mxu0 0.0
    %1219 = vmatpush1.msra.mxu0 0.0
    %1220 = vmatprep.subr.mxu0 0.0
    %1221 = vmatpush1.msra.mxu0 0.0
    %1222 = vmatprep.subr.mxu0 0.0
    %1223 = vmatpush1.msra.mxu0 0.0
    %1224 = vmatprep.subr.mxu0 0.0
    %1225 = vmatpush1.msra.mxu0 0.0
    %1226 = vmatprep.subr.mxu0 0.0
    %1227 = vmatpush1.msra.mxu0 0.0
    %1228 = vmatprep.subr.mxu0 0.0
    %1229 = vmatpush1.msra.mxu0 0.0
    %1230 = vmatprep.subr.mxu0 0.0
    %1231 = vmatpush1.msra.mxu0 0.0
    %1232 = vmatprep.subr.mxu0 0.0
    %1233 = vmatpush1.msra.mxu0 0.0
    %1234 = vmatprep.subr.mxu0 0.0
    %1235 = vmatpush1.msra.mxu0 0.0
    %1236 = vmatprep.subr.mxu0 0.0
    %1237 = vmatpush1.msra.mxu0 0.0
    %1238 = vmatprep.subr.mxu0 0.0
    %1239 = vmatpush1.msra.mxu0 0.0
    %1240 = vmatprep.subr.mxu0 0.0
    %1241 = vmatpush1.msra.mxu0 0.0
    %1242 = vmatprep.subr.mxu0 0.0
    %1243 = vmatpush1.msra.mxu0 0.0
    %1244 = vmatprep.subr.mxu0 0.0
    %1245 = vmatpush1.msra.mxu0 0.0
    %1246 = vmatprep.subr.mxu0 0.0
    %1247 = vmatpush1.msra.mxu0 0.0
    %1248 = vmatprep.subr.mxu0 0.0
    %1249 = vmatpush1.msra.mxu0 %v637
    %1250 = vmatprep.subr.mxu0 0.0
    %1251 = vmatpush2.msra.mxu0 0.0
    %1252 = vmatprep.subr.mxu0 0.0
    %1253 = vmatpush2.msra.mxu0 0.0
    %1254 = vmatprep.subr.mxu0 0.0
    %1255 = vmatpush2.msra.mxu0 0.0
    %1256 = vmatprep.subr.mxu0 0.0
    %1257 = vmatpush2.msra.mxu0 0.0
    %1258 = vmatprep.subr.mxu0 0.0
    %1259 = vmatpush2.msra.mxu0 0.0
    %1260 = vmatprep.subr.mxu0 0.0
    %1261 = vmatpush2.msra.mxu0 0.0
    %1262 = vmatprep.subr.mxu0 0.0
    %1263 = vmatpush2.msra.mxu0 0.0
    %1264 = vmatprep.subr.mxu0 0.0
    %1265 = vmatpush2.msra.mxu0 0.0
    %1266 = vmatprep.subr.mxu0 0.0
    %1267 = vmatpush2.msra.mxu0 0.0
    %1268 = vmatprep.subr.mxu0 0.0
    %1269 = vmatpush2.msra.mxu0 0.0
    %1270 = vmatprep.subr.mxu0 0.0
    %1271 = vmatpush2.msra.mxu0 0.0
    %1272 = vmatprep.subr.mxu0 0.0
    %1273 = vmatpush2.msra.mxu0 0.0
    %1274 = vmatprep.subr.mxu0 0.0
    %1275 = vmatpush2.msra.mxu0 0.0
    %1276 = vmatprep.subr.mxu0 0.0
    %1277 = vmatpush2.msra.mxu0 0.0
    %1278 = vmatprep.subr.mxu0 0.0
    %1279 = vmatpush2.msra.mxu0 0.0
    %1280 = vmatprep.subr.mxu0 0.0
    %1281 = vmatpush2.msra.mxu0 0.0
    %1282 = vmatprep.mubr.f32.mxu0 0.0
    %1283 = vmatmul.mubr.f32.gmra.mxu0 %v1195
    %v1284 = vpop.f32.mrf.mxu0
    %v1285 = vadd.f32 %v1156, %v1284
    %v1286 = vpop.f32.mrf.mxu0
    %1287 = vmatprep.mubr.f32.mxu0 0.0
    %1288 = vmatmul.mubr.f32.gmra.mxu0 %v1198
    %v1289 = vpop.f32.mrf.mxu0
    %v1290 = vadd.f32 %v1161, %v1289
    %v1291 = vpop.f32.mrf.mxu0
    %1292 = vmatprep.mubr.f32.mxu0 0.0
    %1293 = vmatmul.mubr.f32.gmra.mxu0 %v1201
    %v1294 = vpop.f32.mrf.mxu0
    %v1295 = vadd.f32 %v1166, %v1294
    %v1296 = vpop.f32.mrf.mxu0
    %1297 = vmatprep.mubr.f32.mxu0 0.0
    %1298 = vmatmul.mubr.f32.gmra.mxu0 %v1204
    %v1299 = vpop.f32.mrf.mxu0
    %v1300 = vadd.f32 %v1171, %v1299
    %v1301 = vpop.f32.mrf.mxu0
    %1302 = vmatprep.mubr.f32.mxu0 0.0
    %1303 = vmatmul.mubr.f32.gmra.mxu0 %v1207
    %v1304 = vpop.f32.mrf.mxu0
    %v1305 = vadd.f32 %v1176, %v1304
    %v1306 = vpop.f32.mrf.mxu0
    %1307 = vmatprep.mubr.f32.mxu0 0.0
    %1308 = vmatmul.mubr.f32.gmra.mxu0 %v1210
    %v1309 = vpop.f32.mrf.mxu0
    %v1310 = vadd.f32 %v1181, %v1309
    %v1311 = vpop.f32.mrf.mxu0
    %1312 = vmatprep.mubr.f32.mxu0 0.0
    %1313 = vmatmul.mubr.f32.gmra.mxu0 %v1213
    %v1314 = vpop.f32.mrf.mxu0
    %v1315 = vadd.f32 %v1186, %v1314
    %v1316 = vpop.f32.mrf.mxu0
    %1317 = vmatprep.mubr.f32.mxu0 0.0
    %1318 = vmatmul.mubr.f32.gmra.mxu0 %v1216
    %v1319 = vpop.f32.mrf.mxu0
    %v1320 = vadd.f32 %v1191, %v1319
    %v1321 = vpop.f32.mrf.mxu0
    %1322 = vdwg.mxu0
    %1323 = vrot.lane.b32.xlu0 %v171, 112
    %v1324 = vpop.permute.xlu0 %1323
    %1325 = vrot.lane.b32.xlu0 %v176, 112
    %v1326 = vpop.permute.xlu0 %1325
    %1327 = vrot.lane.b32.xlu0 %v181, 112
    %v1328 = vpop.permute.xlu0 %1327
    %1329 = vrot.lane.b32.xlu0 %v186, 112
    %v1330 = vpop.permute.xlu0 %1329
    %1331 = vrot.lane.b32.xlu0 %v191, 112
    %v1332 = vpop.permute.xlu0 %1331
    %1333 = vrot.lane.b32.xlu0 %v196, 112
    %v1334 = vpop.permute.xlu0 %1333
    %1335 = vrot.lane.b32.xlu0 %v201, 112
    %v1336 = vpop.permute.xlu0 %1335
    %1337 = vrot.lane.b32.xlu0 %v206, 112
    %v1338 = vpop.permute.xlu0 %1337
    %1339 = vrot.lane.b32.xlu0 %v171, 80
    %v1340 = vpop.permute.xlu0 %1339
    %1341 = vrot.lane.b32.xlu0 %v176, 80
    %v1342 = vpop.permute.xlu0 %1341
    %1343 = vrot.lane.b32.xlu0 %v181, 80
    %v1344 = vpop.permute.xlu0 %1343
    %1345 = vrot.lane.b32.xlu0 %v186, 80
    %v1346 = vpop.permute.xlu0 %1345
    %1347 = vrot.lane.b32.xlu0 %v191, 80
    %v1348 = vpop.permute.xlu0 %1347
    %1349 = vrot.lane.b32.xlu0 %v196, 80
    %v1350 = vpop.permute.xlu0 %1349
    %1351 = vrot.lane.b32.xlu0 %v201, 80
    %v1352 = vpop.permute.xlu0 %1351
    %1353 = vrot.lane.b32.xlu0 %v206, 80
    %v1354 = vpop.permute.xlu0 %1353
    %v1355 = vsel %vm241, %v1324, 0
    %v1357 = vsel %vm241, %v1326, 0
    %v1359 = vsel %vm241, %v1328, 0
    %v1361 = vsel %vm241, %v1330, 0
    %v1363 = vsel %vm241, %v1332, 0
    %v1365 = vsel %vm241, %v1334, 0
    %v1367 = vsel %vm241, %v1336, 0
    %v1369 = vsel %vm241, %v1338, 0
    %v1371 = vsel %vm241, %v1340, 0
    %v1373 = vsel %vm241, %v1342, 0
    %v1375 = vsel %vm241, %v1344, 0
    %v1377 = vsel %vm241, %v1346, 0
    %v1379 = vsel %vm241, %v1348, 0
    %v1381 = vsel %vm241, %v1350, 0
    %v1383 = vsel %vm241, %v1352, 0
    %v1385 = vsel %vm241, %v1354, 0
    %1387 = vmatprep.subr.mxu0 0.0
    %1388 = vmatpush1.xpose.msra.mxu0 0.0
    %1389 = vmatprep.subr.mxu0 0.0
    %1390 = vmatpush1.xpose.msra.mxu0 0.0
    %1391 = vmatprep.subr.mxu0 0.0
    %1392 = vmatpush1.xpose.msra.mxu0 0.0
    %1393 = vmatprep.subr.mxu0 0.0
    %1394 = vmatpush1.xpose.msra.mxu0 0.0
    %1395 = vmatprep.subr.mxu0 0.0
    %1396 = vmatpush1.xpose.msra.mxu0 0.0
    %1397 = vmatprep.subr.mxu0 0.0
    %1398 = vmatpush1.xpose.msra.mxu0 0.0
    %1399 = vmatprep.subr.mxu0 0.0
    %1400 = vmatpush1.xpose.msra.mxu0 0.0
    %1401 = vmatprep.subr.mxu0 0.0
    %1402 = vmatpush1.xpose.msra.mxu0 0.0
    %1403 = vmatprep.subr.mxu0 0.0
    %1404 = vmatpush1.xpose.msra.mxu0 %v1385
    %1405 = vmatprep.subr.mxu0 0.0
    %1406 = vmatpush1.xpose.msra.mxu0 %v1383
    %1407 = vmatprep.subr.mxu0 0.0
    %1408 = vmatpush1.xpose.msra.mxu0 %v1381
    %1409 = vmatprep.subr.mxu0 0.0
    %1410 = vmatpush1.xpose.msra.mxu0 %v1379
    %1411 = vmatprep.subr.mxu0 0.0
    %1412 = vmatpush1.xpose.msra.mxu0 %v1377
    %1413 = vmatprep.subr.mxu0 0.0
    %1414 = vmatpush1.xpose.msra.mxu0 %v1375
    %1415 = vmatprep.subr.mxu0 0.0
    %1416 = vmatpush1.xpose.msra.mxu0 %v1373
    %1417 = vmatprep.subr.mxu0 0.0
    %1418 = vmatpush1.xpose.msra.mxu0 %v1371
    %1419 = vmatprep.subr.mxu0 0.0
    %1420 = vmatpush2.xpose.msra.mxu0 0.0
    %1421 = vmatprep.subr.mxu0 0.0
    %1422 = vmatpush2.xpose.msra.mxu0 0.0
    %1423 = vmatprep.subr.mxu0 0.0
    %1424 = vmatpush2.xpose.msra.mxu0 0.0
    %1425 = vmatprep.subr.mxu0 0.0
    %1426 = vmatpush2.xpose.msra.mxu0 0.0
    %1427 = vmatprep.subr.mxu0 0.0
    %1428 = vmatpush2.xpose.msra.mxu0 0.0
    %1429 = vmatprep.subr.mxu0 0.0
    %1430 = vmatpush2.xpose.msra.mxu0 0.0
    %1431 = vmatprep.subr.mxu0 0.0
    %1432 = vmatpush2.xpose.msra.mxu0 0.0
    %1433 = vmatprep.subr.mxu0 0.0
    %1434 = vmatpush2.xpose.msra.mxu0 0.0
    %1435 = vmatprep.subr.mxu0 0.0
    %1436 = vmatpush2.xpose.msra.mxu0 0.0
    %1437 = vmatprep.subr.mxu0 0.0
    %1438 = vmatpush2.xpose.msra.mxu0 0.0
    %1439 = vmatprep.subr.mxu0 0.0
    %1440 = vmatpush2.xpose.msra.mxu0 0.0
    %1441 = vmatprep.subr.mxu0 0.0
    %1442 = vmatpush2.xpose.msra.mxu0 0.0
    %1443 = vmatprep.subr.mxu0 0.0
    %1444 = vmatpush2.xpose.msra.mxu0 0.0
    %1445 = vmatprep.subr.mxu0 0.0
    %1446 = vmatpush2.xpose.msra.mxu0 0.0
    %1447 = vmatprep.subr.mxu0 0.0
    %1448 = vmatpush2.xpose.msra.mxu0 0.0
    %1449 = vmatprep.subr.mxu0 0.0
    %1450 = vmatpush2.xpose.msra.mxu0 0.0
    %1451 = vmatprep.mubr.f32.mxu0 0.0
    %1452 = vmatmul.mubr.f32.gmra.mxu0 %v1355
    %v1453 = vpop.f32.mrf.mxu0
    %v1454 = vadd.f32 0.0, %v1453
    %v1455 = vpop.f32.mrf.mxu0
    %1456 = vmatprep.mubr.f32.mxu0 0.0
    %1457 = vmatmul.mubr.f32.gmra.mxu0 %v1357
    %v1458 = vpop.f32.mrf.mxu0
    %v1459 = vadd.f32 0.0, %v1458
    %v1460 = vpop.f32.mrf.mxu0
    %1461 = vmatprep.mubr.f32.mxu0 0.0
    %1462 = vmatmul.mubr.f32.gmra.mxu0 %v1359
    %v1463 = vpop.f32.mrf.mxu0
    %v1464 = vadd.f32 0.0, %v1463
    %v1465 = vpop.f32.mrf.mxu0
    %1466 = vmatprep.mubr.f32.mxu0 0.0
    %1467 = vmatmul.mubr.f32.gmra.mxu0 %v1361
    %v1468 = vpop.f32.mrf.mxu0
    %v1469 = vadd.f32 0.0, %v1468
    %v1470 = vpop.f32.mrf.mxu0
    %1471 = vmatprep.mubr.f32.mxu0 0.0
    %1472 = vmatmul.mubr.f32.gmra.mxu0 %v1363
    %v1473 = vpop.f32.mrf.mxu0
    %v1474 = vadd.f32 0.0, %v1473
    %v1475 = vpop.f32.mrf.mxu0
    %1476 = vmatprep.mubr.f32.mxu0 0.0
    %1477 = vmatmul.mubr.f32.gmra.mxu0 %v1365
    %v1478 = vpop.f32.mrf.mxu0
    %v1479 = vadd.f32 0.0, %v1478
    %v1480 = vpop.f32.mrf.mxu0
    %1481 = vmatprep.mubr.f32.mxu0 0.0
    %1482 = vmatmul.mubr.f32.gmra.mxu0 %v1367
    %v1483 = vpop.f32.mrf.mxu0
    %v1484 = vadd.f32 0.0, %v1483
    %v1485 = vpop.f32.mrf.mxu0
    %1486 = vmatprep.mubr.f32.mxu0 0.0
    %1487 = vmatmul.mubr.f32.gmra.mxu0 %v1369
    %v1488 = vpop.f32.mrf.mxu0
    %v1489 = vadd.f32 0.0, %v1488
    %v1490 = vpop.f32.mrf.mxu0
    %1491 = vdwg.mxu0
    %v1492 = vmul.f32 %v1454, 0.35355338
    %v1493 = vmul.f32 %v1459, 0.35355338
    %v1494 = vmul.f32 %v1464, 0.35355338
    %v1495 = vmul.f32 %v1469, 0.35355338
    %v1496 = vmul.f32 %v1474, 0.35355338
    %v1497 = vmul.f32 %v1479, 0.35355338
    %v1498 = vmul.f32 %v1484, 0.35355338
    %v1499 = vmul.f32 %v1489, 0.35355338
    %v1500 = vadd.f32 %v1492, %v209
    %v1501 = vadd.f32 %v1493, %v210
    %v1502 = vadd.f32 %v1494, %v211
    %v1503 = vadd.f32 %v1495, %v212
    %v1504 = vadd.f32 %v1496, %v213
    %v1505 = vadd.f32 %v1497, %v214
    %v1506 = vadd.f32 %v1498, %v215
    %v1507 = vadd.f32 %v1499, %v216
    %v1508 = vsel %vm395, %v1500, -inf
    %1509 = vmax.xlane.f32.xlu0 %v1508
    %v1510 = vpop.xlane.xlu0 %1509
    %v1511 = vsel %vm395, %v1501, -inf
    %1512 = vmax.xlane.f32.xlu0 %v1511
    %v1513 = vpop.xlane.xlu0 %1512
    %v1514 = vsel %vm395, %v1502, -inf
    %1515 = vmax.xlane.f32.xlu0 %v1514
    %v1516 = vpop.xlane.xlu0 %1515
    %v1517 = vsel %vm395, %v1503, -inf
    %1518 = vmax.xlane.f32.xlu0 %v1517
    %v1519 = vpop.xlane.xlu0 %1518
    %v1520 = vsel %vm395, %v1504, -inf
    %1521 = vmax.xlane.f32.xlu0 %v1520
    %v1522 = vpop.xlane.xlu0 %1521
    %v1523 = vsel %vm395, %v1505, -inf
    %1524 = vmax.xlane.f32.xlu0 %v1523
    %v1525 = vpop.xlane.xlu0 %1524
    %v1526 = vsel %vm395, %v1506, -inf
    %1527 = vmax.xlane.f32.xlu0 %v1526
    %v1528 = vpop.xlane.xlu0 %1527
    %v1529 = vsel %vm395, %v1507, -inf
    %1530 = vmax.xlane.f32.xlu0 %v1529
    %v1531 = vpop.xlane.xlu0 %1530
    %v1532 = vsub.f32 %v1500, %v1510
    %v1533 = vsub.f32 %v1501, %v1513
    %v1534 = vsub.f32 %v1502, %v1516
    %v1535 = vsub.f32 %v1503, %v1519
    %v1536 = vsub.f32 %v1504, %v1522
    %v1537 = vsub.f32 %v1505, %v1525
    %v1538 = vsub.f32 %v1506, %v1528
    %v1539 = vsub.f32 %v1507, %v1531
    %v1540 = vmul.f32 %v1532, 1.442695
    %v1541 = vpow.pop %v1540
    %v1542 = vmul.f32 %v1533, 1.442695
    %v1543 = vpow.pop %v1542
    %v1544 = vmul.f32 %v1534, 1.442695
    %v1545 = vpow.pop %v1544
    %v1546 = vmul.f32 %v1535, 1.442695
    %v1547 = vpow.pop %v1546
    %v1548 = vmul.f32 %v1536, 1.442695
    %v1549 = vpow.pop %v1548
    %v1550 = vmul.f32 %v1537, 1.442695
    %v1551 = vpow.pop %v1550
    %v1552 = vmul.f32 %v1538, 1.442695
    %v1553 = vpow.pop %v1552
    %v1554 = vmul.f32 %v1539, 1.442695
    %v1555 = vpow.pop %v1554
    %v1556 = vsel %vm395, %v1541, 0.0
    %1557 = vadd.xlane.f32.xlu0 %v1556
    %v1558 = vpop.xlane.xlu0 %1557
    %v1559 = vsel %vm395, %v1543, 0.0
    %1560 = vadd.xlane.f32.xlu0 %v1559
    %v1561 = vpop.xlane.xlu0 %1560
    %v1562 = vsel %vm395, %v1545, 0.0
    %1563 = vadd.xlane.f32.xlu0 %v1562
    %v1564 = vpop.xlane.xlu0 %1563
    %v1565 = vsel %vm395, %v1547, 0.0
    %1566 = vadd.xlane.f32.xlu0 %v1565
    %v1567 = vpop.xlane.xlu0 %1566
    %v1568 = vsel %vm395, %v1549, 0.0
    %1569 = vadd.xlane.f32.xlu0 %v1568
    %v1570 = vpop.xlane.xlu0 %1569
    %v1571 = vsel %vm395, %v1551, 0.0
    %1572 = vadd.xlane.f32.xlu0 %v1571
    %v1573 = vpop.xlane.xlu0 %1572
    %v1574 = vsel %vm395, %v1553, 0.0
    %1575 = vadd.xlane.f32.xlu0 %v1574
    %v1576 = vpop.xlane.xlu0 %1575
    %v1577 = vsel %vm395, %v1555, 0.0
    %1578 = vadd.xlane.f32.xlu0 %v1577
    %v1579 = vpop.xlane.xlu0 %1578
    %v1580 = vrcp.pop %v1558
    %v1581 = vrcp.pop %v1561
    %v1582 = vrcp.pop %v1564
    %v1583 = vrcp.pop %v1567
    %v1584 = vrcp.pop %v1570
    %v1585 = vrcp.pop %v1573
    %v1586 = vrcp.pop %v1576
    %v1587 = vrcp.pop %v1579
    %v1588 = vmul.f32 %v1541, %v1580
    %v1589 = vmul.f32 %v1543, %v1581
    %v1590 = vmul.f32 %v1545, %v1582
    %v1591 = vmul.f32 %v1547, %v1583
    %v1592 = vmul.f32 %v1549, %v1584
    %v1593 = vmul.f32 %v1551, %v1585
    %v1594 = vmul.f32 %v1553, %v1586
    %v1595 = vmul.f32 %v1555, %v1587
    %1596 = vrot.lane.b32.xlu0 %v171, 48
    %v1597 = vpop.permute.xlu0 %1596
    %1598 = vrot.lane.b32.xlu0 %v176, 48
    %v1599 = vpop.permute.xlu0 %1598
    %1600 = vrot.lane.b32.xlu0 %v181, 48
    %v1601 = vpop.permute.xlu0 %1600
    %1602 = vrot.lane.b32.xlu0 %v186, 48
    %v1603 = vpop.permute.xlu0 %1602
    %1604 = vrot.lane.b32.xlu0 %v191, 48
    %v1605 = vpop.permute.xlu0 %1604
    %1606 = vrot.lane.b32.xlu0 %v196, 48
    %v1607 = vpop.permute.xlu0 %1606
    %1608 = vrot.lane.b32.xlu0 %v201, 48
    %v1609 = vpop.permute.xlu0 %1608
    %1610 = vrot.lane.b32.xlu0 %v206, 48
    %v1611 = vpop.permute.xlu0 %1610
    %v1621 = vsel %vm395, %v1588, 0
    %v1624 = vsel %vm395, %v1589, 0
    %v1627 = vsel %vm395, %v1590, 0
    %v1630 = vsel %vm395, %v1591, 0
    %v1633 = vsel %vm395, %v1592, 0
    %v1636 = vsel %vm395, %v1593, 0
    %v1639 = vsel %vm395, %v1594, 0
    %v1642 = vsel %vm395, %v1595, 0
    %1644 = vmatprep.subr.mxu0 0.0
    %1645 = vmatpush1.msra.mxu0 0.0
    %1646 = vmatprep.subr.mxu0 0.0
    %1647 = vmatpush1.msra.mxu0 0.0
    %1648 = vmatprep.subr.mxu0 0.0
    %1649 = vmatpush1.msra.mxu0 0.0
    %1650 = vmatprep.subr.mxu0 0.0
    %1651 = vmatpush1.msra.mxu0 0.0
    %1652 = vmatprep.subr.mxu0 0.0
    %1653 = vmatpush1.msra.mxu0 0.0
    %1654 = vmatprep.subr.mxu0 0.0
    %1655 = vmatpush1.msra.mxu0 0.0
    %1656 = vmatprep.subr.mxu0 0.0
    %1657 = vmatpush1.msra.mxu0 0.0
    %1658 = vmatprep.subr.mxu0 0.0
    %1659 = vmatpush1.msra.mxu0 0.0
    %1660 = vmatprep.subr.mxu0 0.0
    %1661 = vmatpush1.msra.mxu0 %v1611
    %1662 = vmatprep.subr.mxu0 0.0
    %1663 = vmatpush1.msra.mxu0 %v1609
    %1664 = vmatprep.subr.mxu0 0.0
    %1665 = vmatpush1.msra.mxu0 %v1607
    %1666 = vmatprep.subr.mxu0 0.0
    %1667 = vmatpush1.msra.mxu0 %v1605
    %1668 = vmatprep.subr.mxu0 0.0
    %1669 = vmatpush1.msra.mxu0 %v1603
    %1670 = vmatprep.subr.mxu0 0.0
    %1671 = vmatpush1.msra.mxu0 %v1601
    %1672 = vmatprep.subr.mxu0 0.0
    %1673 = vmatpush1.msra.mxu0 %v1599
    %1674 = vmatprep.subr.mxu0 0.0
    %1675 = vmatpush1.msra.mxu0 %v1597
    %1676 = vmatprep.subr.mxu0 0.0
    %1677 = vmatpush2.msra.mxu0 0.0
    %1678 = vmatprep.subr.mxu0 0.0
    %1679 = vmatpush2.msra.mxu0 0.0
    %1680 = vmatprep.subr.mxu0 0.0
    %1681 = vmatpush2.msra.mxu0 0.0
    %1682 = vmatprep.subr.mxu0 0.0
    %1683 = vmatpush2.msra.mxu0 0.0
    %1684 = vmatprep.subr.mxu0 0.0
    %1685 = vmatpush2.msra.mxu0 0.0
    %1686 = vmatprep.subr.mxu0 0.0
    %1687 = vmatpush2.msra.mxu0 0.0
    %1688 = vmatprep.subr.mxu0 0.0
    %1689 = vmatpush2.msra.mxu0 0.0
    %1690 = vmatprep.subr.mxu0 0.0
    %1691 = vmatpush2.msra.mxu0 0.0
    %1692 = vmatprep.subr.mxu0 0.0
    %1693 = vmatpush2.msra.mxu0 0.0
    %1694 = vmatprep.subr.mxu0 0.0
    %1695 = vmatpush2.msra.mxu0 0.0
    %1696 = vmatprep.subr.mxu0 0.0
    %1697 = vmatpush2.msra.mxu0 0.0
    %1698 = vmatprep.subr.mxu0 0.0
    %1699 = vmatpush2.msra.mxu0 0.0
    %1700 = vmatprep.subr.mxu0 0.0
    %1701 = vmatpush2.msra.mxu0 0.0
    %1702 = vmatprep.subr.mxu0 0.0
    %1703 = vmatpush2.msra.mxu0 0.0
    %1704 = vmatprep.subr.mxu0 0.0
    %1705 = vmatpush2.msra.mxu0 0.0
    %1706 = vmatprep.subr.mxu0 0.0
    %1707 = vmatpush2.msra.mxu0 0.0
    %1708 = vmatprep.mubr.f32.mxu0 0.0
    %1709 = vmatmul.mubr.f32.gmra.mxu0 %v1621
    %v1710 = vpop.f32.mrf.mxu0
    %v1711 = vadd.f32 0.0, %v1710
    %v1712 = vpop.f32.mrf.mxu0
    %1713 = vmatprep.mubr.f32.mxu0 0.0
    %1714 = vmatmul.mubr.f32.gmra.mxu0 %v1624
    %v1715 = vpop.f32.mrf.mxu0
    %v1716 = vadd.f32 0.0, %v1715
    %v1717 = vpop.f32.mrf.mxu0
    %1718 = vmatprep.mubr.f32.mxu0 0.0
    %1719 = vmatmul.mubr.f32.gmra.mxu0 %v1627
    %v1720 = vpop.f32.mrf.mxu0
    %v1721 = vadd.f32 0.0, %v1720
    %v1722 = vpop.f32.mrf.mxu0
    %1723 = vmatprep.mubr.f32.mxu0 0.0
    %1724 = vmatmul.mubr.f32.gmra.mxu0 %v1630
    %v1725 = vpop.f32.mrf.mxu0
    %v1726 = vadd.f32 0.0, %v1725
    %v1727 = vpop.f32.mrf.mxu0
    %1728 = vmatprep.mubr.f32.mxu0 0.0
    %1729 = vmatmul.mubr.f32.gmra.mxu0 %v1633
    %v1730 = vpop.f32.mrf.mxu0
    %v1731 = vadd.f32 0.0, %v1730
    %v1732 = vpop.f32.mrf.mxu0
    %1733 = vmatprep.mubr.f32.mxu0 0.0
    %1734 = vmatmul.mubr.f32.gmra.mxu0 %v1636
    %v1735 = vpop.f32.mrf.mxu0
    %v1736 = vadd.f32 0.0, %v1735
    %v1737 = vpop.f32.mrf.mxu0
    %1738 = vmatprep.mubr.f32.mxu0 0.0
    %1739 = vmatmul.mubr.f32.gmra.mxu0 %v1639
    %v1740 = vpop.f32.mrf.mxu0
    %v1741 = vadd.f32 0.0, %v1740
    %v1742 = vpop.f32.mrf.mxu0
    %1743 = vmatprep.mubr.f32.mxu0 0.0
    %1744 = vmatmul.mubr.f32.gmra.mxu0 %v1642
    %v1745 = vpop.f32.mrf.mxu0
    %v1746 = vadd.f32 0.0, %v1745
    %v1747 = vpop.f32.mrf.mxu0
    %1748 = vdwg.mxu0
    %v1749 = vld [vmem:[%s7 + $0x10] sm:$0xff]
    %v1751 = vsel %vm241, %v1711, 0
    %v1754 = vsel %vm241, %v1716, 0
    %v1757 = vsel %vm241, %v1721, 0
    %v1760 = vsel %vm241, %v1726, 0
    %v1763 = vsel %vm241, %v1731, 0
    %v1766 = vsel %vm241, %v1736, 0
    %v1769 = vsel %vm241, %v1741, 0
    %v1772 = vsel %vm241, %v1746, 0
    %1774 = vmatprep.subr.mxu0 0.0
    %1775 = vmatpush1.msra.mxu0 0.0
    %1776 = vmatprep.subr.mxu0 0.0
    %1777 = vmatpush1.msra.mxu0 0.0
    %1778 = vmatprep.subr.mxu0 0.0
    %1779 = vmatpush1.msra.mxu0 0.0
    %1780 = vmatprep.subr.mxu0 0.0
    %1781 = vmatpush1.msra.mxu0 0.0
    %1782 = vmatprep.subr.mxu0 0.0
    %1783 = vmatpush1.msra.mxu0 0.0
    %1784 = vmatprep.subr.mxu0 0.0
    %1785 = vmatpush1.msra.mxu0 0.0
    %1786 = vmatprep.subr.mxu0 0.0
    %1787 = vmatpush1.msra.mxu0 0.0
    %1788 = vmatprep.subr.mxu0 0.0
    %1789 = vmatpush1.msra.mxu0 0.0
    %1790 = vmatprep.subr.mxu0 0.0
    %1791 = vmatpush1.msra.mxu0 0.0
    %1792 = vmatprep.subr.mxu0 0.0
    %1793 = vmatpush1.msra.mxu0 0.0
    %1794 = vmatprep.subr.mxu0 0.0
    %1795 = vmatpush1.msra.mxu0 0.0
    %1796 = vmatprep.subr.mxu0 0.0
    %1797 = vmatpush1.msra.mxu0 0.0
    %1798 = vmatprep.subr.mxu0 0.0
    %1799 = vmatpush1.msra.mxu0 0.0
    %1800 = vmatprep.subr.mxu0 0.0
    %1801 = vmatpush1.msra.mxu0 0.0
    %1802 = vmatprep.subr.mxu0 0.0
    %1803 = vmatpush1.msra.mxu0 0.0
    %1804 = vmatprep.subr.mxu0 0.0
    %1805 = vmatpush1.msra.mxu0 %v1749
    %1806 = vmatprep.subr.mxu0 0.0
    %1807 = vmatpush2.msra.mxu0 0.0
    %1808 = vmatprep.subr.mxu0 0.0
    %1809 = vmatpush2.msra.mxu0 0.0
    %1810 = vmatprep.subr.mxu0 0.0
    %1811 = vmatpush2.msra.mxu0 0.0
    %1812 = vmatprep.subr.mxu0 0.0
    %1813 = vmatpush2.msra.mxu0 0.0
    %1814 = vmatprep.subr.mxu0 0.0
    %1815 = vmatpush2.msra.mxu0 0.0
    %1816 = vmatprep.subr.mxu0 0.0
    %1817 = vmatpush2.msra.mxu0 0.0
    %1818 = vmatprep.subr.mxu0 0.0
    %1819 = vmatpush2.msra.mxu0 0.0
    %1820 = vmatprep.subr.mxu0 0.0
    %1821 = vmatpush2.msra.mxu0 0.0
    %1822 = vmatprep.subr.mxu0 0.0
    %1823 = vmatpush2.msra.mxu0 0.0
    %1824 = vmatprep.subr.mxu0 0.0
    %1825 = vmatpush2.msra.mxu0 0.0
    %1826 = vmatprep.subr.mxu0 0.0
    %1827 = vmatpush2.msra.mxu0 0.0
    %1828 = vmatprep.subr.mxu0 0.0
    %1829 = vmatpush2.msra.mxu0 0.0
    %1830 = vmatprep.subr.mxu0 0.0
    %1831 = vmatpush2.msra.mxu0 0.0
    %1832 = vmatprep.subr.mxu0 0.0
    %1833 = vmatpush2.msra.mxu0 0.0
    %1834 = vmatprep.subr.mxu0 0.0
    %1835 = vmatpush2.msra.mxu0 0.0
    %1836 = vmatprep.subr.mxu0 0.0
    %1837 = vmatpush2.msra.mxu0 0.0
    %1838 = vmatprep.mubr.f32.mxu0 0.0
    %1839 = vmatmul.mubr.f32.gmra.mxu0 %v1751
    %v1840 = vpop.f32.mrf.mxu0
    %v1841 = vadd.f32 0.0, %v1840
    %v1842 = vpop.f32.mrf.mxu0
    %1843 = vmatprep.mubr.f32.mxu0 0.0
    %1844 = vmatmul.mubr.f32.gmra.mxu0 %v1754
    %v1845 = vpop.f32.mrf.mxu0
    %v1846 = vadd.f32 0.0, %v1845
    %v1847 = vpop.f32.mrf.mxu0
    %1848 = vmatprep.mubr.f32.mxu0 0.0
    %1849 = vmatmul.mubr.f32.gmra.mxu0 %v1757
    %v1850 = vpop.f32.mrf.mxu0
    %v1851 = vadd.f32 0.0, %v1850
    %v1852 = vpop.f32.mrf.mxu0
    %1853 = vmatprep.mubr.f32.mxu0 0.0
    %1854 = vmatmul.mubr.f32.gmra.mxu0 %v1760
    %v1855 = vpop.f32.mrf.mxu0
    %v1856 = vadd.f32 0.0, %v1855
    %v1857 = vpop.f32.mrf.mxu0
    %1858 = vmatprep.mubr.f32.mxu0 0.0
    %1859 = vmatmul.mubr.f32.gmra.mxu0 %v1763
    %v1860 = vpop.f32.mrf.mxu0
    %v1861 = vadd.f32 0.0, %v1860
    %v1862 = vpop.f32.mrf.mxu0
    %1863 = vmatprep.mubr.f32.mxu0 0.0
    %1864 = vmatmul.mubr.f32.gmra.mxu0 %v1766
    %v1865 = vpop.f32.mrf.mxu0
    %v1866 = vadd.f32 0.0, %v1865
    %v1867 = vpop.f32.mrf.mxu0
    %1868 = vmatprep.mubr.f32.mxu0 0.0
    %1869 = vmatmul.mubr.f32.gmra.mxu0 %v1769
    %v1870 = vpop.f32.mrf.mxu0
    %v1871 = vadd.f32 0.0, %v1870
    %v1872 = vpop.f32.mrf.mxu0
    %1873 = vmatprep.mubr.f32.mxu0 0.0
    %1874 = vmatmul.mubr.f32.gmra.mxu0 %v1772
    %v1875 = vpop.f32.mrf.mxu0
    %v1876 = vadd.f32 0.0, %v1875
    %v1877 = vpop.f32.mrf.mxu0
    %1878 = vdwg.mxu0
    %v1879 = vadd.f32 %v1285, %v1841
    %v1880 = vadd.f32 %v1290, %v1846
    %v1881 = vadd.f32 %v1295, %v1851
    %v1882 = vadd.f32 %v1300, %v1856
    %v1883 = vadd.f32 %v1305, %v1861
    %v1884 = vadd.f32 %v1310, %v1866
    %v1885 = vadd.f32 %v1315, %v1871
    %v1886 = vadd.f32 %v1320, %v1876
    %1887 = vrot.lane.b32.xlu0 %v171, 104
    %v1888 = vpop.permute.xlu0 %1887
    %1889 = vrot.lane.b32.xlu0 %v176, 104
    %v1890 = vpop.permute.xlu0 %1889
    %1891 = vrot.lane.b32.xlu0 %v181, 104
    %v1892 = vpop.permute.xlu0 %1891
    %1893 = vrot.lane.b32.xlu0 %v186, 104
    %v1894 = vpop.permute.xlu0 %1893
    %1895 = vrot.lane.b32.xlu0 %v191, 104
    %v1896 = vpop.permute.xlu0 %1895
    %1897 = vrot.lane.b32.xlu0 %v196, 104
    %v1898 = vpop.permute.xlu0 %1897
    %1899 = vrot.lane.b32.xlu0 %v201, 104
    %v1900 = vpop.permute.xlu0 %1899
    %1901 = vrot.lane.b32.xlu0 %v206, 104
    %v1902 = vpop.permute.xlu0 %1901
    %1903 = vrot.lane.b32.xlu0 %v171, 72
    %v1904 = vpop.permute.xlu0 %1903
    %1905 = vrot.lane.b32.xlu0 %v176, 72
    %v1906 = vpop.permute.xlu0 %1905
    %1907 = vrot.lane.b32.xlu0 %v181, 72
    %v1908 = vpop.permute.xlu0 %1907
    %1909 = vrot.lane.b32.xlu0 %v186, 72
    %v1910 = vpop.permute.xlu0 %1909
    %1911 = vrot.lane.b32.xlu0 %v191, 72
    %v1912 = vpop.permute.xlu0 %1911
    %1913 = vrot.lane.b32.xlu0 %v196, 72
    %v1914 = vpop.permute.xlu0 %1913
    %1915 = vrot.lane.b32.xlu0 %v201, 72
    %v1916 = vpop.permute.xlu0 %1915
    %1917 = vrot.lane.b32.xlu0 %v206, 72
    %v1918 = vpop.permute.xlu0 %1917
    %v1919 = vsel %vm241, %v1888, 0
    %v1921 = vsel %vm241, %v1890, 0
    %v1923 = vsel %vm241, %v1892, 0
    %v1925 = vsel %vm241, %v1894, 0
    %v1927 = vsel %vm241, %v1896, 0
    %v1929 = vsel %vm241, %v1898, 0
    %v1931 = vsel %vm241, %v1900, 0
    %v1933 = vsel %vm241, %v1902, 0
    %v1935 = vsel %vm241, %v1904, 0
    %v1937 = vsel %vm241, %v1906, 0
    %v1939 = vsel %vm241, %v1908, 0
    %v1941 = vsel %vm241, %v1910, 0
    %v1943 = vsel %vm241, %v1912, 0
    %v1945 = vsel %vm241, %v1914, 0
    %v1947 = vsel %vm241, %v1916, 0
    %v1949 = vsel %vm241, %v1918, 0
    %1951 = vmatprep.subr.mxu0 0.0
    %1952 = vmatpush1.xpose.msra.mxu0 0.0
    %1953 = vmatprep.subr.mxu0 0.0
    %1954 = vmatpush1.xpose.msra.mxu0 0.0
    %1955 = vmatprep.subr.mxu0 0.0
    %1956 = vmatpush1.xpose.msra.mxu0 0.0
    %1957 = vmatprep.subr.mxu0 0.0
    %1958 = vmatpush1.xpose.msra.mxu0 0.0
    %1959 = vmatprep.subr.mxu0 0.0
    %1960 = vmatpush1.xpose.msra.mxu0 0.0
    %1961 = vmatprep.subr.mxu0 0.0
    %1962 = vmatpush1.xpose.msra.mxu0 0.0
    %1963 = vmatprep.subr.mxu0 0.0
    %1964 = vmatpush1.xpose.msra.mxu0 0.0
    %1965 = vmatprep.subr.mxu0 0.0
    %1966 = vmatpush1.xpose.msra.mxu0 0.0
    %1967 = vmatprep.subr.mxu0 0.0
    %1968 = vmatpush1.xpose.msra.mxu0 %v1949
    %1969 = vmatprep.subr.mxu0 0.0
    %1970 = vmatpush1.xpose.msra.mxu0 %v1947
    %1971 = vmatprep.subr.mxu0 0.0
    %1972 = vmatpush1.xpose.msra.mxu0 %v1945
    %1973 = vmatprep.subr.mxu0 0.0
    %1974 = vmatpush1.xpose.msra.mxu0 %v1943
    %1975 = vmatprep.subr.mxu0 0.0
    %1976 = vmatpush1.xpose.msra.mxu0 %v1941
    %1977 = vmatprep.subr.mxu0 0.0
    %1978 = vmatpush1.xpose.msra.mxu0 %v1939
    %1979 = vmatprep.subr.mxu0 0.0
    %1980 = vmatpush1.xpose.msra.mxu0 %v1937
    %1981 = vmatprep.subr.mxu0 0.0
    %1982 = vmatpush1.xpose.msra.mxu0 %v1935
    %1983 = vmatprep.subr.mxu0 0.0
    %1984 = vmatpush2.xpose.msra.mxu0 0.0
    %1985 = vmatprep.subr.mxu0 0.0
    %1986 = vmatpush2.xpose.msra.mxu0 0.0
    %1987 = vmatprep.subr.mxu0 0.0
    %1988 = vmatpush2.xpose.msra.mxu0 0.0
    %1989 = vmatprep.subr.mxu0 0.0
    %1990 = vmatpush2.xpose.msra.mxu0 0.0
    %1991 = vmatprep.subr.mxu0 0.0
    %1992 = vmatpush2.xpose.msra.mxu0 0.0
    %1993 = vmatprep.subr.mxu0 0.0
    %1994 = vmatpush2.xpose.msra.mxu0 0.0
    %1995 = vmatprep.subr.mxu0 0.0
    %1996 = vmatpush2.xpose.msra.mxu0 0.0
    %1997 = vmatprep.subr.mxu0 0.0
    %1998 = vmatpush2.xpose.msra.mxu0 0.0
    %1999 = vmatprep.subr.mxu0 0.0
    %2000 = vmatpush2.xpose.msra.mxu0 0.0
    %2001 = vmatprep.subr.mxu0 0.0
    %2002 = vmatpush2.xpose.msra.mxu0 0.0
    %2003 = vmatprep.subr.mxu0 0.0
    %2004 = vmatpush2.xpose.msra.mxu0 0.0
    %2005 = vmatprep.subr.mxu0 0.0
    %2006 = vmatpush2.xpose.msra.mxu0 0.0
    %2007 = vmatprep.subr.mxu0 0.0
    %2008 = vmatpush2.xpose.msra.mxu0 0.0
    %2009 = vmatprep.subr.mxu0 0.0
    %2010 = vmatpush2.xpose.msra.mxu0 0.0
    %2011 = vmatprep.subr.mxu0 0.0
    %2012 = vmatpush2.xpose.msra.mxu0 0.0
    %2013 = vmatprep.subr.mxu0 0.0
    %2014 = vmatpush2.xpose.msra.mxu0 0.0
    %2015 = vmatprep.mubr.f32.mxu0 0.0
    %2016 = vmatmul.mubr.f32.gmra.mxu0 %v1919
    %v2017 = vpop.f32.mrf.mxu0
    %v2018 = vadd.f32 0.0, %v2017
    %v2019 = vpop.f32.mrf.mxu0
    %2020 = vmatprep.mubr.f32.mxu0 0.0
    %2021 = vmatmul.mubr.f32.gmra.mxu0 %v1921
    %v2022 = vpop.f32.mrf.mxu0
    %v2023 = vadd.f32 0.0, %v2022
    %v2024 = vpop.f32.mrf.mxu0
    %2025 = vmatprep.mubr.f32.mxu0 0.0
    %2026 = vmatmul.mubr.f32.gmra.mxu0 %v1923
    %v2027 = vpop.f32.mrf.mxu0
    %v2028 = vadd.f32 0.0, %v2027
    %v2029 = vpop.f32.mrf.mxu0
    %2030 = vmatprep.mubr.f32.mxu0 0.0
    %2031 = vmatmul.mubr.f32.gmra.mxu0 %v1925
    %v2032 = vpop.f32.mrf.mxu0
    %v2033 = vadd.f32 0.0, %v2032
    %v2034 = vpop.f32.mrf.mxu0
    %2035 = vmatprep.mubr.f32.mxu0 0.0
    %2036 = vmatmul.mubr.f32.gmra.mxu0 %v1927
    %v2037 = vpop.f32.mrf.mxu0
    %v2038 = vadd.f32 0.0, %v2037
    %v2039 = vpop.f32.mrf.mxu0
    %2040 = vmatprep.mubr.f32.mxu0 0.0
    %2041 = vmatmul.mubr.f32.gmra.mxu0 %v1929
    %v2042 = vpop.f32.mrf.mxu0
    %v2043 = vadd.f32 0.0, %v2042
    %v2044 = vpop.f32.mrf.mxu0
    %2045 = vmatprep.mubr.f32.mxu0 0.0
    %2046 = vmatmul.mubr.f32.gmra.mxu0 %v1931
    %v2047 = vpop.f32.mrf.mxu0
    %v2048 = vadd.f32 0.0, %v2047
    %v2049 = vpop.f32.mrf.mxu0
    %2050 = vmatprep.mubr.f32.mxu0 0.0
    %2051 = vmatmul.mubr.f32.gmra.mxu0 %v1933
    %v2052 = vpop.f32.mrf.mxu0
    %v2053 = vadd.f32 0.0, %v2052
    %v2054 = vpop.f32.mrf.mxu0
    %2055 = vdwg.mxu0
    %v2056 = vmul.f32 %v2018, 0.35355338
    %v2057 = vmul.f32 %v2023, 0.35355338
    %v2058 = vmul.f32 %v2028, 0.35355338
    %v2059 = vmul.f32 %v2033, 0.35355338
    %v2060 = vmul.f32 %v2038, 0.35355338
    %v2061 = vmul.f32 %v2043, 0.35355338
    %v2062 = vmul.f32 %v2048, 0.35355338
    %v2063 = vmul.f32 %v2053, 0.35355338
    %v2064 = vadd.f32 %v2056, %v209
    %v2065 = vadd.f32 %v2057, %v210
    %v2066 = vadd.f32 %v2058, %v211
    %v2067 = vadd.f32 %v2059, %v212
    %v2068 = vadd.f32 %v2060, %v213
    %v2069 = vadd.f32 %v2061, %v214
    %v2070 = vadd.f32 %v2062, %v215
    %v2071 = vadd.f32 %v2063, %v216
    %v2072 = vsel %vm395, %v2064, -inf
    %2073 = vmax.xlane.f32.xlu0 %v2072
    %v2074 = vpop.xlane.xlu0 %2073
    %v2075 = vsel %vm395, %v2065, -inf
    %2076 = vmax.xlane.f32.xlu0 %v2075
    %v2077 = vpop.xlane.xlu0 %2076
    %v2078 = vsel %vm395, %v2066, -inf
    %2079 = vmax.xlane.f32.xlu0 %v2078
    %v2080 = vpop.xlane.xlu0 %2079
    %v2081 = vsel %vm395, %v2067, -inf
    %2082 = vmax.xlane.f32.xlu0 %v2081
    %v2083 = vpop.xlane.xlu0 %2082
    %v2084 = vsel %vm395, %v2068, -inf
    %2085 = vmax.xlane.f32.xlu0 %v2084
    %v2086 = vpop.xlane.xlu0 %2085
    %v2087 = vsel %vm395, %v2069, -inf
    %2088 = vmax.xlane.f32.xlu0 %v2087
    %v2089 = vpop.xlane.xlu0 %2088
    %v2090 = vsel %vm395, %v2070, -inf
    %2091 = vmax.xlane.f32.xlu0 %v2090
    %v2092 = vpop.xlane.xlu0 %2091
    %v2093 = vsel %vm395, %v2071, -inf
    %2094 = vmax.xlane.f32.xlu0 %v2093
    %v2095 = vpop.xlane.xlu0 %2094
    %v2096 = vsub.f32 %v2064, %v2074
    %v2097 = vsub.f32 %v2065, %v2077
    %v2098 = vsub.f32 %v2066, %v2080
    %v2099 = vsub.f32 %v2067, %v2083
    %v2100 = vsub.f32 %v2068, %v2086
    %v2101 = vsub.f32 %v2069, %v2089
    %v2102 = vsub.f32 %v2070, %v2092
    %v2103 = vsub.f32 %v2071, %v2095
    %v2104 = vmul.f32 %v2096, 1.442695
    %v2105 = vpow.pop %v2104
    %v2106 = vmul.f32 %v2097, 1.442695
    %v2107 = vpow.pop %v2106
    %v2108 = vmul.f32 %v2098, 1.442695
    %v2109 = vpow.pop %v2108
    %v2110 = vmul.f32 %v2099, 1.442695
    %v2111 = vpow.pop %v2110
    %v2112 = vmul.f32 %v2100, 1.442695
    %v2113 = vpow.pop %v2112
    %v2114 = vmul.f32 %v2101, 1.442695
    %v2115 = vpow.pop %v2114
    %v2116 = vmul.f32 %v2102, 1.442695
    %v2117 = vpow.pop %v2116
    %v2118 = vmul.f32 %v2103, 1.442695
    %v2119 = vpow.pop %v2118
    %v2120 = vsel %vm395, %v2105, 0.0
    %2121 = vadd.xlane.f32.xlu0 %v2120
    %v2122 = vpop.xlane.xlu0 %2121
    %v2123 = vsel %vm395, %v2107, 0.0
    %2124 = vadd.xlane.f32.xlu0 %v2123
    %v2125 = vpop.xlane.xlu0 %2124
    %v2126 = vsel %vm395, %v2109, 0.0
    %2127 = vadd.xlane.f32.xlu0 %v2126
    %v2128 = vpop.xlane.xlu0 %2127
    %v2129 = vsel %vm395, %v2111, 0.0
    %2130 = vadd.xlane.f32.xlu0 %v2129
    %v2131 = vpop.xlane.xlu0 %2130
    %v2132 = vsel %vm395, %v2113, 0.0
    %2133 = vadd.xlane.f32.xlu0 %v2132
    %v2134 = vpop.xlane.xlu0 %2133
    %v2135 = vsel %vm395, %v2115, 0.0
    %2136 = vadd.xlane.f32.xlu0 %v2135
    %v2137 = vpop.xlane.xlu0 %2136
    %v2138 = vsel %vm395, %v2117, 0.0
    %2139 = vadd.xlane.f32.xlu0 %v2138
    %v2140 = vpop.xlane.xlu0 %2139
    %v2141 = vsel %vm395, %v2119, 0.0
    %2142 = vadd.xlane.f32.xlu0 %v2141
    %v2143 = vpop.xlane.xlu0 %2142
    %v2144 = vrcp.pop %v2122
    %v2145 = vrcp.pop %v2125
    %v2146 = vrcp.pop %v2128
    %v2147 = vrcp.pop %v2131
    %v2148 = vrcp.pop %v2134
    %v2149 = vrcp.pop %v2137
    %v2150 = vrcp.pop %v2140
    %v2151 = vrcp.pop %v2143
    %v2152 = vmul.f32 %v2105, %v2144
    %v2153 = vmul.f32 %v2107, %v2145
    %v2154 = vmul.f32 %v2109, %v2146
    %v2155 = vmul.f32 %v2111, %v2147
    %v2156 = vmul.f32 %v2113, %v2148
    %v2157 = vmul.f32 %v2115, %v2149
    %v2158 = vmul.f32 %v2117, %v2150
    %v2159 = vmul.f32 %v2119, %v2151
    %2160 = vrot.lane.b32.xlu0 %v171, 40
    %v2161 = vpop.permute.xlu0 %2160
    %2162 = vrot.lane.b32.xlu0 %v176, 40
    %v2163 = vpop.permute.xlu0 %2162
    %2164 = vrot.lane.b32.xlu0 %v181, 40
    %v2165 = vpop.permute.xlu0 %2164
    %2166 = vrot.lane.b32.xlu0 %v186, 40
    %v2167 = vpop.permute.xlu0 %2166
    %2168 = vrot.lane.b32.xlu0 %v191, 40
    %v2169 = vpop.permute.xlu0 %2168
    %2170 = vrot.lane.b32.xlu0 %v196, 40
    %v2171 = vpop.permute.xlu0 %2170
    %2172 = vrot.lane.b32.xlu0 %v201, 40
    %v2173 = vpop.permute.xlu0 %2172
    %2174 = vrot.lane.b32.xlu0 %v206, 40
    %v2175 = vpop.permute.xlu0 %2174
    %v2185 = vsel %vm395, %v2152, 0
    %v2188 = vsel %vm395, %v2153, 0
    %v2191 = vsel %vm395, %v2154, 0
    %v2194 = vsel %vm395, %v2155, 0
    %v2197 = vsel %vm395, %v2156, 0
    %v2200 = vsel %vm395, %v2157, 0
    %v2203 = vsel %vm395, %v2158, 0
    %v2206 = vsel %vm395, %v2159, 0
    %2208 = vmatprep.subr.mxu0 0.0
    %2209 = vmatpush1.msra.mxu0 0.0
    %2210 = vmatprep.subr.mxu0 0.0
    %2211 = vmatpush1.msra.mxu0 0.0
    %2212 = vmatprep.subr.mxu0 0.0
    %2213 = vmatpush1.msra.mxu0 0.0
    %2214 = vmatprep.subr.mxu0 0.0
    %2215 = vmatpush1.msra.mxu0 0.0
    %2216 = vmatprep.subr.mxu0 0.0
    %2217 = vmatpush1.msra.mxu0 0.0
    %2218 = vmatprep.subr.mxu0 0.0
    %2219 = vmatpush1.msra.mxu0 0.0
    %2220 = vmatprep.subr.mxu0 0.0
    %2221 = vmatpush1.msra.mxu0 0.0
    %2222 = vmatprep.subr.mxu0 0.0
    %2223 = vmatpush1.msra.mxu0 0.0
    %2224 = vmatprep.subr.mxu0 0.0
    %2225 = vmatpush1.msra.mxu0 %v2175
    %2226 = vmatprep.subr.mxu0 0.0
    %2227 = vmatpush1.msra.mxu0 %v2173
    %2228 = vmatprep.subr.mxu0 0.0
    %2229 = vmatpush1.msra.mxu0 %v2171
    %2230 = vmatprep.subr.mxu0 0.0
    %2231 = vmatpush1.msra.mxu0 %v2169
    %2232 = vmatprep.subr.mxu0 0.0
    %2233 = vmatpush1.msra.mxu0 %v2167
    %2234 = vmatprep.subr.mxu0 0.0
    %2235 = vmatpush1.msra.mxu0 %v2165
    %2236 = vmatprep.subr.mxu0 0.0
    %2237 = vmatpush1.msra.mxu0 %v2163
    %2238 = vmatprep.subr.mxu0 0.0
    %2239 = vmatpush1.msra.mxu0 %v2161
    %2240 = vmatprep.subr.mxu0 0.0
    %2241 = vmatpush2.msra.mxu0 0.0
    %2242 = vmatprep.subr.mxu0 0.0
    %2243 = vmatpush2.msra.mxu0 0.0
    %2244 = vmatprep.subr.mxu0 0.0
    %2245 = vmatpush2.msra.mxu0 0.0
    %2246 = vmatprep.subr.mxu0 0.0
    %2247 = vmatpush2.msra.mxu0 0.0
    %2248 = vmatprep.subr.mxu0 0.0
    %2249 = vmatpush2.msra.mxu0 0.0
    %2250 = vmatprep.subr.mxu0 0.0
    %2251 = vmatpush2.msra.mxu0 0.0
    %2252 = vmatprep.subr.mxu0 0.0
    %2253 = vmatpush2.msra.mxu0 0.0
    %2254 = vmatprep.subr.mxu0 0.0
    %2255 = vmatpush2.msra.mxu0 0.0
    %2256 = vmatprep.subr.mxu0 0.0
    %2257 = vmatpush2.msra.mxu0 0.0
    %2258 = vmatprep.subr.mxu0 0.0
    %2259 = vmatpush2.msra.mxu0 0.0
    %2260 = vmatprep.subr.mxu0 0.0
    %2261 = vmatpush2.msra.mxu0 0.0
    %2262 = vmatprep.subr.mxu0 0.0
    %2263 = vmatpush2.msra.mxu0 0.0
    %2264 = vmatprep.subr.mxu0 0.0
    %2265 = vmatpush2.msra.mxu0 0.0
    %2266 = vmatprep.subr.mxu0 0.0
    %2267 = vmatpush2.msra.mxu0 0.0
    %2268 = vmatprep.subr.mxu0 0.0
    %2269 = vmatpush2.msra.mxu0 0.0
    %2270 = vmatprep.subr.mxu0 0.0
    %2271 = vmatpush2.msra.mxu0 0.0
    %2272 = vmatprep.mubr.f32.mxu0 0.0
    %2273 = vmatmul.mubr.f32.gmra.mxu0 %v2185
    %v2274 = vpop.f32.mrf.mxu0
    %v2275 = vadd.f32 0.0, %v2274
    %v2276 = vpop.f32.mrf.mxu0
    %2277 = vmatprep.mubr.f32.mxu0 0.0
    %2278 = vmatmul.mubr.f32.gmra.mxu0 %v2188
    %v2279 = vpop.f32.mrf.mxu0
    %v2280 = vadd.f32 0.0, %v2279
    %v2281 = vpop.f32.mrf.mxu0
    %2282 = vmatprep.mubr.f32.mxu0 0.0
    %2283 = vmatmul.mubr.f32.gmra.mxu0 %v2191
    %v2284 = vpop.f32.mrf.mxu0
    %v2285 = vadd.f32 0.0, %v2284
    %v2286 = vpop.f32.mrf.mxu0
    %2287 = vmatprep.mubr.f32.mxu0 0.0
    %2288 = vmatmul.mubr.f32.gmra.mxu0 %v2194
    %v2289 = vpop.f32.mrf.mxu0
    %v2290 = vadd.f32 0.0, %v2289
    %v2291 = vpop.f32.mrf.mxu0
    %2292 = vmatprep.mubr.f32.mxu0 0.0
    %2293 = vmatmul.mubr.f32.gmra.mxu0 %v2197
    %v2294 = vpop.f32.mrf.mxu0
    %v2295 = vadd.f32 0.0, %v2294
    %v2296 = vpop.f32.mrf.mxu0
    %2297 = vmatprep.mubr.f32.mxu0 0.0
    %2298 = vmatmul.mubr.f32.gmra.mxu0 %v2200
    %v2299 = vpop.f32.mrf.mxu0
    %v2300 = vadd.f32 0.0, %v2299
    %v2301 = vpop.f32.mrf.mxu0
    %2302 = vmatprep.mubr.f32.mxu0 0.0
    %2303 = vmatmul.mubr.f32.gmra.mxu0 %v2203
    %v2304 = vpop.f32.mrf.mxu0
    %v2305 = vadd.f32 0.0, %v2304
    %v2306 = vpop.f32.mrf.mxu0
    %2307 = vmatprep.mubr.f32.mxu0 0.0
    %2308 = vmatmul.mubr.f32.gmra.mxu0 %v2206
    %v2309 = vpop.f32.mrf.mxu0
    %v2310 = vadd.f32 0.0, %v2309
    %v2311 = vpop.f32.mrf.mxu0
    %2312 = vdwg.mxu0
    %v2313 = vld [vmem:[%s7 + $0x18] sm:$0xff]
    %v2315 = vsel %vm241, %v2275, 0
    %v2318 = vsel %vm241, %v2280, 0
    %v2321 = vsel %vm241, %v2285, 0
    %v2324 = vsel %vm241, %v2290, 0
    %v2327 = vsel %vm241, %v2295, 0
    %v2330 = vsel %vm241, %v2300, 0
    %v2333 = vsel %vm241, %v2305, 0
    %v2336 = vsel %vm241, %v2310, 0
    %2338 = vmatprep.subr.mxu0 0.0
    %2339 = vmatpush1.msra.mxu0 0.0
    %2340 = vmatprep.subr.mxu0 0.0
    %2341 = vmatpush1.msra.mxu0 0.0
    %2342 = vmatprep.subr.mxu0 0.0
    %2343 = vmatpush1.msra.mxu0 0.0
    %2344 = vmatprep.subr.mxu0 0.0
    %2345 = vmatpush1.msra.mxu0 0.0
    %2346 = vmatprep.subr.mxu0 0.0
    %2347 = vmatpush1.msra.mxu0 0.0
    %2348 = vmatprep.subr.mxu0 0.0
    %2349 = vmatpush1.msra.mxu0 0.0
    %2350 = vmatprep.subr.mxu0 0.0
    %2351 = vmatpush1.msra.mxu0 0.0
    %2352 = vmatprep.subr.mxu0 0.0
    %2353 = vmatpush1.msra.mxu0 0.0
    %2354 = vmatprep.subr.mxu0 0.0
    %2355 = vmatpush1.msra.mxu0 0.0
    %2356 = vmatprep.subr.mxu0 0.0
    %2357 = vmatpush1.msra.mxu0 0.0
    %2358 = vmatprep.subr.mxu0 0.0
    %2359 = vmatpush1.msra.mxu0 0.0
    %2360 = vmatprep.subr.mxu0 0.0
    %2361 = vmatpush1.msra.mxu0 0.0
    %2362 = vmatprep.subr.mxu0 0.0
    %2363 = vmatpush1.msra.mxu0 0.0
    %2364 = vmatprep.subr.mxu0 0.0
    %2365 = vmatpush1.msra.mxu0 0.0
    %2366 = vmatprep.subr.mxu0 0.0
    %2367 = vmatpush1.msra.mxu0 0.0
    %2368 = vmatprep.subr.mxu0 0.0
    %2369 = vmatpush1.msra.mxu0 %v2313
    %2370 = vmatprep.subr.mxu0 0.0
    %2371 = vmatpush2.msra.mxu0 0.0
    %2372 = vmatprep.subr.mxu0 0.0
    %2373 = vmatpush2.msra.mxu0 0.0
    %2374 = vmatprep.subr.mxu0 0.0
    %2375 = vmatpush2.msra.mxu0 0.0
    %2376 = vmatprep.subr.mxu0 0.0
    %2377 = vmatpush2.msra.mxu0 0.0
    %2378 = vmatprep.subr.mxu0 0.0
    %2379 = vmatpush2.msra.mxu0 0.0
    %2380 = vmatprep.subr.mxu0 0.0
    %2381 = vmatpush2.msra.mxu0 0.0
    %2382 = vmatprep.subr.mxu0 0.0
    %2383 = vmatpush2.msra.mxu0 0.0
    %2384 = vmatprep.subr.mxu0 0.0
    %2385 = vmatpush2.msra.mxu0 0.0
    %2386 = vmatprep.subr.mxu0 0.0
    %2387 = vmatpush2.msra.mxu0 0.0
    %2388 = vmatprep.subr.mxu0 0.0
    %2389 = vmatpush2.msra.mxu0 0.0
    %2390 = vmatprep.subr.mxu0 0.0
    %2391 = vmatpush2.msra.mxu0 0.0
    %2392 = vmatprep.subr.mxu0 0.0
    %2393 = vmatpush2.msra.mxu0 0.0
    %2394 = vmatprep.subr.mxu0 0.0
    %2395 = vmatpush2.msra.mxu0 0.0
    %2396 = vmatprep.subr.mxu0 0.0
    %2397 = vmatpush2.msra.mxu0 0.0
    %2398 = vmatprep.subr.mxu0 0.0
    %2399 = vmatpush2.msra.mxu0 0.0
    %2400 = vmatprep.subr.mxu0 0.0
    %2401 = vmatpush2.msra.mxu0 0.0
    %2402 = vmatprep.mubr.f32.mxu0 0.0
    %2403 = vmatmul.mubr.f32.gmra.mxu0 %v2315
    %v2404 = vpop.f32.mrf.mxu0
    %v2405 = vadd.f32 0.0, %v2404
    %v2406 = vpop.f32.mrf.mxu0
    %2407 = vmatprep.mubr.f32.mxu0 0.0
    %2408 = vmatmul.mubr.f32.gmra.mxu0 %v2318
    %v2409 = vpop.f32.mrf.mxu0
    %v2410 = vadd.f32 0.0, %v2409
    %v2411 = vpop.f32.mrf.mxu0
    %2412 = vmatprep.mubr.f32.mxu0 0.0
    %2413 = vmatmul.mubr.f32.gmra.mxu0 %v2321
    %v2414 = vpop.f32.mrf.mxu0
    %v2415 = vadd.f32 0.0, %v2414
    %v2416 = vpop.f32.mrf.mxu0
    %2417 = vmatprep.mubr.f32.mxu0 0.0
    %2418 = vmatmul.mubr.f32.gmra.mxu0 %v2324
    %v2419 = vpop.f32.mrf.mxu0
    %v2420 = vadd.f32 0.0, %v2419
    %v2421 = vpop.f32.mrf.mxu0
    %2422 = vmatprep.mubr.f32.mxu0 0.0
    %2423 = vmatmul.mubr.f32.gmra.mxu0 %v2327
    %v2424 = vpop.f32.mrf.mxu0
    %v2425 = vadd.f32 0.0, %v2424
    %v2426 = vpop.f32.mrf.mxu0
    %2427 = vmatprep.mubr.f32.mxu0 0.0
    %2428 = vmatmul.mubr.f32.gmra.mxu0 %v2330
    %v2429 = vpop.f32.mrf.mxu0
    %v2430 = vadd.f32 0.0, %v2429
    %v2431 = vpop.f32.mrf.mxu0
    %2432 = vmatprep.mubr.f32.mxu0 0.0
    %2433 = vmatmul.mubr.f32.gmra.mxu0 %v2333
    %v2434 = vpop.f32.mrf.mxu0
    %v2435 = vadd.f32 0.0, %v2434
    %v2436 = vpop.f32.mrf.mxu0
    %2437 = vmatprep.mubr.f32.mxu0 0.0
    %2438 = vmatmul.mubr.f32.gmra.mxu0 %v2336
    %v2439 = vpop.f32.mrf.mxu0
    %v2440 = vadd.f32 0.0, %v2439
    %v2441 = vpop.f32.mrf.mxu0
    %2442 = vdwg.mxu0
    %v2443 = vadd.f32 %v1879, %v2405
    %v2444 = vadd.f32 %v1880, %v2410
    %v2445 = vadd.f32 %v1881, %v2415
    %v2446 = vadd.f32 %v1882, %v2420
    %v2447 = vadd.f32 %v1883, %v2425
    %v2448 = vadd.f32 %v1884, %v2430
    %v2449 = vadd.f32 %v1885, %v2435
    %v2450 = vadd.f32 %v1886, %v2440
    %v2451 = vld [vmem:[%s8] sm:$0x1]
    %v2453 = vlaneseq
    %v2454 = vshrl.u32 %v2453, 7
    %v2455 = vsub.s32 0, %v2454
    %v2456 = vrot.slane %v2451, %v2455
    %v2458 = vadd.f32 %v2443, %v2456
    %v2459 = vadd.f32 %v2444, %v2456
    %v2460 = vadd.f32 %v2445, %v2456
    %v2461 = vadd.f32 %v2446, %v2456
    %v2462 = vadd.f32 %v2447, %v2456
    %v2463 = vadd.f32 %v2448, %v2456
    %v2464 = vadd.f32 %v2449, %v2456
    %v2465 = vadd.f32 %v2450, %v2456
    %v2466 = vld [vmem:[%s2] sm:$0xff]
    %v2467 = vld [vmem:[%s2 + $0x8] sm:$0xff]
    %v2468 = vld [vmem:[%s2 + $0x10] sm:$0xff]
    %v2469 = vld [vmem:[%s2 + $0x18] sm:$0xff]
    %v2470 = vld [vmem:[%s2 + $0x20] sm:$0xff]
    %v2471 = vld [vmem:[%s2 + $0x28] sm:$0xff]
    %v2472 = vld [vmem:[%s2 + $0x30] sm:$0xff]
    %v2473 = vld [vmem:[%s2 + $0x38] sm:$0xff]
    %v2474 = vld [vmem:[%s9] sm:$0xff]
    %v2475 = vld [vmem:[%s9 + $0x8] sm:$0xff]
    %v2476 = vld [vmem:[%s9 + $0x10] sm:$0xff]
    %v2477 = vld [vmem:[%s9 + $0x18] sm:$0xff]
    %v2478 = vld [vmem:[%s10] sm:$0x1]
    %v2480 = vlaneseq
    %v2481 = vshrl.u32 %v2480, 7
    %v2482 = vsub.s32 0, %v2481
    %v2483 = vrot.slane %v2478, %v2482
    %vm2485 = vcmask 261120
    %v2487 = vsel %vm2485, %v2466, 0
    %v2490 = vsel %vm2485, %v2467, 0
    %v2493 = vsel %vm2485, %v2468, 0
    %v2496 = vsel %vm2485, %v2469, 0
    %v2499 = vsel %vm2485, %v2470, 0
    %v2502 = vsel %vm2485, %v2471, 0
    %v2505 = vsel %vm2485, %v2472, 0
    %v2508 = vsel %vm2485, %v2473, 0
    %2510 = vmatprep.subr.mxu0 0.0
    %2511 = vmatpush1.msra.mxu0 0.0
    %2512 = vmatprep.subr.mxu0 0.0
    %2513 = vmatpush1.msra.mxu0 0.0
    %2514 = vmatprep.subr.mxu0 0.0
    %2515 = vmatpush1.msra.mxu0 0.0
    %2516 = vmatprep.subr.mxu0 0.0
    %2517 = vmatpush1.msra.mxu0 0.0
    %2518 = vmatprep.subr.mxu0 0.0
    %2519 = vmatpush1.msra.mxu0 0.0
    %2520 = vmatprep.subr.mxu0 0.0
    %2521 = vmatpush1.msra.mxu0 0.0
    %2522 = vmatprep.subr.mxu0 0.0
    %2523 = vmatpush1.msra.mxu0 0.0
    %2524 = vmatprep.subr.mxu0 0.0
    %2525 = vmatpush1.msra.mxu0 0.0
    %2526 = vmatprep.subr.mxu0 0.0
    %2527 = vmatpush1.msra.mxu0 0.0
    %2528 = vmatprep.subr.mxu0 0.0
    %2529 = vmatpush1.msra.mxu0 0.0
    %2530 = vmatprep.subr.mxu0 0.0
    %2531 = vmatpush1.msra.mxu0 0.0
    %2532 = vmatprep.subr.mxu0 0.0
    %2533 = vmatpush1.msra.mxu0 0.0
    %2534 = vmatprep.subr.mxu0 0.0
    %2535 = vmatpush1.msra.mxu0 %v2477
    %2536 = vmatprep.subr.mxu0 0.0
    %2537 = vmatpush1.msra.mxu0 %v2476
    %2538 = vmatprep.subr.mxu0 0.0
    %2539 = vmatpush1.msra.mxu0 %v2475
    %2540 = vmatprep.subr.mxu0 0.0
    %2541 = vmatpush1.msra.mxu0 %v2474
    %2542 = vmatprep.subr.mxu0 0.0
    %2543 = vmatpush2.msra.mxu0 0.0
    %2544 = vmatprep.subr.mxu0 0.0
    %2545 = vmatpush2.msra.mxu0 0.0
    %2546 = vmatprep.subr.mxu0 0.0
    %2547 = vmatpush2.msra.mxu0 0.0
    %2548 = vmatprep.subr.mxu0 0.0
    %2549 = vmatpush2.msra.mxu0 0.0
    %2550 = vmatprep.subr.mxu0 0.0
    %2551 = vmatpush2.msra.mxu0 0.0
    %2552 = vmatprep.subr.mxu0 0.0
    %2553 = vmatpush2.msra.mxu0 0.0
    %2554 = vmatprep.subr.mxu0 0.0
    %2555 = vmatpush2.msra.mxu0 0.0
    %2556 = vmatprep.subr.mxu0 0.0
    %2557 = vmatpush2.msra.mxu0 0.0
    %2558 = vmatprep.subr.mxu0 0.0
    %2559 = vmatpush2.msra.mxu0 0.0
    %2560 = vmatprep.subr.mxu0 0.0
    %2561 = vmatpush2.msra.mxu0 0.0
    %2562 = vmatprep.subr.mxu0 0.0
    %2563 = vmatpush2.msra.mxu0 0.0
    %2564 = vmatprep.subr.mxu0 0.0
    %2565 = vmatpush2.msra.mxu0 0.0
    %2566 = vmatprep.subr.mxu0 0.0
    %2567 = vmatpush2.msra.mxu0 0.0
    %2568 = vmatprep.subr.mxu0 0.0
    %2569 = vmatpush2.msra.mxu0 0.0
    %2570 = vmatprep.subr.mxu0 0.0
    %2571 = vmatpush2.msra.mxu0 0.0
    %2572 = vmatprep.subr.mxu0 0.0
    %2573 = vmatpush2.msra.mxu0 0.0
    %2574 = vmatprep.mubr.f32.mxu0 0.0
    %2575 = vmatmul.mubr.f32.gmra.mxu0 %v2487
    %v2576 = vpop.f32.mrf.mxu0
    %v2577 = vadd.f32 %v2483, %v2576
    %v2578 = vpop.f32.mrf.mxu0
    %2579 = vmatprep.mubr.f32.mxu0 0.0
    %2580 = vmatmul.mubr.f32.gmra.mxu0 %v2490
    %v2581 = vpop.f32.mrf.mxu0
    %v2582 = vadd.f32 %v2483, %v2581
    %v2583 = vpop.f32.mrf.mxu0
    %2584 = vmatprep.mubr.f32.mxu0 0.0
    %2585 = vmatmul.mubr.f32.gmra.mxu0 %v2493
    %v2586 = vpop.f32.mrf.mxu0
    %v2587 = vadd.f32 %v2483, %v2586
    %v2588 = vpop.f32.mrf.mxu0
    %2589 = vmatprep.mubr.f32.mxu0 0.0
    %2590 = vmatmul.mubr.f32.gmra.mxu0 %v2496
    %v2591 = vpop.f32.mrf.mxu0
    %v2592 = vadd.f32 %v2483, %v2591
    %v2593 = vpop.f32.mrf.mxu0
    %2594 = vmatprep.mubr.f32.mxu0 0.0
    %2595 = vmatmul.mubr.f32.gmra.mxu0 %v2499
    %v2596 = vpop.f32.mrf.mxu0
    %v2597 = vadd.f32 %v2483, %v2596
    %v2598 = vpop.f32.mrf.mxu0
    %2599 = vmatprep.mubr.f32.mxu0 0.0
    %2600 = vmatmul.mubr.f32.gmra.mxu0 %v2502
    %v2601 = vpop.f32.mrf.mxu0
    %v2602 = vadd.f32 %v2483, %v2601
    %v2603 = vpop.f32.mrf.mxu0
    %2604 = vmatprep.mubr.f32.mxu0 0.0
    %2605 = vmatmul.mubr.f32.gmra.mxu0 %v2505
    %v2606 = vpop.f32.mrf.mxu0
    %v2607 = vadd.f32 %v2483, %v2606
    %v2608 = vpop.f32.mrf.mxu0
    %2609 = vmatprep.mubr.f32.mxu0 0.0
    %2610 = vmatmul.mubr.f32.gmra.mxu0 %v2508
    %v2611 = vpop.f32.mrf.mxu0
    %v2612 = vadd.f32 %v2483, %v2611
    %v2613 = vpop.f32.mrf.mxu0
    %2614 = vdwg.mxu0
    %v2615 = vld [vmem:[%s4] sm:$0xff]
    %v2616 = vld [vmem:[%s4 + $0x8] sm:$0xff]
    %v2617 = vld [vmem:[%s4 + $0x10] sm:$0xff]
    %v2618 = vld [vmem:[%s4 + $0x18] sm:$0xff]
    %v2619 = vld [vmem:[%s4 + $0x20] sm:$0xff]
    %v2620 = vld [vmem:[%s4 + $0x28] sm:$0xff]
    %v2621 = vld [vmem:[%s4 + $0x30] sm:$0xff]
    %v2622 = vld [vmem:[%s4 + $0x38] sm:$0xff]
    %v2624 = vsel %vm241, %v2458, 0
    %v2627 = vsel %vm241, %v2459, 0
    %v2630 = vsel %vm241, %v2460, 0
    %v2633 = vsel %vm241, %v2461, 0
    %v2636 = vsel %vm241, %v2462, 0
    %v2639 = vsel %vm241, %v2463, 0
    %v2642 = vsel %vm241, %v2464, 0
    %v2645 = vsel %vm241, %v2465, 0
    %v2648 = vsel %vm241, %v2577, 0
    %v2651 = vsel %vm241, %v2582, 0
    %v2654 = vsel %vm241, %v2587, 0
    %v2657 = vsel %vm241, %v2592, 0
    %v2660 = vsel %vm241, %v2597, 0
    %v2663 = vsel %vm241, %v2602, 0
    %v2666 = vsel %vm241, %v2607, 0
    %v2669 = vsel %vm241, %v2612, 0
    %2671 = vmatprep.subr.mxu0 0.0
    %2672 = vmatpush1.xpose.msra.mxu0 0.0
    %2673 = vmatprep.subr.mxu0 0.0
    %2674 = vmatpush1.xpose.msra.mxu0 0.0
    %2675 = vmatprep.subr.mxu0 0.0
    %2676 = vmatpush1.xpose.msra.mxu0 0.0
    %2677 = vmatprep.subr.mxu0 0.0
    %2678 = vmatpush1.xpose.msra.mxu0 0.0
    %2679 = vmatprep.subr.mxu0 0.0
    %2680 = vmatpush1.xpose.msra.mxu0 0.0
    %2681 = vmatprep.subr.mxu0 0.0
    %2682 = vmatpush1.xpose.msra.mxu0 0.0
    %2683 = vmatprep.subr.mxu0 0.0
    %2684 = vmatpush1.xpose.msra.mxu0 0.0
    %2685 = vmatprep.subr.mxu0 0.0
    %2686 = vmatpush1.xpose.msra.mxu0 0.0
    %2687 = vmatprep.subr.mxu0 0.0
    %2688 = vmatpush1.xpose.msra.mxu0 %v2669
    %2689 = vmatprep.subr.mxu0 0.0
    %2690 = vmatpush1.xpose.msra.mxu0 %v2666
    %2691 = vmatprep.subr.mxu0 0.0
    %2692 = vmatpush1.xpose.msra.mxu0 %v2663
    %2693 = vmatprep.subr.mxu0 0.0
    %2694 = vmatpush1.xpose.msra.mxu0 %v2660
    %2695 = vmatprep.subr.mxu0 0.0
    %2696 = vmatpush1.xpose.msra.mxu0 %v2657
    %2697 = vmatprep.subr.mxu0 0.0
    %2698 = vmatpush1.xpose.msra.mxu0 %v2654
    %2699 = vmatprep.subr.mxu0 0.0
    %2700 = vmatpush1.xpose.msra.mxu0 %v2651
    %2701 = vmatprep.subr.mxu0 0.0
    %2702 = vmatpush1.xpose.msra.mxu0 %v2648
    %2703 = vmatprep.subr.mxu0 0.0
    %2704 = vmatpush2.xpose.msra.mxu0 0.0
    %2705 = vmatprep.subr.mxu0 0.0
    %2706 = vmatpush2.xpose.msra.mxu0 0.0
    %2707 = vmatprep.subr.mxu0 0.0
    %2708 = vmatpush2.xpose.msra.mxu0 0.0
    %2709 = vmatprep.subr.mxu0 0.0
    %2710 = vmatpush2.xpose.msra.mxu0 0.0
    %2711 = vmatprep.subr.mxu0 0.0
    %2712 = vmatpush2.xpose.msra.mxu0 0.0
    %2713 = vmatprep.subr.mxu0 0.0
    %2714 = vmatpush2.xpose.msra.mxu0 0.0
    %2715 = vmatprep.subr.mxu0 0.0
    %2716 = vmatpush2.xpose.msra.mxu0 0.0
    %2717 = vmatprep.subr.mxu0 0.0
    %2718 = vmatpush2.xpose.msra.mxu0 0.0
    %2719 = vmatprep.subr.mxu0 0.0
    %2720 = vmatpush2.xpose.msra.mxu0 0.0
    %2721 = vmatprep.subr.mxu0 0.0
    %2722 = vmatpush2.xpose.msra.mxu0 0.0
    %2723 = vmatprep.subr.mxu0 0.0
    %2724 = vmatpush2.xpose.msra.mxu0 0.0
    %2725 = vmatprep.subr.mxu0 0.0
    %2726 = vmatpush2.xpose.msra.mxu0 0.0
    %2727 = vmatprep.subr.mxu0 0.0
    %2728 = vmatpush2.xpose.msra.mxu0 0.0
    %2729 = vmatprep.subr.mxu0 0.0
    %2730 = vmatpush2.xpose.msra.mxu0 0.0
    %2731 = vmatprep.subr.mxu0 0.0
    %2732 = vmatpush2.xpose.msra.mxu0 0.0
    %2733 = vmatprep.subr.mxu0 0.0
    %2734 = vmatpush2.xpose.msra.mxu0 0.0
    %2735 = vmatprep.mubr.f32.mxu0 0.0
    %2736 = vmatmul.mubr.f32.gmra.mxu0 %v2624
    %v2737 = vpop.f32.mrf.mxu0
    %v2738 = vadd.f32 0.0, %v2737
    %v2739 = vpop.f32.mrf.mxu0
    %2740 = vmatprep.mubr.f32.mxu0 0.0
    %2741 = vmatmul.mubr.f32.gmra.mxu0 %v2627
    %v2742 = vpop.f32.mrf.mxu0
    %v2743 = vadd.f32 0.0, %v2742
    %v2744 = vpop.f32.mrf.mxu0
    %2745 = vmatprep.mubr.f32.mxu0 0.0
    %2746 = vmatmul.mubr.f32.gmra.mxu0 %v2630
    %v2747 = vpop.f32.mrf.mxu0
    %v2748 = vadd.f32 0.0, %v2747
    %v2749 = vpop.f32.mrf.mxu0
    %2750 = vmatprep.mubr.f32.mxu0 0.0
    %2751 = vmatmul.mubr.f32.gmra.mxu0 %v2633
    %v2752 = vpop.f32.mrf.mxu0
    %v2753 = vadd.f32 0.0, %v2752
    %v2754 = vpop.f32.mrf.mxu0
    %2755 = vmatprep.mubr.f32.mxu0 0.0
    %2756 = vmatmul.mubr.f32.gmra.mxu0 %v2636
    %v2757 = vpop.f32.mrf.mxu0
    %v2758 = vadd.f32 0.0, %v2757
    %v2759 = vpop.f32.mrf.mxu0
    %2760 = vmatprep.mubr.f32.mxu0 0.0
    %2761 = vmatmul.mubr.f32.gmra.mxu0 %v2639
    %v2762 = vpop.f32.mrf.mxu0
    %v2763 = vadd.f32 0.0, %v2762
    %v2764 = vpop.f32.mrf.mxu0
    %2765 = vmatprep.mubr.f32.mxu0 0.0
    %2766 = vmatmul.mubr.f32.gmra.mxu0 %v2642
    %v2767 = vpop.f32.mrf.mxu0
    %v2768 = vadd.f32 0.0, %v2767
    %v2769 = vpop.f32.mrf.mxu0
    %2770 = vmatprep.mubr.f32.mxu0 0.0
    %2771 = vmatmul.mubr.f32.gmra.mxu0 %v2645
    %v2772 = vpop.f32.mrf.mxu0
    %v2773 = vadd.f32 0.0, %v2772
    %v2774 = vpop.f32.mrf.mxu0
    %2775 = vdwg.mxu0
    %v2776 = vmul.f32 %v2738, 0.35355338
    %v2777 = vmul.f32 %v2743, 0.35355338
    %v2778 = vmul.f32 %v2748, 0.35355338
    %v2779 = vmul.f32 %v2753, 0.35355338
    %v2780 = vmul.f32 %v2758, 0.35355338
    %v2781 = vmul.f32 %v2763, 0.35355338
    %v2782 = vmul.f32 %v2768, 0.35355338
    %v2783 = vmul.f32 %v2773, 0.35355338
    %v2784 = vadd.f32 %v2776, %v2615
    %v2785 = vadd.f32 %v2777, %v2616
    %v2786 = vadd.f32 %v2778, %v2617
    %v2787 = vadd.f32 %v2779, %v2618
    %v2788 = vadd.f32 %v2780, %v2619
    %v2789 = vadd.f32 %v2781, %v2620
    %v2790 = vadd.f32 %v2782, %v2621
    %v2791 = vadd.f32 %v2783, %v2622
    %v2792 = vsel %vm395, %v2784, -inf
    %2793 = vmax.xlane.f32.xlu0 %v2792
    %v2794 = vpop.xlane.xlu0 %2793
    %v2795 = vsel %vm395, %v2785, -inf
    %2796 = vmax.xlane.f32.xlu0 %v2795
    %v2797 = vpop.xlane.xlu0 %2796
    %v2798 = vsel %vm395, %v2786, -inf
    %2799 = vmax.xlane.f32.xlu0 %v2798
    %v2800 = vpop.xlane.xlu0 %2799
    %v2801 = vsel %vm395, %v2787, -inf
    %2802 = vmax.xlane.f32.xlu0 %v2801
    %v2803 = vpop.xlane.xlu0 %2802
    %v2804 = vsel %vm395, %v2788, -inf
    %2805 = vmax.xlane.f32.xlu0 %v2804
    %v2806 = vpop.xlane.xlu0 %2805
    %v2807 = vsel %vm395, %v2789, -inf
    %2808 = vmax.xlane.f32.xlu0 %v2807
    %v2809 = vpop.xlane.xlu0 %2808
    %v2810 = vsel %vm395, %v2790, -inf
    %2811 = vmax.xlane.f32.xlu0 %v2810
    %v2812 = vpop.xlane.xlu0 %2811
    %v2813 = vsel %vm395, %v2791, -inf
    %2814 = vmax.xlane.f32.xlu0 %v2813
    %v2815 = vpop.xlane.xlu0 %2814
    %v2816 = vsub.f32 %v2784, %v2794
    %v2817 = vsub.f32 %v2785, %v2797
    %v2818 = vsub.f32 %v2786, %v2800
    %v2819 = vsub.f32 %v2787, %v2803
    %v2820 = vsub.f32 %v2788, %v2806
    %v2821 = vsub.f32 %v2789, %v2809
    %v2822 = vsub.f32 %v2790, %v2812
    %v2823 = vsub.f32 %v2791, %v2815
    %v2824 = vmul.f32 %v2816, 1.442695
    %v2825 = vpow.pop %v2824
    %v2826 = vmul.f32 %v2817, 1.442695
    %v2827 = vpow.pop %v2826
    %v2828 = vmul.f32 %v2818, 1.442695
    %v2829 = vpow.pop %v2828
    %v2830 = vmul.f32 %v2819, 1.442695
    %v2831 = vpow.pop %v2830
    %v2832 = vmul.f32 %v2820, 1.442695
    %v2833 = vpow.pop %v2832
    %v2834 = vmul.f32 %v2821, 1.442695
    %v2835 = vpow.pop %v2834
    %v2836 = vmul.f32 %v2822, 1.442695
    %v2837 = vpow.pop %v2836
    %v2838 = vmul.f32 %v2823, 1.442695
    %v2839 = vpow.pop %v2838
    %v2840 = vsel %vm395, %v2825, 0.0
    %2841 = vadd.xlane.f32.xlu0 %v2840
    %v2842 = vpop.xlane.xlu0 %2841
    %v2843 = vsel %vm395, %v2827, 0.0
    %2844 = vadd.xlane.f32.xlu0 %v2843
    %v2845 = vpop.xlane.xlu0 %2844
    %v2846 = vsel %vm395, %v2829, 0.0
    %2847 = vadd.xlane.f32.xlu0 %v2846
    %v2848 = vpop.xlane.xlu0 %2847
    %v2849 = vsel %vm395, %v2831, 0.0
    %2850 = vadd.xlane.f32.xlu0 %v2849
    %v2851 = vpop.xlane.xlu0 %2850
    %v2852 = vsel %vm395, %v2833, 0.0
    %2853 = vadd.xlane.f32.xlu0 %v2852
    %v2854 = vpop.xlane.xlu0 %2853
    %v2855 = vsel %vm395, %v2835, 0.0
    %2856 = vadd.xlane.f32.xlu0 %v2855
    %v2857 = vpop.xlane.xlu0 %2856
    %v2858 = vsel %vm395, %v2837, 0.0
    %2859 = vadd.xlane.f32.xlu0 %v2858
    %v2860 = vpop.xlane.xlu0 %2859
    %v2861 = vsel %vm395, %v2839, 0.0
    %2862 = vadd.xlane.f32.xlu0 %v2861
    %v2863 = vpop.xlane.xlu0 %2862
    %v2864 = vrcp.pop %v2842
    %v2865 = vrcp.pop %v2845
    %v2866 = vrcp.pop %v2848
    %v2867 = vrcp.pop %v2851
    %v2868 = vrcp.pop %v2854
    %v2869 = vrcp.pop %v2857
    %v2870 = vrcp.pop %v2860
    %v2871 = vrcp.pop %v2863
    %v2872 = vmul.f32 %v2825, %v2864
    %v2873 = vmul.f32 %v2827, %v2865
    %v2874 = vmul.f32 %v2829, %v2866
    %v2875 = vmul.f32 %v2831, %v2867
    %v2876 = vmul.f32 %v2833, %v2868
    %v2877 = vmul.f32 %v2835, %v2869
    %v2878 = vmul.f32 %v2837, %v2870
    %v2879 = vmul.f32 %v2839, %v2871
    %2880 = vrot.lane.b32.xlu0 %v2577, 96
    %v2881 = vpop.permute.xlu0 %2880
    %2882 = vrot.lane.b32.xlu0 %v2582, 96
    %v2883 = vpop.permute.xlu0 %2882
    %2884 = vrot.lane.b32.xlu0 %v2587, 96
    %v2885 = vpop.permute.xlu0 %2884
    %2886 = vrot.lane.b32.xlu0 %v2592, 96
    %v2887 = vpop.permute.xlu0 %2886
    %2888 = vrot.lane.b32.xlu0 %v2597, 96
    %v2889 = vpop.permute.xlu0 %2888
    %2890 = vrot.lane.b32.xlu0 %v2602, 96
    %v2891 = vpop.permute.xlu0 %2890
    %2892 = vrot.lane.b32.xlu0 %v2607, 96
    %v2893 = vpop.permute.xlu0 %2892
    %2894 = vrot.lane.b32.xlu0 %v2612, 96
    %v2895 = vpop.permute.xlu0 %2894
    %v2905 = vsel %vm395, %v2872, 0
    %v2908 = vsel %vm395, %v2873, 0
    %v2911 = vsel %vm395, %v2874, 0
    %v2914 = vsel %vm395, %v2875, 0
    %v2917 = vsel %vm395, %v2876, 0
    %v2920 = vsel %vm395, %v2877, 0
    %v2923 = vsel %vm395, %v2878, 0
    %v2926 = vsel %vm395, %v2879, 0
    %2928 = vmatprep.subr.mxu0 0.0
    %2929 = vmatpush1.msra.mxu0 0.0
    %2930 = vmatprep.subr.mxu0 0.0
    %2931 = vmatpush1.msra.mxu0 0.0
    %2932 = vmatprep.subr.mxu0 0.0
    %2933 = vmatpush1.msra.mxu0 0.0
    %2934 = vmatprep.subr.mxu0 0.0
    %2935 = vmatpush1.msra.mxu0 0.0
    %2936 = vmatprep.subr.mxu0 0.0
    %2937 = vmatpush1.msra.mxu0 0.0
    %2938 = vmatprep.subr.mxu0 0.0
    %2939 = vmatpush1.msra.mxu0 0.0
    %2940 = vmatprep.subr.mxu0 0.0
    %2941 = vmatpush1.msra.mxu0 0.0
    %2942 = vmatprep.subr.mxu0 0.0
    %2943 = vmatpush1.msra.mxu0 0.0
    %2944 = vmatprep.subr.mxu0 0.0
    %2945 = vmatpush1.msra.mxu0 %v2895
    %2946 = vmatprep.subr.mxu0 0.0
    %2947 = vmatpush1.msra.mxu0 %v2893
    %2948 = vmatprep.subr.mxu0 0.0
    %2949 = vmatpush1.msra.mxu0 %v2891
    %2950 = vmatprep.subr.mxu0 0.0
    %2951 = vmatpush1.msra.mxu0 %v2889
    %2952 = vmatprep.subr.mxu0 0.0
    %2953 = vmatpush1.msra.mxu0 %v2887
    %2954 = vmatprep.subr.mxu0 0.0
    %2955 = vmatpush1.msra.mxu0 %v2885
    %2956 = vmatprep.subr.mxu0 0.0
    %2957 = vmatpush1.msra.mxu0 %v2883
    %2958 = vmatprep.subr.mxu0 0.0
    %2959 = vmatpush1.msra.mxu0 %v2881
    %2960 = vmatprep.subr.mxu0 0.0
    %2961 = vmatpush2.msra.mxu0 0.0
    %2962 = vmatprep.subr.mxu0 0.0
    %2963 = vmatpush2.msra.mxu0 0.0
    %2964 = vmatprep.subr.mxu0 0.0
    %2965 = vmatpush2.msra.mxu0 0.0
    %2966 = vmatprep.subr.mxu0 0.0
    %2967 = vmatpush2.msra.mxu0 0.0
    %2968 = vmatprep.subr.mxu0 0.0
    %2969 = vmatpush2.msra.mxu0 0.0
    %2970 = vmatprep.subr.mxu0 0.0
    %2971 = vmatpush2.msra.mxu0 0.0
    %2972 = vmatprep.subr.mxu0 0.0
    %2973 = vmatpush2.msra.mxu0 0.0
    %2974 = vmatprep.subr.mxu0 0.0
    %2975 = vmatpush2.msra.mxu0 0.0
    %2976 = vmatprep.subr.mxu0 0.0
    %2977 = vmatpush2.msra.mxu0 0.0
    %2978 = vmatprep.subr.mxu0 0.0
    %2979 = vmatpush2.msra.mxu0 0.0
    %2980 = vmatprep.subr.mxu0 0.0
    %2981 = vmatpush2.msra.mxu0 0.0
    %2982 = vmatprep.subr.mxu0 0.0
    %2983 = vmatpush2.msra.mxu0 0.0
    %2984 = vmatprep.subr.mxu0 0.0
    %2985 = vmatpush2.msra.mxu0 0.0
    %2986 = vmatprep.subr.mxu0 0.0
    %2987 = vmatpush2.msra.mxu0 0.0
    %2988 = vmatprep.subr.mxu0 0.0
    %2989 = vmatpush2.msra.mxu0 0.0
    %2990 = vmatprep.subr.mxu0 0.0
    %2991 = vmatpush2.msra.mxu0 0.0
    %2992 = vmatprep.mubr.f32.mxu0 0.0
    %2993 = vmatmul.mubr.f32.gmra.mxu0 %v2905
    %v2994 = vpop.f32.mrf.mxu0
    %v2995 = vadd.f32 0.0, %v2994
    %v2996 = vpop.f32.mrf.mxu0
    %2997 = vmatprep.mubr.f32.mxu0 0.0
    %2998 = vmatmul.mubr.f32.gmra.mxu0 %v2908
    %v2999 = vpop.f32.mrf.mxu0
    %v3000 = vadd.f32 0.0, %v2999
    %v3001 = vpop.f32.mrf.mxu0
    %3002 = vmatprep.mubr.f32.mxu0 0.0
    %3003 = vmatmul.mubr.f32.gmra.mxu0 %v2911
    %v3004 = vpop.f32.mrf.mxu0
    %v3005 = vadd.f32 0.0, %v3004
    %v3006 = vpop.f32.mrf.mxu0
    %3007 = vmatprep.mubr.f32.mxu0 0.0
    %3008 = vmatmul.mubr.f32.gmra.mxu0 %v2914
    %v3009 = vpop.f32.mrf.mxu0
    %v3010 = vadd.f32 0.0, %v3009
    %v3011 = vpop.f32.mrf.mxu0
    %3012 = vmatprep.mubr.f32.mxu0 0.0
    %3013 = vmatmul.mubr.f32.gmra.mxu0 %v2917
    %v3014 = vpop.f32.mrf.mxu0
    %v3015 = vadd.f32 0.0, %v3014
    %v3016 = vpop.f32.mrf.mxu0
    %3017 = vmatprep.mubr.f32.mxu0 0.0
    %3018 = vmatmul.mubr.f32.gmra.mxu0 %v2920
    %v3019 = vpop.f32.mrf.mxu0
    %v3020 = vadd.f32 0.0, %v3019
    %v3021 = vpop.f32.mrf.mxu0
    %3022 = vmatprep.mubr.f32.mxu0 0.0
    %3023 = vmatmul.mubr.f32.gmra.mxu0 %v2923
    %v3024 = vpop.f32.mrf.mxu0
    %v3025 = vadd.f32 0.0, %v3024
    %v3026 = vpop.f32.mrf.mxu0
    %3027 = vmatprep.mubr.f32.mxu0 0.0
    %3028 = vmatmul.mubr.f32.gmra.mxu0 %v2926
    %v3029 = vpop.f32.mrf.mxu0
    %v3030 = vadd.f32 0.0, %v3029
    %v3031 = vpop.f32.mrf.mxu0
    %3032 = vdwg.mxu0
    %v3033 = vld [vmem:[%s11] sm:$0xff]
    %3034 = vrot.lane.b32.xlu0 %v2458, 120
    %v3035 = vpop.permute.xlu0 %3034
    %3036 = vrot.lane.b32.xlu0 %v2459, 120
    %v3037 = vpop.permute.xlu0 %3036
    %3038 = vrot.lane.b32.xlu0 %v2460, 120
    %v3039 = vpop.permute.xlu0 %3038
    %3040 = vrot.lane.b32.xlu0 %v2461, 120
    %v3041 = vpop.permute.xlu0 %3040
    %3042 = vrot.lane.b32.xlu0 %v2462, 120
    %v3043 = vpop.permute.xlu0 %3042
    %3044 = vrot.lane.b32.xlu0 %v2463, 120
    %v3045 = vpop.permute.xlu0 %3044
    %3046 = vrot.lane.b32.xlu0 %v2464, 120
    %v3047 = vpop.permute.xlu0 %3046
    %3048 = vrot.lane.b32.xlu0 %v2465, 120
    %v3049 = vpop.permute.xlu0 %3048
    %3050 = vrot.lane.b32.xlu0 %v2577, 120
    %v3051 = vpop.permute.xlu0 %3050
    %3052 = vrot.lane.b32.xlu0 %v2582, 120
    %v3053 = vpop.permute.xlu0 %3052
    %3054 = vrot.lane.b32.xlu0 %v2587, 120
    %v3055 = vpop.permute.xlu0 %3054
    %3056 = vrot.lane.b32.xlu0 %v2592, 120
    %v3057 = vpop.permute.xlu0 %3056
    %3058 = vrot.lane.b32.xlu0 %v2597, 120
    %v3059 = vpop.permute.xlu0 %3058
    %3060 = vrot.lane.b32.xlu0 %v2602, 120
    %v3061 = vpop.permute.xlu0 %3060
    %3062 = vrot.lane.b32.xlu0 %v2607, 120
    %v3063 = vpop.permute.xlu0 %3062
    %3064 = vrot.lane.b32.xlu0 %v2612, 120
    %v3065 = vpop.permute.xlu0 %3064
    %v3066 = vsel %vm241, %v3035, 0
    %v3068 = vsel %vm241, %v3037, 0
    %v3070 = vsel %vm241, %v3039, 0
    %v3072 = vsel %vm241, %v3041, 0
    %v3074 = vsel %vm241, %v3043, 0
    %v3076 = vsel %vm241, %v3045, 0
    %v3078 = vsel %vm241, %v3047, 0
    %v3080 = vsel %vm241, %v3049, 0
    %v3082 = vsel %vm241, %v3051, 0
    %v3084 = vsel %vm241, %v3053, 0
    %v3086 = vsel %vm241, %v3055, 0
    %v3088 = vsel %vm241, %v3057, 0
    %v3090 = vsel %vm241, %v3059, 0
    %v3092 = vsel %vm241, %v3061, 0
    %v3094 = vsel %vm241, %v3063, 0
    %v3096 = vsel %vm241, %v3065, 0
    %3098 = vmatprep.subr.mxu0 0.0
    %3099 = vmatpush1.xpose.msra.mxu0 0.0
    %3100 = vmatprep.subr.mxu0 0.0
    %3101 = vmatpush1.xpose.msra.mxu0 0.0
    %3102 = vmatprep.subr.mxu0 0.0
    %3103 = vmatpush1.xpose.msra.mxu0 0.0
    %3104 = vmatprep.subr.mxu0 0.0
    %3105 = vmatpush1.xpose.msra.mxu0 0.0
    %3106 = vmatprep.subr.mxu0 0.0
    %3107 = vmatpush1.xpose.msra.mxu0 0.0
    %3108 = vmatprep.subr.mxu0 0.0
    %3109 = vmatpush1.xpose.msra.mxu0 0.0
    %3110 = vmatprep.subr.mxu0 0.0
    %3111 = vmatpush1.xpose.msra.mxu0 0.0
    %3112 = vmatprep.subr.mxu0 0.0
    %3113 = vmatpush1.xpose.msra.mxu0 0.0
    %3114 = vmatprep.subr.mxu0 0.0
    %3115 = vmatpush1.xpose.msra.mxu0 %v3096
    %3116 = vmatprep.subr.mxu0 0.0
    %3117 = vmatpush1.xpose.msra.mxu0 %v3094
    %3118 = vmatprep.subr.mxu0 0.0
    %3119 = vmatpush1.xpose.msra.mxu0 %v3092
    %3120 = vmatprep.subr.mxu0 0.0
    %3121 = vmatpush1.xpose.msra.mxu0 %v3090
    %3122 = vmatprep.subr.mxu0 0.0
    %3123 = vmatpush1.xpose.msra.mxu0 %v3088
    %3124 = vmatprep.subr.mxu0 0.0
    %3125 = vmatpush1.xpose.msra.mxu0 %v3086
    %3126 = vmatprep.subr.mxu0 0.0
    %3127 = vmatpush1.xpose.msra.mxu0 %v3084
    %3128 = vmatprep.subr.mxu0 0.0
    %3129 = vmatpush1.xpose.msra.mxu0 %v3082
    %3130 = vmatprep.subr.mxu0 0.0
    %3131 = vmatpush2.xpose.msra.mxu0 0.0
    %3132 = vmatprep.subr.mxu0 0.0
    %3133 = vmatpush2.xpose.msra.mxu0 0.0
    %3134 = vmatprep.subr.mxu0 0.0
    %3135 = vmatpush2.xpose.msra.mxu0 0.0
    %3136 = vmatprep.subr.mxu0 0.0
    %3137 = vmatpush2.xpose.msra.mxu0 0.0
    %3138 = vmatprep.subr.mxu0 0.0
    %3139 = vmatpush2.xpose.msra.mxu0 0.0
    %3140 = vmatprep.subr.mxu0 0.0
    %3141 = vmatpush2.xpose.msra.mxu0 0.0
    %3142 = vmatprep.subr.mxu0 0.0
    %3143 = vmatpush2.xpose.msra.mxu0 0.0
    %3144 = vmatprep.subr.mxu0 0.0
    %3145 = vmatpush2.xpose.msra.mxu0 0.0
    %3146 = vmatprep.subr.mxu0 0.0
    %3147 = vmatpush2.xpose.msra.mxu0 0.0
    %3148 = vmatprep.subr.mxu0 0.0
    %3149 = vmatpush2.xpose.msra.mxu0 0.0
    %3150 = vmatprep.subr.mxu0 0.0
    %3151 = vmatpush2.xpose.msra.mxu0 0.0
    %3152 = vmatprep.subr.mxu0 0.0
    %3153 = vmatpush2.xpose.msra.mxu0 0.0
    %3154 = vmatprep.subr.mxu0 0.0
    %3155 = vmatpush2.xpose.msra.mxu0 0.0
    %3156 = vmatprep.subr.mxu0 0.0
    %3157 = vmatpush2.xpose.msra.mxu0 0.0
    %3158 = vmatprep.subr.mxu0 0.0
    %3159 = vmatpush2.xpose.msra.mxu0 0.0
    %3160 = vmatprep.subr.mxu0 0.0
    %3161 = vmatpush2.xpose.msra.mxu0 0.0
    %3162 = vmatprep.mubr.f32.mxu0 0.0
    %3163 = vmatmul.mubr.f32.gmra.mxu0 %v3066
    %v3164 = vpop.f32.mrf.mxu0
    %v3165 = vadd.f32 0.0, %v3164
    %v3166 = vpop.f32.mrf.mxu0
    %3167 = vmatprep.mubr.f32.mxu0 0.0
    %3168 = vmatmul.mubr.f32.gmra.mxu0 %v3068
    %v3169 = vpop.f32.mrf.mxu0
    %v3170 = vadd.f32 0.0, %v3169
    %v3171 = vpop.f32.mrf.mxu0
    %3172 = vmatprep.mubr.f32.mxu0 0.0
    %3173 = vmatmul.mubr.f32.gmra.mxu0 %v3070
    %v3174 = vpop.f32.mrf.mxu0
    %v3175 = vadd.f32 0.0, %v3174
    %v3176 = vpop.f32.mrf.mxu0
    %3177 = vmatprep.mubr.f32.mxu0 0.0
    %3178 = vmatmul.mubr.f32.gmra.mxu0 %v3072
    %v3179 = vpop.f32.mrf.mxu0
    %v3180 = vadd.f32 0.0, %v3179
    %v3181 = vpop.f32.mrf.mxu0
    %3182 = vmatprep.mubr.f32.mxu0 0.0
    %3183 = vmatmul.mubr.f32.gmra.mxu0 %v3074
    %v3184 = vpop.f32.mrf.mxu0
    %v3185 = vadd.f32 0.0, %v3184
    %v3186 = vpop.f32.mrf.mxu0
    %3187 = vmatprep.mubr.f32.mxu0 0.0
    %3188 = vmatmul.mubr.f32.gmra.mxu0 %v3076
    %v3189 = vpop.f32.mrf.mxu0
    %v3190 = vadd.f32 0.0, %v3189
    %v3191 = vpop.f32.mrf.mxu0
    %3192 = vmatprep.mubr.f32.mxu0 0.0
    %3193 = vmatmul.mubr.f32.gmra.mxu0 %v3078
    %v3194 = vpop.f32.mrf.mxu0
    %v3195 = vadd.f32 0.0, %v3194
    %v3196 = vpop.f32.mrf.mxu0
    %3197 = vmatprep.mubr.f32.mxu0 0.0
    %3198 = vmatmul.mubr.f32.gmra.mxu0 %v3080
    %v3199 = vpop.f32.mrf.mxu0
    %v3200 = vadd.f32 0.0, %v3199
    %v3201 = vpop.f32.mrf.mxu0
    %3202 = vdwg.mxu0
    %v3203 = vmul.f32 %v3165, 0.35355338
    %v3204 = vmul.f32 %v3170, 0.35355338
    %v3205 = vmul.f32 %v3175, 0.35355338
    %v3206 = vmul.f32 %v3180, 0.35355338
    %v3207 = vmul.f32 %v3185, 0.35355338
    %v3208 = vmul.f32 %v3190, 0.35355338
    %v3209 = vmul.f32 %v3195, 0.35355338
    %v3210 = vmul.f32 %v3200, 0.35355338
    %v3211 = vadd.f32 %v3203, %v2615
    %v3212 = vadd.f32 %v3204, %v2616
    %v3213 = vadd.f32 %v3205, %v2617
    %v3214 = vadd.f32 %v3206, %v2618
    %v3215 = vadd.f32 %v3207, %v2619
    %v3216 = vadd.f32 %v3208, %v2620
    %v3217 = vadd.f32 %v3209, %v2621
    %v3218 = vadd.f32 %v3210, %v2622
    %v3219 = vsel %vm395, %v3211, -inf
    %3220 = vmax.xlane.f32.xlu0 %v3219
    %v3221 = vpop.xlane.xlu0 %3220
    %v3222 = vsel %vm395, %v3212, -inf
    %3223 = vmax.xlane.f32.xlu0 %v3222
    %v3224 = vpop.xlane.xlu0 %3223
    %v3225 = vsel %vm395, %v3213, -inf
    %3226 = vmax.xlane.f32.xlu0 %v3225
    %v3227 = vpop.xlane.xlu0 %3226
    %v3228 = vsel %vm395, %v3214, -inf
    %3229 = vmax.xlane.f32.xlu0 %v3228
    %v3230 = vpop.xlane.xlu0 %3229
    %v3231 = vsel %vm395, %v3215, -inf
    %3232 = vmax.xlane.f32.xlu0 %v3231
    %v3233 = vpop.xlane.xlu0 %3232
    %v3234 = vsel %vm395, %v3216, -inf
    %3235 = vmax.xlane.f32.xlu0 %v3234
    %v3236 = vpop.xlane.xlu0 %3235
    %v3237 = vsel %vm395, %v3217, -inf
    %3238 = vmax.xlane.f32.xlu0 %v3237
    %v3239 = vpop.xlane.xlu0 %3238
    %v3240 = vsel %vm395, %v3218, -inf
    %3241 = vmax.xlane.f32.xlu0 %v3240
    %v3242 = vpop.xlane.xlu0 %3241
    %v3243 = vsub.f32 %v3211, %v3221
    %v3244 = vsub.f32 %v3212, %v3224
    %v3245 = vsub.f32 %v3213, %v3227
    %v3246 = vsub.f32 %v3214, %v3230
    %v3247 = vsub.f32 %v3215, %v3233
    %v3248 = vsub.f32 %v3216, %v3236
    %v3249 = vsub.f32 %v3217, %v3239
    %v3250 = vsub.f32 %v3218, %v3242
    %v3251 = vmul.f32 %v3243, 1.442695
    %v3252 = vpow.pop %v3251
    %v3253 = vmul.f32 %v3244, 1.442695
    %v3254 = vpow.pop %v3253
    %v3255 = vmul.f32 %v3245, 1.442695
    %v3256 = vpow.pop %v3255
    %v3257 = vmul.f32 %v3246, 1.442695
    %v3258 = vpow.pop %v3257
    %v3259 = vmul.f32 %v3247, 1.442695
    %v3260 = vpow.pop %v3259
    %v3261 = vmul.f32 %v3248, 1.442695
    %v3262 = vpow.pop %v3261
    %v3263 = vmul.f32 %v3249, 1.442695
    %v3264 = vpow.pop %v3263
    %v3265 = vmul.f32 %v3250, 1.442695
    %v3266 = vpow.pop %v3265
    %v3267 = vsel %vm395, %v3252, 0.0
    %3268 = vadd.xlane.f32.xlu0 %v3267
    %v3269 = vpop.xlane.xlu0 %3268
    %v3270 = vsel %vm395, %v3254, 0.0
    %3271 = vadd.xlane.f32.xlu0 %v3270
    %v3272 = vpop.xlane.xlu0 %3271
    %v3273 = vsel %vm395, %v3256, 0.0
    %3274 = vadd.xlane.f32.xlu0 %v3273
    %v3275 = vpop.xlane.xlu0 %3274
    %v3276 = vsel %vm395, %v3258, 0.0
    %3277 = vadd.xlane.f32.xlu0 %v3276
    %v3278 = vpop.xlane.xlu0 %3277
    %v3279 = vsel %vm395, %v3260, 0.0
    %3280 = vadd.xlane.f32.xlu0 %v3279
    %v3281 = vpop.xlane.xlu0 %3280
    %v3282 = vsel %vm395, %v3262, 0.0
    %3283 = vadd.xlane.f32.xlu0 %v3282
    %v3284 = vpop.xlane.xlu0 %3283
    %v3285 = vsel %vm395, %v3264, 0.0
    %3286 = vadd.xlane.f32.xlu0 %v3285
    %v3287 = vpop.xlane.xlu0 %3286
    %v3288 = vsel %vm395, %v3266, 0.0
    %3289 = vadd.xlane.f32.xlu0 %v3288
    %v3290 = vpop.xlane.xlu0 %3289
    %v3291 = vrcp.pop %v3269
    %v3292 = vrcp.pop %v3272
    %v3293 = vrcp.pop %v3275
    %v3294 = vrcp.pop %v3278
    %v3295 = vrcp.pop %v3281
    %v3296 = vrcp.pop %v3284
    %v3297 = vrcp.pop %v3287
    %v3298 = vrcp.pop %v3290
    %v3299 = vmul.f32 %v3252, %v3291
    %v3300 = vmul.f32 %v3254, %v3292
    %v3301 = vmul.f32 %v3256, %v3293
    %v3302 = vmul.f32 %v3258, %v3294
    %v3303 = vmul.f32 %v3260, %v3295
    %v3304 = vmul.f32 %v3262, %v3296
    %v3305 = vmul.f32 %v3264, %v3297
    %v3306 = vmul.f32 %v3266, %v3298
    %3307 = vrot.lane.b32.xlu0 %v2577, 88
    %v3308 = vpop.permute.xlu0 %3307
    %3309 = vrot.lane.b32.xlu0 %v2582, 88
    %v3310 = vpop.permute.xlu0 %3309
    %3311 = vrot.lane.b32.xlu0 %v2587, 88
    %v3312 = vpop.permute.xlu0 %3311
    %3313 = vrot.lane.b32.xlu0 %v2592, 88
    %v3314 = vpop.permute.xlu0 %3313
    %3315 = vrot.lane.b32.xlu0 %v2597, 88
    %v3316 = vpop.permute.xlu0 %3315
    %3317 = vrot.lane.b32.xlu0 %v2602, 88
    %v3318 = vpop.permute.xlu0 %3317
    %3319 = vrot.lane.b32.xlu0 %v2607, 88
    %v3320 = vpop.permute.xlu0 %3319
    %3321 = vrot.lane.b32.xlu0 %v2612, 88
    %v3322 = vpop.permute.xlu0 %3321
    %v3332 = vsel %vm395, %v3299, 0
    %v3335 = vsel %vm395, %v3300, 0
    %v3338 = vsel %vm395, %v3301, 0
    %v3341 = vsel %vm395, %v3302, 0
    %v3344 = vsel %vm395, %v3303, 0
    %v3347 = vsel %vm395, %v3304, 0
    %v3350 = vsel %vm395, %v3305, 0
    %v3353 = vsel %vm395, %v3306, 0
    %3355 = vmatprep.subr.mxu0 0.0
    %3356 = vmatpush1.msra.mxu0 0.0
    %3357 = vmatprep.subr.mxu0 0.0
    %3358 = vmatpush1.msra.mxu0 0.0
    %3359 = vmatprep.subr.mxu0 0.0
    %3360 = vmatpush1.msra.mxu0 0.0
    %3361 = vmatprep.subr.mxu0 0.0
    %3362 = vmatpush1.msra.mxu0 0.0
    %3363 = vmatprep.subr.mxu0 0.0
    %3364 = vmatpush1.msra.mxu0 0.0
    %3365 = vmatprep.subr.mxu0 0.0
    %3366 = vmatpush1.msra.mxu0 0.0
    %3367 = vmatprep.subr.mxu0 0.0
    %3368 = vmatpush1.msra.mxu0 0.0
    %3369 = vmatprep.subr.mxu0 0.0
    %3370 = vmatpush1.msra.mxu0 0.0
    %3371 = vmatprep.subr.mxu0 0.0
    %3372 = vmatpush1.msra.mxu0 %v3322
    %3373 = vmatprep.subr.mxu0 0.0
    %3374 = vmatpush1.msra.mxu0 %v3320
    %3375 = vmatprep.subr.mxu0 0.0
    %3376 = vmatpush1.msra.mxu0 %v3318
    %3377 = vmatprep.subr.mxu0 0.0
    %3378 = vmatpush1.msra.mxu0 %v3316
    %3379 = vmatprep.subr.mxu0 0.0
    %3380 = vmatpush1.msra.mxu0 %v3314
    %3381 = vmatprep.subr.mxu0 0.0
    %3382 = vmatpush1.msra.mxu0 %v3312
    %3383 = vmatprep.subr.mxu0 0.0
    %3384 = vmatpush1.msra.mxu0 %v3310
    %3385 = vmatprep.subr.mxu0 0.0
    %3386 = vmatpush1.msra.mxu0 %v3308
    %3387 = vmatprep.subr.mxu0 0.0
    %3388 = vmatpush2.msra.mxu0 0.0
    %3389 = vmatprep.subr.mxu0 0.0
    %3390 = vmatpush2.msra.mxu0 0.0
    %3391 = vmatprep.subr.mxu0 0.0
    %3392 = vmatpush2.msra.mxu0 0.0
    %3393 = vmatprep.subr.mxu0 0.0
    %3394 = vmatpush2.msra.mxu0 0.0
    %3395 = vmatprep.subr.mxu0 0.0
    %3396 = vmatpush2.msra.mxu0 0.0
    %3397 = vmatprep.subr.mxu0 0.0
    %3398 = vmatpush2.msra.mxu0 0.0
    %3399 = vmatprep.subr.mxu0 0.0
    %3400 = vmatpush2.msra.mxu0 0.0
    %3401 = vmatprep.subr.mxu0 0.0
    %3402 = vmatpush2.msra.mxu0 0.0
    %3403 = vmatprep.subr.mxu0 0.0
    %3404 = vmatpush2.msra.mxu0 0.0
    %3405 = vmatprep.subr.mxu0 0.0
    %3406 = vmatpush2.msra.mxu0 0.0
    %3407 = vmatprep.subr.mxu0 0.0
    %3408 = vmatpush2.msra.mxu0 0.0
    %3409 = vmatprep.subr.mxu0 0.0
    %3410 = vmatpush2.msra.mxu0 0.0
    %3411 = vmatprep.subr.mxu0 0.0
    %3412 = vmatpush2.msra.mxu0 0.0
    %3413 = vmatprep.subr.mxu0 0.0
    %3414 = vmatpush2.msra.mxu0 0.0
    %3415 = vmatprep.subr.mxu0 0.0
    %3416 = vmatpush2.msra.mxu0 0.0
    %3417 = vmatprep.subr.mxu0 0.0
    %3418 = vmatpush2.msra.mxu0 0.0
    %3419 = vmatprep.mubr.f32.mxu0 0.0
    %3420 = vmatmul.mubr.f32.gmra.mxu0 %v3332
    %v3421 = vpop.f32.mrf.mxu0
    %v3422 = vadd.f32 0.0, %v3421
    %v3423 = vpop.f32.mrf.mxu0
    %3424 = vmatprep.mubr.f32.mxu0 0.0
    %3425 = vmatmul.mubr.f32.gmra.mxu0 %v3335
    %v3426 = vpop.f32.mrf.mxu0
    %v3427 = vadd.f32 0.0, %v3426
    %v3428 = vpop.f32.mrf.mxu0
    %3429 = vmatprep.mubr.f32.mxu0 0.0
    %3430 = vmatmul.mubr.f32.gmra.mxu0 %v3338
    %v3431 = vpop.f32.mrf.mxu0
    %v3432 = vadd.f32 0.0, %v3431
    %v3433 = vpop.f32.mrf.mxu0
    %3434 = vmatprep.mubr.f32.mxu0 0.0
    %3435 = vmatmul.mubr.f32.gmra.mxu0 %v3341
    %v3436 = vpop.f32.mrf.mxu0
    %v3437 = vadd.f32 0.0, %v3436
    %v3438 = vpop.f32.mrf.mxu0
    %3439 = vmatprep.mubr.f32.mxu0 0.0
    %3440 = vmatmul.mubr.f32.gmra.mxu0 %v3344
    %v3441 = vpop.f32.mrf.mxu0
    %v3442 = vadd.f32 0.0, %v3441
    %v3443 = vpop.f32.mrf.mxu0
    %3444 = vmatprep.mubr.f32.mxu0 0.0
    %3445 = vmatmul.mubr.f32.gmra.mxu0 %v3347
    %v3446 = vpop.f32.mrf.mxu0
    %v3447 = vadd.f32 0.0, %v3446
    %v3448 = vpop.f32.mrf.mxu0
    %3449 = vmatprep.mubr.f32.mxu0 0.0
    %3450 = vmatmul.mubr.f32.gmra.mxu0 %v3350
    %v3451 = vpop.f32.mrf.mxu0
    %v3452 = vadd.f32 0.0, %v3451
    %v3453 = vpop.f32.mrf.mxu0
    %3454 = vmatprep.mubr.f32.mxu0 0.0
    %3455 = vmatmul.mubr.f32.gmra.mxu0 %v3353
    %v3456 = vpop.f32.mrf.mxu0
    %v3457 = vadd.f32 0.0, %v3456
    %v3458 = vpop.f32.mrf.mxu0
    %3459 = vdwg.mxu0
    %v3460 = vld [vmem:[%s11 + $0x8] sm:$0xff]
    %v3462 = vsel %vm241, %v3422, 0
    %v3465 = vsel %vm241, %v3427, 0
    %v3468 = vsel %vm241, %v3432, 0
    %v3471 = vsel %vm241, %v3437, 0
    %v3474 = vsel %vm241, %v3442, 0
    %v3477 = vsel %vm241, %v3447, 0
    %v3480 = vsel %vm241, %v3452, 0
    %v3483 = vsel %vm241, %v3457, 0
    %3485 = vmatprep.subr.mxu0 0.0
    %3486 = vmatpush1.msra.mxu0 0.0
    %3487 = vmatprep.subr.mxu0 0.0
    %3488 = vmatpush1.msra.mxu0 0.0
    %3489 = vmatprep.subr.mxu0 0.0
    %3490 = vmatpush1.msra.mxu0 0.0
    %3491 = vmatprep.subr.mxu0 0.0
    %3492 = vmatpush1.msra.mxu0 0.0
    %3493 = vmatprep.subr.mxu0 0.0
    %3494 = vmatpush1.msra.mxu0 0.0
    %3495 = vmatprep.subr.mxu0 0.0
    %3496 = vmatpush1.msra.mxu0 0.0
    %3497 = vmatprep.subr.mxu0 0.0
    %3498 = vmatpush1.msra.mxu0 0.0
    %3499 = vmatprep.subr.mxu0 0.0
    %3500 = vmatpush1.msra.mxu0 0.0
    %3501 = vmatprep.subr.mxu0 0.0
    %3502 = vmatpush1.msra.mxu0 0.0
    %3503 = vmatprep.subr.mxu0 0.0
    %3504 = vmatpush1.msra.mxu0 0.0
    %3505 = vmatprep.subr.mxu0 0.0
    %3506 = vmatpush1.msra.mxu0 0.0
    %3507 = vmatprep.subr.mxu0 0.0
    %3508 = vmatpush1.msra.mxu0 0.0
    %3509 = vmatprep.subr.mxu0 0.0
    %3510 = vmatpush1.msra.mxu0 0.0
    %3511 = vmatprep.subr.mxu0 0.0
    %3512 = vmatpush1.msra.mxu0 0.0
    %3513 = vmatprep.subr.mxu0 0.0
    %3514 = vmatpush1.msra.mxu0 0.0
    %3515 = vmatprep.subr.mxu0 0.0
    %3516 = vmatpush1.msra.mxu0 %v3460
    %3517 = vmatprep.subr.mxu0 0.0
    %3518 = vmatpush2.msra.mxu0 0.0
    %3519 = vmatprep.subr.mxu0 0.0
    %3520 = vmatpush2.msra.mxu0 0.0
    %3521 = vmatprep.subr.mxu0 0.0
    %3522 = vmatpush2.msra.mxu0 0.0
    %3523 = vmatprep.subr.mxu0 0.0
    %3524 = vmatpush2.msra.mxu0 0.0
    %3525 = vmatprep.subr.mxu0 0.0
    %3526 = vmatpush2.msra.mxu0 0.0
    %3527 = vmatprep.subr.mxu0 0.0
    %3528 = vmatpush2.msra.mxu0 0.0
    %3529 = vmatprep.subr.mxu0 0.0
    %3530 = vmatpush2.msra.mxu0 0.0
    %3531 = vmatprep.subr.mxu0 0.0
    %3532 = vmatpush2.msra.mxu0 0.0
    %3533 = vmatprep.subr.mxu0 0.0
    %3534 = vmatpush2.msra.mxu0 0.0
    %3535 = vmatprep.subr.mxu0 0.0
    %3536 = vmatpush2.msra.mxu0 0.0
    %3537 = vmatprep.subr.mxu0 0.0
    %3538 = vmatpush2.msra.mxu0 0.0
    %3539 = vmatprep.subr.mxu0 0.0
    %3540 = vmatpush2.msra.mxu0 0.0
    %3541 = vmatprep.subr.mxu0 0.0
    %3542 = vmatpush2.msra.mxu0 0.0
    %3543 = vmatprep.subr.mxu0 0.0
    %3544 = vmatpush2.msra.mxu0 0.0
    %3545 = vmatprep.subr.mxu0 0.0
    %3546 = vmatpush2.msra.mxu0 0.0
    %3547 = vmatprep.subr.mxu0 0.0
    %3548 = vmatpush2.msra.mxu0 0.0
    %3549 = vmatprep.mubr.f32.mxu0 0.0
    %3550 = vmatmul.mubr.f32.gmra.mxu0 %v3462
    %v3551 = vpop.f32.mrf.mxu0
    %v3552 = vadd.f32 0.0, %v3551
    %v3553 = vpop.f32.mrf.mxu0
    %3554 = vmatprep.mubr.f32.mxu0 0.0
    %3555 = vmatmul.mubr.f32.gmra.mxu0 %v3465
    %v3556 = vpop.f32.mrf.mxu0
    %v3557 = vadd.f32 0.0, %v3556
    %v3558 = vpop.f32.mrf.mxu0
    %3559 = vmatprep.mubr.f32.mxu0 0.0
    %3560 = vmatmul.mubr.f32.gmra.mxu0 %v3468
    %v3561 = vpop.f32.mrf.mxu0
    %v3562 = vadd.f32 0.0, %v3561
    %v3563 = vpop.f32.mrf.mxu0
    %3564 = vmatprep.mubr.f32.mxu0 0.0
    %3565 = vmatmul.mubr.f32.gmra.mxu0 %v3471
    %v3566 = vpop.f32.mrf.mxu0
    %v3567 = vadd.f32 0.0, %v3566
    %v3568 = vpop.f32.mrf.mxu0
    %3569 = vmatprep.mubr.f32.mxu0 0.0
    %3570 = vmatmul.mubr.f32.gmra.mxu0 %v3474
    %v3571 = vpop.f32.mrf.mxu0
    %v3572 = vadd.f32 0.0, %v3571
    %v3573 = vpop.f32.mrf.mxu0
    %3574 = vmatprep.mubr.f32.mxu0 0.0
    %3575 = vmatmul.mubr.f32.gmra.mxu0 %v3477
    %v3576 = vpop.f32.mrf.mxu0
    %v3577 = vadd.f32 0.0, %v3576
    %v3578 = vpop.f32.mrf.mxu0
    %3579 = vmatprep.mubr.f32.mxu0 0.0
    %3580 = vmatmul.mubr.f32.gmra.mxu0 %v3480
    %v3581 = vpop.f32.mrf.mxu0
    %v3582 = vadd.f32 0.0, %v3581
    %v3583 = vpop.f32.mrf.mxu0
    %3584 = vmatprep.mubr.f32.mxu0 0.0
    %3585 = vmatmul.mubr.f32.gmra.mxu0 %v3483
    %v3586 = vpop.f32.mrf.mxu0
    %v3587 = vadd.f32 0.0, %v3586
    %v3588 = vpop.f32.mrf.mxu0
    %3589 = vdwg.mxu0
    %v3591 = vsel %vm241, %v2995, 0
    %v3594 = vsel %vm241, %v3000, 0
    %v3597 = vsel %vm241, %v3005, 0
    %v3600 = vsel %vm241, %v3010, 0
    %v3603 = vsel %vm241, %v3015, 0
    %v3606 = vsel %vm241, %v3020, 0
    %v3609 = vsel %vm241, %v3025, 0
    %v3612 = vsel %vm241, %v3030, 0
    %3614 = vmatprep.subr.mxu0 0.0
    %3615 = vmatpush1.msra.mxu0 0.0
    %3616 = vmatprep.subr.mxu0 0.0
    %3617 = vmatpush1.msra.mxu0 0.0
    %3618 = vmatprep.subr.mxu0 0.0
    %3619 = vmatpush1.msra.mxu0 0.0
    %3620 = vmatprep.subr.mxu0 0.0
    %3621 = vmatpush1.msra.mxu0 0.0
    %3622 = vmatprep.subr.mxu0 0.0
    %3623 = vmatpush1.msra.mxu0 0.0
    %3624 = vmatprep.subr.mxu0 0.0
    %3625 = vmatpush1.msra.mxu0 0.0
    %3626 = vmatprep.subr.mxu0 0.0
    %3627 = vmatpush1.msra.mxu0 0.0
    %3628 = vmatprep.subr.mxu0 0.0
    %3629 = vmatpush1.msra.mxu0 0.0
    %3630 = vmatprep.subr.mxu0 0.0
    %3631 = vmatpush1.msra.mxu0 0.0
    %3632 = vmatprep.subr.mxu0 0.0
    %3633 = vmatpush1.msra.mxu0 0.0
    %3634 = vmatprep.subr.mxu0 0.0
    %3635 = vmatpush1.msra.mxu0 0.0
    %3636 = vmatprep.subr.mxu0 0.0
    %3637 = vmatpush1.msra.mxu0 0.0
    %3638 = vmatprep.subr.mxu0 0.0
    %3639 = vmatpush1.msra.mxu0 0.0
    %3640 = vmatprep.subr.mxu0 0.0
    %3641 = vmatpush1.msra.mxu0 0.0
    %3642 = vmatprep.subr.mxu0 0.0
    %3643 = vmatpush1.msra.mxu0 0.0
    %3644 = vmatprep.subr.mxu0 0.0
    %3645 = vmatpush1.msra.mxu0 %v3033
    %3646 = vmatprep.subr.mxu0 0.0
    %3647 = vmatpush2.msra.mxu0 0.0
    %3648 = vmatprep.subr.mxu0 0.0
    %3649 = vmatpush2.msra.mxu0 0.0
    %3650 = vmatprep.subr.mxu0 0.0
    %3651 = vmatpush2.msra.mxu0 0.0
    %3652 = vmatprep.subr.mxu0 0.0
    %3653 = vmatpush2.msra.mxu0 0.0
    %3654 = vmatprep.subr.mxu0 0.0
    %3655 = vmatpush2.msra.mxu0 0.0
    %3656 = vmatprep.subr.mxu0 0.0
    %3657 = vmatpush2.msra.mxu0 0.0
    %3658 = vmatprep.subr.mxu0 0.0
    %3659 = vmatpush2.msra.mxu0 0.0
    %3660 = vmatprep.subr.mxu0 0.0
    %3661 = vmatpush2.msra.mxu0 0.0
    %3662 = vmatprep.subr.mxu0 0.0
    %3663 = vmatpush2.msra.mxu0 0.0
    %3664 = vmatprep.subr.mxu0 0.0
    %3665 = vmatpush2.msra.mxu0 0.0
    %3666 = vmatprep.subr.mxu0 0.0
    %3667 = vmatpush2.msra.mxu0 0.0
    %3668 = vmatprep.subr.mxu0 0.0
    %3669 = vmatpush2.msra.mxu0 0.0
    %3670 = vmatprep.subr.mxu0 0.0
    %3671 = vmatpush2.msra.mxu0 0.0
    %3672 = vmatprep.subr.mxu0 0.0
    %3673 = vmatpush2.msra.mxu0 0.0
    %3674 = vmatprep.subr.mxu0 0.0
    %3675 = vmatpush2.msra.mxu0 0.0
    %3676 = vmatprep.subr.mxu0 0.0
    %3677 = vmatpush2.msra.mxu0 0.0
    %3678 = vmatprep.mubr.f32.mxu0 0.0
    %3679 = vmatmul.mubr.f32.gmra.mxu0 %v3591
    %v3680 = vpop.f32.mrf.mxu0
    %v3681 = vadd.f32 %v3552, %v3680
    %v3682 = vpop.f32.mrf.mxu0
    %3683 = vmatprep.mubr.f32.mxu0 0.0
    %3684 = vmatmul.mubr.f32.gmra.mxu0 %v3594
    %v3685 = vpop.f32.mrf.mxu0
    %v3686 = vadd.f32 %v3557, %v3685
    %v3687 = vpop.f32.mrf.mxu0
    %3688 = vmatprep.mubr.f32.mxu0 0.0
    %3689 = vmatmul.mubr.f32.gmra.mxu0 %v3597
    %v3690 = vpop.f32.mrf.mxu0
    %v3691 = vadd.f32 %v3562, %v3690
    %v3692 = vpop.f32.mrf.mxu0
    %3693 = vmatprep.mubr.f32.mxu0 0.0
    %3694 = vmatmul.mubr.f32.gmra.mxu0 %v3600
    %v3695 = vpop.f32.mrf.mxu0
    %v3696 = vadd.f32 %v3567, %v3695
    %v3697 = vpop.f32.mrf.mxu0
    %3698 = vmatprep.mubr.f32.mxu0 0.0
    %3699 = vmatmul.mubr.f32.gmra.mxu0 %v3603
    %v3700 = vpop.f32.mrf.mxu0
    %v3701 = vadd.f32 %v3572, %v3700
    %v3702 = vpop.f32.mrf.mxu0
    %3703 = vmatprep.mubr.f32.mxu0 0.0
    %3704 = vmatmul.mubr.f32.gmra.mxu0 %v3606
    %v3705 = vpop.f32.mrf.mxu0
    %v3706 = vadd.f32 %v3577, %v3705
    %v3707 = vpop.f32.mrf.mxu0
    %3708 = vmatprep.mubr.f32.mxu0 0.0
    %3709 = vmatmul.mubr.f32.gmra.mxu0 %v3609
    %v3710 = vpop.f32.mrf.mxu0
    %v3711 = vadd.f32 %v3582, %v3710
    %v3712 = vpop.f32.mrf.mxu0
    %3713 = vmatprep.mubr.f32.mxu0 0.0
    %3714 = vmatmul.mubr.f32.gmra.mxu0 %v3612
    %v3715 = vpop.f32.mrf.mxu0
    %v3716 = vadd.f32 %v3587, %v3715
    %v3717 = vpop.f32.mrf.mxu0
    %3718 = vdwg.mxu0
    %3719 = vrot.lane.b32.xlu0 %v2458, 112
    %v3720 = vpop.permute.xlu0 %3719
    %3721 = vrot.lane.b32.xlu0 %v2459, 112
    %v3722 = vpop.permute.xlu0 %3721
    %3723 = vrot.lane.b32.xlu0 %v2460, 112
    %v3724 = vpop.permute.xlu0 %3723
    %3725 = vrot.lane.b32.xlu0 %v2461, 112
    %v3726 = vpop.permute.xlu0 %3725
    %3727 = vrot.lane.b32.xlu0 %v2462, 112
    %v3728 = vpop.permute.xlu0 %3727
    %3729 = vrot.lane.b32.xlu0 %v2463, 112
    %v3730 = vpop.permute.xlu0 %3729
    %3731 = vrot.lane.b32.xlu0 %v2464, 112
    %v3732 = vpop.permute.xlu0 %3731
    %3733 = vrot.lane.b32.xlu0 %v2465, 112
    %v3734 = vpop.permute.xlu0 %3733
    %3735 = vrot.lane.b32.xlu0 %v2577, 112
    %v3736 = vpop.permute.xlu0 %3735
    %3737 = vrot.lane.b32.xlu0 %v2582, 112
    %v3738 = vpop.permute.xlu0 %3737
    %3739 = vrot.lane.b32.xlu0 %v2587, 112
    %v3740 = vpop.permute.xlu0 %3739
    %3741 = vrot.lane.b32.xlu0 %v2592, 112
    %v3742 = vpop.permute.xlu0 %3741
    %3743 = vrot.lane.b32.xlu0 %v2597, 112
    %v3744 = vpop.permute.xlu0 %3743
    %3745 = vrot.lane.b32.xlu0 %v2602, 112
    %v3746 = vpop.permute.xlu0 %3745
    %3747 = vrot.lane.b32.xlu0 %v2607, 112
    %v3748 = vpop.permute.xlu0 %3747
    %3749 = vrot.lane.b32.xlu0 %v2612, 112
    %v3750 = vpop.permute.xlu0 %3749
    %v3751 = vsel %vm241, %v3720, 0
    %v3753 = vsel %vm241, %v3722, 0
    %v3755 = vsel %vm241, %v3724, 0
    %v3757 = vsel %vm241, %v3726, 0
    %v3759 = vsel %vm241, %v3728, 0
    %v3761 = vsel %vm241, %v3730, 0
    %v3763 = vsel %vm241, %v3732, 0
    %v3765 = vsel %vm241, %v3734, 0
    %v3767 = vsel %vm241, %v3736, 0
    %v3769 = vsel %vm241, %v3738, 0
    %v3771 = vsel %vm241, %v3740, 0
    %v3773 = vsel %vm241, %v3742, 0
    %v3775 = vsel %vm241, %v3744, 0
    %v3777 = vsel %vm241, %v3746, 0
    %v3779 = vsel %vm241, %v3748, 0
    %v3781 = vsel %vm241, %v3750, 0
    %3783 = vmatprep.subr.mxu0 0.0
    %3784 = vmatpush1.xpose.msra.mxu0 0.0
    %3785 = vmatprep.subr.mxu0 0.0
    %3786 = vmatpush1.xpose.msra.mxu0 0.0
    %3787 = vmatprep.subr.mxu0 0.0
    %3788 = vmatpush1.xpose.msra.mxu0 0.0
    %3789 = vmatprep.subr.mxu0 0.0
    %3790 = vmatpush1.xpose.msra.mxu0 0.0
    %3791 = vmatprep.subr.mxu0 0.0
    %3792 = vmatpush1.xpose.msra.mxu0 0.0
    %3793 = vmatprep.subr.mxu0 0.0
    %3794 = vmatpush1.xpose.msra.mxu0 0.0
    %3795 = vmatprep.subr.mxu0 0.0
    %3796 = vmatpush1.xpose.msra.mxu0 0.0
    %3797 = vmatprep.subr.mxu0 0.0
    %3798 = vmatpush1.xpose.msra.mxu0 0.0
    %3799 = vmatprep.subr.mxu0 0.0
    %3800 = vmatpush1.xpose.msra.mxu0 %v3781
    %3801 = vmatprep.subr.mxu0 0.0
    %3802 = vmatpush1.xpose.msra.mxu0 %v3779
    %3803 = vmatprep.subr.mxu0 0.0
    %3804 = vmatpush1.xpose.msra.mxu0 %v3777
    %3805 = vmatprep.subr.mxu0 0.0
    %3806 = vmatpush1.xpose.msra.mxu0 %v3775
    %3807 = vmatprep.subr.mxu0 0.0
    %3808 = vmatpush1.xpose.msra.mxu0 %v3773
    %3809 = vmatprep.subr.mxu0 0.0
    %3810 = vmatpush1.xpose.msra.mxu0 %v3771
    %3811 = vmatprep.subr.mxu0 0.0
    %3812 = vmatpush1.xpose.msra.mxu0 %v3769
    %3813 = vmatprep.subr.mxu0 0.0
    %3814 = vmatpush1.xpose.msra.mxu0 %v3767
    %3815 = vmatprep.subr.mxu0 0.0
    %3816 = vmatpush2.xpose.msra.mxu0 0.0
    %3817 = vmatprep.subr.mxu0 0.0
    %3818 = vmatpush2.xpose.msra.mxu0 0.0
    %3819 = vmatprep.subr.mxu0 0.0
    %3820 = vmatpush2.xpose.msra.mxu0 0.0
    %3821 = vmatprep.subr.mxu0 0.0
    %3822 = vmatpush2.xpose.msra.mxu0 0.0
    %3823 = vmatprep.subr.mxu0 0.0
    %3824 = vmatpush2.xpose.msra.mxu0 0.0
    %3825 = vmatprep.subr.mxu0 0.0
    %3826 = vmatpush2.xpose.msra.mxu0 0.0
    %3827 = vmatprep.subr.mxu0 0.0
    %3828 = vmatpush2.xpose.msra.mxu0 0.0
    %3829 = vmatprep.subr.mxu0 0.0
    %3830 = vmatpush2.xpose.msra.mxu0 0.0
    %3831 = vmatprep.subr.mxu0 0.0
    %3832 = vmatpush2.xpose.msra.mxu0 0.0
    %3833 = vmatprep.subr.mxu0 0.0
    %3834 = vmatpush2.xpose.msra.mxu0 0.0
    %3835 = vmatprep.subr.mxu0 0.0
    %3836 = vmatpush2.xpose.msra.mxu0 0.0
    %3837 = vmatprep.subr.mxu0 0.0
    %3838 = vmatpush2.xpose.msra.mxu0 0.0
    %3839 = vmatprep.subr.mxu0 0.0
    %3840 = vmatpush2.xpose.msra.mxu0 0.0
    %3841 = vmatprep.subr.mxu0 0.0
    %3842 = vmatpush2.xpose.msra.mxu0 0.0
    %3843 = vmatprep.subr.mxu0 0.0
    %3844 = vmatpush2.xpose.msra.mxu0 0.0
    %3845 = vmatprep.subr.mxu0 0.0
    %3846 = vmatpush2.xpose.msra.mxu0 0.0
    %3847 = vmatprep.mubr.f32.mxu0 0.0
    %3848 = vmatmul.mubr.f32.gmra.mxu0 %v3751
    %v3849 = vpop.f32.mrf.mxu0
    %v3850 = vadd.f32 0.0, %v3849
    %v3851 = vpop.f32.mrf.mxu0
    %3852 = vmatprep.mubr.f32.mxu0 0.0
    %3853 = vmatmul.mubr.f32.gmra.mxu0 %v3753
    %v3854 = vpop.f32.mrf.mxu0
    %v3855 = vadd.f32 0.0, %v3854
    %v3856 = vpop.f32.mrf.mxu0
    %3857 = vmatprep.mubr.f32.mxu0 0.0
    %3858 = vmatmul.mubr.f32.gmra.mxu0 %v3755
    %v3859 = vpop.f32.mrf.mxu0
    %v3860 = vadd.f32 0.0, %v3859
    %v3861 = vpop.f32.mrf.mxu0
    %3862 = vmatprep.mubr.f32.mxu0 0.0
    %3863 = vmatmul.mubr.f32.gmra.mxu0 %v3757
    %v3864 = vpop.f32.mrf.mxu0
    %v3865 = vadd.f32 0.0, %v3864
    %v3866 = vpop.f32.mrf.mxu0
    %3867 = vmatprep.mubr.f32.mxu0 0.0
    %3868 = vmatmul.mubr.f32.gmra.mxu0 %v3759
    %v3869 = vpop.f32.mrf.mxu0
    %v3870 = vadd.f32 0.0, %v3869
    %v3871 = vpop.f32.mrf.mxu0
    %3872 = vmatprep.mubr.f32.mxu0 0.0
    %3873 = vmatmul.mubr.f32.gmra.mxu0 %v3761
    %v3874 = vpop.f32.mrf.mxu0
    %v3875 = vadd.f32 0.0, %v3874
    %v3876 = vpop.f32.mrf.mxu0
    %3877 = vmatprep.mubr.f32.mxu0 0.0
    %3878 = vmatmul.mubr.f32.gmra.mxu0 %v3763
    %v3879 = vpop.f32.mrf.mxu0
    %v3880 = vadd.f32 0.0, %v3879
    %v3881 = vpop.f32.mrf.mxu0
    %3882 = vmatprep.mubr.f32.mxu0 0.0
    %3883 = vmatmul.mubr.f32.gmra.mxu0 %v3765
    %v3884 = vpop.f32.mrf.mxu0
    %v3885 = vadd.f32 0.0, %v3884
    %v3886 = vpop.f32.mrf.mxu0
    %3887 = vdwg.mxu0
    %v3888 = vmul.f32 %v3850, 0.35355338
    %v3889 = vmul.f32 %v3855, 0.35355338
    %v3890 = vmul.f32 %v3860, 0.35355338
    %v3891 = vmul.f32 %v3865, 0.35355338
    %v3892 = vmul.f32 %v3870, 0.35355338
    %v3893 = vmul.f32 %v3875, 0.35355338
    %v3894 = vmul.f32 %v3880, 0.35355338
    %v3895 = vmul.f32 %v3885, 0.35355338
    %v3896 = vadd.f32 %v3888, %v2615
    %v3897 = vadd.f32 %v3889, %v2616
    %v3898 = vadd.f32 %v3890, %v2617
    %v3899 = vadd.f32 %v3891, %v2618
    %v3900 = vadd.f32 %v3892, %v2619
    %v3901 = vadd.f32 %v3893, %v2620
    %v3902 = vadd.f32 %v3894, %v2621
    %v3903 = vadd.f32 %v3895, %v2622
    %v3904 = vsel %vm395, %v3896, -inf
    %3905 = vmax.xlane.f32.xlu0 %v3904
    %v3906 = vpop.xlane.xlu0 %3905
    %v3907 = vsel %vm395, %v3897, -inf
    %3908 = vmax.xlane.f32.xlu0 %v3907
    %v3909 = vpop.xlane.xlu0 %3908
    %v3910 = vsel %vm395, %v3898, -inf
    %3911 = vmax.xlane.f32.xlu0 %v3910
    %v3912 = vpop.xlane.xlu0 %3911
    %v3913 = vsel %vm395, %v3899, -inf
    %3914 = vmax.xlane.f32.xlu0 %v3913
    %v3915 = vpop.xlane.xlu0 %3914
    %v3916 = vsel %vm395, %v3900, -inf
    %3917 = vmax.xlane.f32.xlu0 %v3916
    %v3918 = vpop.xlane.xlu0 %3917
    %v3919 = vsel %vm395, %v3901, -inf
    %3920 = vmax.xlane.f32.xlu0 %v3919
    %v3921 = vpop.xlane.xlu0 %3920
    %v3922 = vsel %vm395, %v3902, -inf
    %3923 = vmax.xlane.f32.xlu0 %v3922
    %v3924 = vpop.xlane.xlu0 %3923
    %v3925 = vsel %vm395, %v3903, -inf
    %3926 = vmax.xlane.f32.xlu0 %v3925
    %v3927 = vpop.xlane.xlu0 %3926
    %v3928 = vsub.f32 %v3896, %v3906
    %v3929 = vsub.f32 %v3897, %v3909
    %v3930 = vsub.f32 %v3898, %v3912
    %v3931 = vsub.f32 %v3899, %v3915
    %v3932 = vsub.f32 %v3900, %v3918
    %v3933 = vsub.f32 %v3901, %v3921
    %v3934 = vsub.f32 %v3902, %v3924
    %v3935 = vsub.f32 %v3903, %v3927
    %v3936 = vmul.f32 %v3928, 1.442695
    %v3937 = vpow.pop %v3936
    %v3938 = vmul.f32 %v3929, 1.442695
    %v3939 = vpow.pop %v3938
    %v3940 = vmul.f32 %v3930, 1.442695
    %v3941 = vpow.pop %v3940
    %v3942 = vmul.f32 %v3931, 1.442695
    %v3943 = vpow.pop %v3942
    %v3944 = vmul.f32 %v3932, 1.442695
    %v3945 = vpow.pop %v3944
    %v3946 = vmul.f32 %v3933, 1.442695
    %v3947 = vpow.pop %v3946
    %v3948 = vmul.f32 %v3934, 1.442695
    %v3949 = vpow.pop %v3948
    %v3950 = vmul.f32 %v3935, 1.442695
    %v3951 = vpow.pop %v3950
    %v3952 = vsel %vm395, %v3937, 0.0
    %3953 = vadd.xlane.f32.xlu0 %v3952
    %v3954 = vpop.xlane.xlu0 %3953
    %v3955 = vsel %vm395, %v3939, 0.0
    %3956 = vadd.xlane.f32.xlu0 %v3955
    %v3957 = vpop.xlane.xlu0 %3956
    %v3958 = vsel %vm395, %v3941, 0.0
    %3959 = vadd.xlane.f32.xlu0 %v3958
    %v3960 = vpop.xlane.xlu0 %3959
    %v3961 = vsel %vm395, %v3943, 0.0
    %3962 = vadd.xlane.f32.xlu0 %v3961
    %v3963 = vpop.xlane.xlu0 %3962
    %v3964 = vsel %vm395, %v3945, 0.0
    %3965 = vadd.xlane.f32.xlu0 %v3964
    %v3966 = vpop.xlane.xlu0 %3965
    %v3967 = vsel %vm395, %v3947, 0.0
    %3968 = vadd.xlane.f32.xlu0 %v3967
    %v3969 = vpop.xlane.xlu0 %3968
    %v3970 = vsel %vm395, %v3949, 0.0
    %3971 = vadd.xlane.f32.xlu0 %v3970
    %v3972 = vpop.xlane.xlu0 %3971
    %v3973 = vsel %vm395, %v3951, 0.0
    %3974 = vadd.xlane.f32.xlu0 %v3973
    %v3975 = vpop.xlane.xlu0 %3974
    %v3976 = vrcp.pop %v3954
    %v3977 = vrcp.pop %v3957
    %v3978 = vrcp.pop %v3960
    %v3979 = vrcp.pop %v3963
    %v3980 = vrcp.pop %v3966
    %v3981 = vrcp.pop %v3969
    %v3982 = vrcp.pop %v3972
    %v3983 = vrcp.pop %v3975
    %v3984 = vmul.f32 %v3937, %v3976
    %v3985 = vmul.f32 %v3939, %v3977
    %v3986 = vmul.f32 %v3941, %v3978
    %v3987 = vmul.f32 %v3943, %v3979
    %v3988 = vmul.f32 %v3945, %v3980
    %v3989 = vmul.f32 %v3947, %v3981
    %v3990 = vmul.f32 %v3949, %v3982
    %v3991 = vmul.f32 %v3951, %v3983
    %3992 = vrot.lane.b32.xlu0 %v2577, 80
    %v3993 = vpop.permute.xlu0 %3992
    %3994 = vrot.lane.b32.xlu0 %v2582, 80
    %v3995 = vpop.permute.xlu0 %3994
    %3996 = vrot.lane.b32.xlu0 %v2587, 80
    %v3997 = vpop.permute.xlu0 %3996
    %3998 = vrot.lane.b32.xlu0 %v2592, 80
    %v3999 = vpop.permute.xlu0 %3998
    %4000 = vrot.lane.b32.xlu0 %v2597, 80
    %v4001 = vpop.permute.xlu0 %4000
    %4002 = vrot.lane.b32.xlu0 %v2602, 80
    %v4003 = vpop.permute.xlu0 %4002
    %4004 = vrot.lane.b32.xlu0 %v2607, 80
    %v4005 = vpop.permute.xlu0 %4004
    %4006 = vrot.lane.b32.xlu0 %v2612, 80
    %v4007 = vpop.permute.xlu0 %4006
    %v4017 = vsel %vm395, %v3984, 0
    %v4020 = vsel %vm395, %v3985, 0
    %v4023 = vsel %vm395, %v3986, 0
    %v4026 = vsel %vm395, %v3987, 0
    %v4029 = vsel %vm395, %v3988, 0
    %v4032 = vsel %vm395, %v3989, 0
    %v4035 = vsel %vm395, %v3990, 0
    %v4038 = vsel %vm395, %v3991, 0
    %4040 = vmatprep.subr.mxu0 0.0
    %4041 = vmatpush1.msra.mxu0 0.0
    %4042 = vmatprep.subr.mxu0 0.0
    %4043 = vmatpush1.msra.mxu0 0.0
    %4044 = vmatprep.subr.mxu0 0.0
    %4045 = vmatpush1.msra.mxu0 0.0
    %4046 = vmatprep.subr.mxu0 0.0
    %4047 = vmatpush1.msra.mxu0 0.0
    %4048 = vmatprep.subr.mxu0 0.0
    %4049 = vmatpush1.msra.mxu0 0.0
    %4050 = vmatprep.subr.mxu0 0.0
    %4051 = vmatpush1.msra.mxu0 0.0
    %4052 = vmatprep.subr.mxu0 0.0
    %4053 = vmatpush1.msra.mxu0 0.0
    %4054 = vmatprep.subr.mxu0 0.0
    %4055 = vmatpush1.msra.mxu0 0.0
    %4056 = vmatprep.subr.mxu0 0.0
    %4057 = vmatpush1.msra.mxu0 %v4007
    %4058 = vmatprep.subr.mxu0 0.0
    %4059 = vmatpush1.msra.mxu0 %v4005
    %4060 = vmatprep.subr.mxu0 0.0
    %4061 = vmatpush1.msra.mxu0 %v4003
    %4062 = vmatprep.subr.mxu0 0.0
    %4063 = vmatpush1.msra.mxu0 %v4001
    %4064 = vmatprep.subr.mxu0 0.0
    %4065 = vmatpush1.msra.mxu0 %v3999
    %4066 = vmatprep.subr.mxu0 0.0
    %4067 = vmatpush1.msra.mxu0 %v3997
    %4068 = vmatprep.subr.mxu0 0.0
    %4069 = vmatpush1.msra.mxu0 %v3995
    %4070 = vmatprep.subr.mxu0 0.0
    %4071 = vmatpush1.msra.mxu0 %v3993
    %4072 = vmatprep.subr.mxu0 0.0
    %4073 = vmatpush2.msra.mxu0 0.0
    %4074 = vmatprep.subr.mxu0 0.0
    %4075 = vmatpush2.msra.mxu0 0.0
    %4076 = vmatprep.subr.mxu0 0.0
    %4077 = vmatpush2.msra.mxu0 0.0
    %4078 = vmatprep.subr.mxu0 0.0
    %4079 = vmatpush2.msra.mxu0 0.0
    %4080 = vmatprep.subr.mxu0 0.0
    %4081 = vmatpush2.msra.mxu0 0.0
    %4082 = vmatprep.subr.mxu0 0.0
    %4083 = vmatpush2.msra.mxu0 0.0
    %4084 = vmatprep.subr.mxu0 0.0
    %4085 = vmatpush2.msra.mxu0 0.0
    %4086 = vmatprep.subr.mxu0 0.0
    %4087 = vmatpush2.msra.mxu0 0.0
    %4088 = vmatprep.subr.mxu0 0.0
    %4089 = vmatpush2.msra.mxu0 0.0
    %4090 = vmatprep.subr.mxu0 0.0
    %4091 = vmatpush2.msra.mxu0 0.0
    %4092 = vmatprep.subr.mxu0 0.0
    %4093 = vmatpush2.msra.mxu0 0.0
    %4094 = vmatprep.subr.mxu0 0.0
    %4095 = vmatpush2.msra.mxu0 0.0
    %4096 = vmatprep.subr.mxu0 0.0
    %4097 = vmatpush2.msra.mxu0 0.0
    %4098 = vmatprep.subr.mxu0 0.0
    %4099 = vmatpush2.msra.mxu0 0.0
    %4100 = vmatprep.subr.mxu0 0.0
    %4101 = vmatpush2.msra.mxu0 0.0
    %4102 = vmatprep.subr.mxu0 0.0
    %4103 = vmatpush2.msra.mxu0 0.0
    %4104 = vmatprep.mubr.f32.mxu0 0.0
    %4105 = vmatmul.mubr.f32.gmra.mxu0 %v4017
    %v4106 = vpop.f32.mrf.mxu0
    %v4107 = vadd.f32 0.0, %v4106
    %v4108 = vpop.f32.mrf.mxu0
    %4109 = vmatprep.mubr.f32.mxu0 0.0
    %4110 = vmatmul.mubr.f32.gmra.mxu0 %v4020
    %v4111 = vpop.f32.mrf.mxu0
    %v4112 = vadd.f32 0.0, %v4111
    %v4113 = vpop.f32.mrf.mxu0
    %4114 = vmatprep.mubr.f32.mxu0 0.0
    %4115 = vmatmul.mubr.f32.gmra.mxu0 %v4023
    %v4116 = vpop.f32.mrf.mxu0
    %v4117 = vadd.f32 0.0, %v4116
    %v4118 = vpop.f32.mrf.mxu0
    %4119 = vmatprep.mubr.f32.mxu0 0.0
    %4120 = vmatmul.mubr.f32.gmra.mxu0 %v4026
    %v4121 = vpop.f32.mrf.mxu0
    %v4122 = vadd.f32 0.0, %v4121
    %v4123 = vpop.f32.mrf.mxu0
    %4124 = vmatprep.mubr.f32.mxu0 0.0
    %4125 = vmatmul.mubr.f32.gmra.mxu0 %v4029
    %v4126 = vpop.f32.mrf.mxu0
    %v4127 = vadd.f32 0.0, %v4126
    %v4128 = vpop.f32.mrf.mxu0
    %4129 = vmatprep.mubr.f32.mxu0 0.0
    %4130 = vmatmul.mubr.f32.gmra.mxu0 %v4032
    %v4131 = vpop.f32.mrf.mxu0
    %v4132 = vadd.f32 0.0, %v4131
    %v4133 = vpop.f32.mrf.mxu0
    %4134 = vmatprep.mubr.f32.mxu0 0.0
    %4135 = vmatmul.mubr.f32.gmra.mxu0 %v4035
    %v4136 = vpop.f32.mrf.mxu0
    %v4137 = vadd.f32 0.0, %v4136
    %v4138 = vpop.f32.mrf.mxu0
    %4139 = vmatprep.mubr.f32.mxu0 0.0
    %4140 = vmatmul.mubr.f32.gmra.mxu0 %v4038
    %v4141 = vpop.f32.mrf.mxu0
    %v4142 = vadd.f32 0.0, %v4141
    %v4143 = vpop.f32.mrf.mxu0
    %4144 = vdwg.mxu0
    %v4145 = vld [vmem:[%s11 + $0x10] sm:$0xff]
    %v4147 = vsel %vm241, %v4107, 0
    %v4150 = vsel %vm241, %v4112, 0
    %v4153 = vsel %vm241, %v4117, 0
    %v4156 = vsel %vm241, %v4122, 0
    %v4159 = vsel %vm241, %v4127, 0
    %v4162 = vsel %vm241, %v4132, 0
    %v4165 = vsel %vm241, %v4137, 0
    %v4168 = vsel %vm241, %v4142, 0
    %4170 = vmatprep.subr.mxu0 0.0
    %4171 = vmatpush1.msra.mxu0 0.0
    %4172 = vmatprep.subr.mxu0 0.0
    %4173 = vmatpush1.msra.mxu0 0.0
    %4174 = vmatprep.subr.mxu0 0.0
    %4175 = vmatpush1.msra.mxu0 0.0
    %4176 = vmatprep.subr.mxu0 0.0
    %4177 = vmatpush1.msra.mxu0 0.0
    %4178 = vmatprep.subr.mxu0 0.0
    %4179 = vmatpush1.msra.mxu0 0.0
    %4180 = vmatprep.subr.mxu0 0.0
    %4181 = vmatpush1.msra.mxu0 0.0
    %4182 = vmatprep.subr.mxu0 0.0
    %4183 = vmatpush1.msra.mxu0 0.0
    %4184 = vmatprep.subr.mxu0 0.0
    %4185 = vmatpush1.msra.mxu0 0.0
    %4186 = vmatprep.subr.mxu0 0.0
    %4187 = vmatpush1.msra.mxu0 0.0
    %4188 = vmatprep.subr.mxu0 0.0
    %4189 = vmatpush1.msra.mxu0 0.0
    %4190 = vmatprep.subr.mxu0 0.0
    %4191 = vmatpush1.msra.mxu0 0.0
    %4192 = vmatprep.subr.mxu0 0.0
    %4193 = vmatpush1.msra.mxu0 0.0
    %4194 = vmatprep.subr.mxu0 0.0
    %4195 = vmatpush1.msra.mxu0 0.0
    %4196 = vmatprep.subr.mxu0 0.0
    %4197 = vmatpush1.msra.mxu0 0.0
    %4198 = vmatprep.subr.mxu0 0.0
    %4199 = vmatpush1.msra.mxu0 0.0
    %4200 = vmatprep.subr.mxu0 0.0
    %4201 = vmatpush1.msra.mxu0 %v4145
    %4202 = vmatprep.subr.mxu0 0.0
    %4203 = vmatpush2.msra.mxu0 0.0
    %4204 = vmatprep.subr.mxu0 0.0
    %4205 = vmatpush2.msra.mxu0 0.0
    %4206 = vmatprep.subr.mxu0 0.0
    %4207 = vmatpush2.msra.mxu0 0.0
    %4208 = vmatprep.subr.mxu0 0.0
    %4209 = vmatpush2.msra.mxu0 0.0
    %4210 = vmatprep.subr.mxu0 0.0
    %4211 = vmatpush2.msra.mxu0 0.0
    %4212 = vmatprep.subr.mxu0 0.0
    %4213 = vmatpush2.msra.mxu0 0.0
    %4214 = vmatprep.subr.mxu0 0.0
    %4215 = vmatpush2.msra.mxu0 0.0
    %4216 = vmatprep.subr.mxu0 0.0
    %4217 = vmatpush2.msra.mxu0 0.0
    %4218 = vmatprep.subr.mxu0 0.0
    %4219 = vmatpush2.msra.mxu0 0.0
    %4220 = vmatprep.subr.mxu0 0.0
    %4221 = vmatpush2.msra.mxu0 0.0
    %4222 = vmatprep.subr.mxu0 0.0
    %4223 = vmatpush2.msra.mxu0 0.0
    %4224 = vmatprep.subr.mxu0 0.0
    %4225 = vmatpush2.msra.mxu0 0.0
    %4226 = vmatprep.subr.mxu0 0.0
    %4227 = vmatpush2.msra.mxu0 0.0
    %4228 = vmatprep.subr.mxu0 0.0
    %4229 = vmatpush2.msra.mxu0 0.0
    %4230 = vmatprep.subr.mxu0 0.0
    %4231 = vmatpush2.msra.mxu0 0.0
    %4232 = vmatprep.subr.mxu0 0.0
    %4233 = vmatpush2.msra.mxu0 0.0
    %4234 = vmatprep.mubr.f32.mxu0 0.0
    %4235 = vmatmul.mubr.f32.gmra.mxu0 %v4147
    %v4236 = vpop.f32.mrf.mxu0
    %v4237 = vadd.f32 0.0, %v4236
    %v4238 = vpop.f32.mrf.mxu0
    %4239 = vmatprep.mubr.f32.mxu0 0.0
    %4240 = vmatmul.mubr.f32.gmra.mxu0 %v4150
    %v4241 = vpop.f32.mrf.mxu0
    %v4242 = vadd.f32 0.0, %v4241
    %v4243 = vpop.f32.mrf.mxu0
    %4244 = vmatprep.mubr.f32.mxu0 0.0
    %4245 = vmatmul.mubr.f32.gmra.mxu0 %v4153
    %v4246 = vpop.f32.mrf.mxu0
    %v4247 = vadd.f32 0.0, %v4246
    %v4248 = vpop.f32.mrf.mxu0
    %4249 = vmatprep.mubr.f32.mxu0 0.0
    %4250 = vmatmul.mubr.f32.gmra.mxu0 %v4156
    %v4251 = vpop.f32.mrf.mxu0
    %v4252 = vadd.f32 0.0, %v4251
    %v4253 = vpop.f32.mrf.mxu0
    %4254 = vmatprep.mubr.f32.mxu0 0.0
    %4255 = vmatmul.mubr.f32.gmra.mxu0 %v4159
    %v4256 = vpop.f32.mrf.mxu0
    %v4257 = vadd.f32 0.0, %v4256
    %v4258 = vpop.f32.mrf.mxu0
    %4259 = vmatprep.mubr.f32.mxu0 0.0
    %4260 = vmatmul.mubr.f32.gmra.mxu0 %v4162
    %v4261 = vpop.f32.mrf.mxu0
    %v4262 = vadd.f32 0.0, %v4261
    %v4263 = vpop.f32.mrf.mxu0
    %4264 = vmatprep.mubr.f32.mxu0 0.0
    %4265 = vmatmul.mubr.f32.gmra.mxu0 %v4165
    %v4266 = vpop.f32.mrf.mxu0
    %v4267 = vadd.f32 0.0, %v4266
    %v4268 = vpop.f32.mrf.mxu0
    %4269 = vmatprep.mubr.f32.mxu0 0.0
    %4270 = vmatmul.mubr.f32.gmra.mxu0 %v4168
    %v4271 = vpop.f32.mrf.mxu0
    %v4272 = vadd.f32 0.0, %v4271
    %v4273 = vpop.f32.mrf.mxu0
    %4274 = vdwg.mxu0
    %v4275 = vadd.f32 %v3681, %v4237
    %v4276 = vadd.f32 %v3686, %v4242
    %v4277 = vadd.f32 %v3691, %v4247
    %v4278 = vadd.f32 %v3696, %v4252
    %v4279 = vadd.f32 %v3701, %v4257
    %v4280 = vadd.f32 %v3706, %v4262
    %v4281 = vadd.f32 %v3711, %v4267
    %v4282 = vadd.f32 %v3716, %v4272
    %4283 = vrot.lane.b32.xlu0 %v2458, 104
    %v4284 = vpop.permute.xlu0 %4283
    %4285 = vrot.lane.b32.xlu0 %v2459, 104
    %v4286 = vpop.permute.xlu0 %4285
    %4287 = vrot.lane.b32.xlu0 %v2460, 104
    %v4288 = vpop.permute.xlu0 %4287
    %4289 = vrot.lane.b32.xlu0 %v2461, 104
    %v4290 = vpop.permute.xlu0 %4289
    %4291 = vrot.lane.b32.xlu0 %v2462, 104
    %v4292 = vpop.permute.xlu0 %4291
    %4293 = vrot.lane.b32.xlu0 %v2463, 104
    %v4294 = vpop.permute.xlu0 %4293
    %4295 = vrot.lane.b32.xlu0 %v2464, 104
    %v4296 = vpop.permute.xlu0 %4295
    %4297 = vrot.lane.b32.xlu0 %v2465, 104
    %v4298 = vpop.permute.xlu0 %4297
    %4299 = vrot.lane.b32.xlu0 %v2577, 104
    %v4300 = vpop.permute.xlu0 %4299
    %4301 = vrot.lane.b32.xlu0 %v2582, 104
    %v4302 = vpop.permute.xlu0 %4301
    %4303 = vrot.lane.b32.xlu0 %v2587, 104
    %v4304 = vpop.permute.xlu0 %4303
    %4305 = vrot.lane.b32.xlu0 %v2592, 104
    %v4306 = vpop.permute.xlu0 %4305
    %4307 = vrot.lane.b32.xlu0 %v2597, 104
    %v4308 = vpop.permute.xlu0 %4307
    %4309 = vrot.lane.b32.xlu0 %v2602, 104
    %v4310 = vpop.permute.xlu0 %4309
    %4311 = vrot.lane.b32.xlu0 %v2607, 104
    %v4312 = vpop.permute.xlu0 %4311
    %4313 = vrot.lane.b32.xlu0 %v2612, 104
    %v4314 = vpop.permute.xlu0 %4313
    %v4315 = vsel %vm241, %v4284, 0
    %v4317 = vsel %vm241, %v4286, 0
    %v4319 = vsel %vm241, %v4288, 0
    %v4321 = vsel %vm241, %v4290, 0
    %v4323 = vsel %vm241, %v4292, 0
    %v4325 = vsel %vm241, %v4294, 0
    %v4327 = vsel %vm241, %v4296, 0
    %v4329 = vsel %vm241, %v4298, 0
    %v4331 = vsel %vm241, %v4300, 0
    %v4333 = vsel %vm241, %v4302, 0
    %v4335 = vsel %vm241, %v4304, 0
    %v4337 = vsel %vm241, %v4306, 0
    %v4339 = vsel %vm241, %v4308, 0
    %v4341 = vsel %vm241, %v4310, 0
    %v4343 = vsel %vm241, %v4312, 0
    %v4345 = vsel %vm241, %v4314, 0
    %4347 = vmatprep.subr.mxu0 0.0
    %4348 = vmatpush1.xpose.msra.mxu0 0.0
    %4349 = vmatprep.subr.mxu0 0.0
    %4350 = vmatpush1.xpose.msra.mxu0 0.0
    %4351 = vmatprep.subr.mxu0 0.0
    %4352 = vmatpush1.xpose.msra.mxu0 0.0
    %4353 = vmatprep.subr.mxu0 0.0
    %4354 = vmatpush1.xpose.msra.mxu0 0.0
    %4355 = vmatprep.subr.mxu0 0.0
    %4356 = vmatpush1.xpose.msra.mxu0 0.0
    %4357 = vmatprep.subr.mxu0 0.0
    %4358 = vmatpush1.xpose.msra.mxu0 0.0
    %4359 = vmatprep.subr.mxu0 0.0
    %4360 = vmatpush1.xpose.msra.mxu0 0.0
    %4361 = vmatprep.subr.mxu0 0.0
    %4362 = vmatpush1.xpose.msra.mxu0 0.0
    %4363 = vmatprep.subr.mxu0 0.0
    %4364 = vmatpush1.xpose.msra.mxu0 %v4345
    %4365 = vmatprep.subr.mxu0 0.0
    %4366 = vmatpush1.xpose.msra.mxu0 %v4343
    %4367 = vmatprep.subr.mxu0 0.0
    %4368 = vmatpush1.xpose.msra.mxu0 %v4341
    %4369 = vmatprep.subr.mxu0 0.0
    %4370 = vmatpush1.xpose.msra.mxu0 %v4339
    %4371 = vmatprep.subr.mxu0 0.0
    %4372 = vmatpush1.xpose.msra.mxu0 %v4337
    %4373 = vmatprep.subr.mxu0 0.0
    %4374 = vmatpush1.xpose.msra.mxu0 %v4335
    %4375 = vmatprep.subr.mxu0 0.0
    %4376 = vmatpush1.xpose.msra.mxu0 %v4333
    %4377 = vmatprep.subr.mxu0 0.0
    %4378 = vmatpush1.xpose.msra.mxu0 %v4331
    %4379 = vmatprep.subr.mxu0 0.0
    %4380 = vmatpush2.xpose.msra.mxu0 0.0
    %4381 = vmatprep.subr.mxu0 0.0
    %4382 = vmatpush2.xpose.msra.mxu0 0.0
    %4383 = vmatprep.subr.mxu0 0.0
    %4384 = vmatpush2.xpose.msra.mxu0 0.0
    %4385 = vmatprep.subr.mxu0 0.0
    %4386 = vmatpush2.xpose.msra.mxu0 0.0
    %4387 = vmatprep.subr.mxu0 0.0
    %4388 = vmatpush2.xpose.msra.mxu0 0.0
    %4389 = vmatprep.subr.mxu0 0.0
    %4390 = vmatpush2.xpose.msra.mxu0 0.0
    %4391 = vmatprep.subr.mxu0 0.0
    %4392 = vmatpush2.xpose.msra.mxu0 0.0
    %4393 = vmatprep.subr.mxu0 0.0
    %4394 = vmatpush2.xpose.msra.mxu0 0.0
    %4395 = vmatprep.subr.mxu0 0.0
    %4396 = vmatpush2.xpose.msra.mxu0 0.0
    %4397 = vmatprep.subr.mxu0 0.0
    %4398 = vmatpush2.xpose.msra.mxu0 0.0
    %4399 = vmatprep.subr.mxu0 0.0
    %4400 = vmatpush2.xpose.msra.mxu0 0.0
    %4401 = vmatprep.subr.mxu0 0.0
    %4402 = vmatpush2.xpose.msra.mxu0 0.0
    %4403 = vmatprep.subr.mxu0 0.0
    %4404 = vmatpush2.xpose.msra.mxu0 0.0
    %4405 = vmatprep.subr.mxu0 0.0
    %4406 = vmatpush2.xpose.msra.mxu0 0.0
    %4407 = vmatprep.subr.mxu0 0.0
    %4408 = vmatpush2.xpose.msra.mxu0 0.0
    %4409 = vmatprep.subr.mxu0 0.0
    %4410 = vmatpush2.xpose.msra.mxu0 0.0
    %4411 = vmatprep.mubr.f32.mxu0 0.0
    %4412 = vmatmul.mubr.f32.gmra.mxu0 %v4315
    %v4413 = vpop.f32.mrf.mxu0
    %v4414 = vadd.f32 0.0, %v4413
    %v4415 = vpop.f32.mrf.mxu0
    %4416 = vmatprep.mubr.f32.mxu0 0.0
    %4417 = vmatmul.mubr.f32.gmra.mxu0 %v4317
    %v4418 = vpop.f32.mrf.mxu0
    %v4419 = vadd.f32 0.0, %v4418
    %v4420 = vpop.f32.mrf.mxu0
    %4421 = vmatprep.mubr.f32.mxu0 0.0
    %4422 = vmatmul.mubr.f32.gmra.mxu0 %v4319
    %v4423 = vpop.f32.mrf.mxu0
    %v4424 = vadd.f32 0.0, %v4423
    %v4425 = vpop.f32.mrf.mxu0
    %4426 = vmatprep.mubr.f32.mxu0 0.0
    %4427 = vmatmul.mubr.f32.gmra.mxu0 %v4321
    %v4428 = vpop.f32.mrf.mxu0
    %v4429 = vadd.f32 0.0, %v4428
    %v4430 = vpop.f32.mrf.mxu0
    %4431 = vmatprep.mubr.f32.mxu0 0.0
    %4432 = vmatmul.mubr.f32.gmra.mxu0 %v4323
    %v4433 = vpop.f32.mrf.mxu0
    %v4434 = vadd.f32 0.0, %v4433
    %v4435 = vpop.f32.mrf.mxu0
    %4436 = vmatprep.mubr.f32.mxu0 0.0
    %4437 = vmatmul.mubr.f32.gmra.mxu0 %v4325
    %v4438 = vpop.f32.mrf.mxu0
    %v4439 = vadd.f32 0.0, %v4438
    %v4440 = vpop.f32.mrf.mxu0
    %4441 = vmatprep.mubr.f32.mxu0 0.0
    %4442 = vmatmul.mubr.f32.gmra.mxu0 %v4327
    %v4443 = vpop.f32.mrf.mxu0
    %v4444 = vadd.f32 0.0, %v4443
    %v4445 = vpop.f32.mrf.mxu0
    %4446 = vmatprep.mubr.f32.mxu0 0.0
    %4447 = vmatmul.mubr.f32.gmra.mxu0 %v4329
    %v4448 = vpop.f32.mrf.mxu0
    %v4449 = vadd.f32 0.0, %v4448
    %v4450 = vpop.f32.mrf.mxu0
    %4451 = vdwg.mxu0
    %v4452 = vmul.f32 %v4414, 0.35355338
    %v4453 = vmul.f32 %v4419, 0.35355338
    %v4454 = vmul.f32 %v4424, 0.35355338
    %v4455 = vmul.f32 %v4429, 0.35355338
    %v4456 = vmul.f32 %v4434, 0.35355338
    %v4457 = vmul.f32 %v4439, 0.35355338
    %v4458 = vmul.f32 %v4444, 0.35355338
    %v4459 = vmul.f32 %v4449, 0.35355338
    %v4460 = vadd.f32 %v4452, %v2615
    %v4461 = vadd.f32 %v4453, %v2616
    %v4462 = vadd.f32 %v4454, %v2617
    %v4463 = vadd.f32 %v4455, %v2618
    %v4464 = vadd.f32 %v4456, %v2619
    %v4465 = vadd.f32 %v4457, %v2620
    %v4466 = vadd.f32 %v4458, %v2621
    %v4467 = vadd.f32 %v4459, %v2622
    %v4468 = vsel %vm395, %v4460, -inf
    %4469 = vmax.xlane.f32.xlu0 %v4468
    %v4470 = vpop.xlane.xlu0 %4469
    %v4471 = vsel %vm395, %v4461, -inf
    %4472 = vmax.xlane.f32.xlu0 %v4471
    %v4473 = vpop.xlane.xlu0 %4472
    %v4474 = vsel %vm395, %v4462, -inf
    %4475 = vmax.xlane.f32.xlu0 %v4474
    %v4476 = vpop.xlane.xlu0 %4475
    %v4477 = vsel %vm395, %v4463, -inf
    %4478 = vmax.xlane.f32.xlu0 %v4477
    %v4479 = vpop.xlane.xlu0 %4478
    %v4480 = vsel %vm395, %v4464, -inf
    %4481 = vmax.xlane.f32.xlu0 %v4480
    %v4482 = vpop.xlane.xlu0 %4481
    %v4483 = vsel %vm395, %v4465, -inf
    %4484 = vmax.xlane.f32.xlu0 %v4483
    %v4485 = vpop.xlane.xlu0 %4484
    %v4486 = vsel %vm395, %v4466, -inf
    %4487 = vmax.xlane.f32.xlu0 %v4486
    %v4488 = vpop.xlane.xlu0 %4487
    %v4489 = vsel %vm395, %v4467, -inf
    %4490 = vmax.xlane.f32.xlu0 %v4489
    %v4491 = vpop.xlane.xlu0 %4490
    %v4492 = vsub.f32 %v4460, %v4470
    %v4493 = vsub.f32 %v4461, %v4473
    %v4494 = vsub.f32 %v4462, %v4476
    %v4495 = vsub.f32 %v4463, %v4479
    %v4496 = vsub.f32 %v4464, %v4482
    %v4497 = vsub.f32 %v4465, %v4485
    %v4498 = vsub.f32 %v4466, %v4488
    %v4499 = vsub.f32 %v4467, %v4491
    %v4500 = vmul.f32 %v4492, 1.442695
    %v4501 = vpow.pop %v4500
    %v4502 = vmul.f32 %v4493, 1.442695
    %v4503 = vpow.pop %v4502
    %v4504 = vmul.f32 %v4494, 1.442695
    %v4505 = vpow.pop %v4504
    %v4506 = vmul.f32 %v4495, 1.442695
    %v4507 = vpow.pop %v4506
    %v4508 = vmul.f32 %v4496, 1.442695
    %v4509 = vpow.pop %v4508
    %v4510 = vmul.f32 %v4497, 1.442695
    %v4511 = vpow.pop %v4510
    %v4512 = vmul.f32 %v4498, 1.442695
    %v4513 = vpow.pop %v4512
    %v4514 = vmul.f32 %v4499, 1.442695
    %v4515 = vpow.pop %v4514
    %v4516 = vsel %vm395, %v4501, 0.0
    %4517 = vadd.xlane.f32.xlu0 %v4516
    %v4518 = vpop.xlane.xlu0 %4517
    %v4519 = vsel %vm395, %v4503, 0.0
    %4520 = vadd.xlane.f32.xlu0 %v4519
    %v4521 = vpop.xlane.xlu0 %4520
    %v4522 = vsel %vm395, %v4505, 0.0
    %4523 = vadd.xlane.f32.xlu0 %v4522
    %v4524 = vpop.xlane.xlu0 %4523
    %v4525 = vsel %vm395, %v4507, 0.0
    %4526 = vadd.xlane.f32.xlu0 %v4525
    %v4527 = vpop.xlane.xlu0 %4526
    %v4528 = vsel %vm395, %v4509, 0.0
    %4529 = vadd.xlane.f32.xlu0 %v4528
    %v4530 = vpop.xlane.xlu0 %4529
    %v4531 = vsel %vm395, %v4511, 0.0
    %4532 = vadd.xlane.f32.xlu0 %v4531
    %v4533 = vpop.xlane.xlu0 %4532
    %v4534 = vsel %vm395, %v4513, 0.0
    %4535 = vadd.xlane.f32.xlu0 %v4534
    %v4536 = vpop.xlane.xlu0 %4535
    %v4537 = vsel %vm395, %v4515, 0.0
    %4538 = vadd.xlane.f32.xlu0 %v4537
    %v4539 = vpop.xlane.xlu0 %4538
    %v4540 = vrcp.pop %v4518
    %v4541 = vrcp.pop %v4521
    %v4542 = vrcp.pop %v4524
    %v4543 = vrcp.pop %v4527
    %v4544 = vrcp.pop %v4530
    %v4545 = vrcp.pop %v4533
    %v4546 = vrcp.pop %v4536
    %v4547 = vrcp.pop %v4539
    %v4548 = vmul.f32 %v4501, %v4540
    %v4549 = vmul.f32 %v4503, %v4541
    %v4550 = vmul.f32 %v4505, %v4542
    %v4551 = vmul.f32 %v4507, %v4543
    %v4552 = vmul.f32 %v4509, %v4544
    %v4553 = vmul.f32 %v4511, %v4545
    %v4554 = vmul.f32 %v4513, %v4546
    %v4555 = vmul.f32 %v4515, %v4547
    %4556 = vrot.lane.b32.xlu0 %v2577, 72
    %v4557 = vpop.permute.xlu0 %4556
    %4558 = vrot.lane.b32.xlu0 %v2582, 72
    %v4559 = vpop.permute.xlu0 %4558
    %4560 = vrot.lane.b32.xlu0 %v2587, 72
    %v4561 = vpop.permute.xlu0 %4560
    %4562 = vrot.lane.b32.xlu0 %v2592, 72
    %v4563 = vpop.permute.xlu0 %4562
    %4564 = vrot.lane.b32.xlu0 %v2597, 72
    %v4565 = vpop.permute.xlu0 %4564
    %4566 = vrot.lane.b32.xlu0 %v2602, 72
    %v4567 = vpop.permute.xlu0 %4566
    %4568 = vrot.lane.b32.xlu0 %v2607, 72
    %v4569 = vpop.permute.xlu0 %4568
    %4570 = vrot.lane.b32.xlu0 %v2612, 72
    %v4571 = vpop.permute.xlu0 %4570
    %v4581 = vsel %vm395, %v4548, 0
    %v4584 = vsel %vm395, %v4549, 0
    %v4587 = vsel %vm395, %v4550, 0
    %v4590 = vsel %vm395, %v4551, 0
    %v4593 = vsel %vm395, %v4552, 0
    %v4596 = vsel %vm395, %v4553, 0
    %v4599 = vsel %vm395, %v4554, 0
    %v4602 = vsel %vm395, %v4555, 0
    %4604 = vmatprep.subr.mxu0 0.0
    %4605 = vmatpush1.msra.mxu0 0.0
    %4606 = vmatprep.subr.mxu0 0.0
    %4607 = vmatpush1.msra.mxu0 0.0
    %4608 = vmatprep.subr.mxu0 0.0
    %4609 = vmatpush1.msra.mxu0 0.0
    %4610 = vmatprep.subr.mxu0 0.0
    %4611 = vmatpush1.msra.mxu0 0.0
    %4612 = vmatprep.subr.mxu0 0.0
    %4613 = vmatpush1.msra.mxu0 0.0
    %4614 = vmatprep.subr.mxu0 0.0
    %4615 = vmatpush1.msra.mxu0 0.0
    %4616 = vmatprep.subr.mxu0 0.0
    %4617 = vmatpush1.msra.mxu0 0.0
    %4618 = vmatprep.subr.mxu0 0.0
    %4619 = vmatpush1.msra.mxu0 0.0
    %4620 = vmatprep.subr.mxu0 0.0
    %4621 = vmatpush1.msra.mxu0 %v4571
    %4622 = vmatprep.subr.mxu0 0.0
    %4623 = vmatpush1.msra.mxu0 %v4569
    %4624 = vmatprep.subr.mxu0 0.0
    %4625 = vmatpush1.msra.mxu0 %v4567
    %4626 = vmatprep.subr.mxu0 0.0
    %4627 = vmatpush1.msra.mxu0 %v4565
    %4628 = vmatprep.subr.mxu0 0.0
    %4629 = vmatpush1.msra.mxu0 %v4563
    %4630 = vmatprep.subr.mxu0 0.0
    %4631 = vmatpush1.msra.mxu0 %v4561
    %4632 = vmatprep.subr.mxu0 0.0
    %4633 = vmatpush1.msra.mxu0 %v4559
    %4634 = vmatprep.subr.mxu0 0.0
    %4635 = vmatpush1.msra.mxu0 %v4557
    %4636 = vmatprep.subr.mxu0 0.0
    %4637 = vmatpush2.msra.mxu0 0.0
    %4638 = vmatprep.subr.mxu0 0.0
    %4639 = vmatpush2.msra.mxu0 0.0
    %4640 = vmatprep.subr.mxu0 0.0
    %4641 = vmatpush2.msra.mxu0 0.0
    %4642 = vmatprep.subr.mxu0 0.0
    %4643 = vmatpush2.msra.mxu0 0.0
    %4644 = vmatprep.subr.mxu0 0.0
    %4645 = vmatpush2.msra.mxu0 0.0
    %4646 = vmatprep.subr.mxu0 0.0
    %4647 = vmatpush2.msra.mxu0 0.0
    %4648 = vmatprep.subr.mxu0 0.0
    %4649 = vmatpush2.msra.mxu0 0.0
    %4650 = vmatprep.subr.mxu0 0.0
    %4651 = vmatpush2.msra.mxu0 0.0
    %4652 = vmatprep.subr.mxu0 0.0
    %4653 = vmatpush2.msra.mxu0 0.0
    %4654 = vmatprep.subr.mxu0 0.0
    %4655 = vmatpush2.msra.mxu0 0.0
    %4656 = vmatprep.subr.mxu0 0.0
    %4657 = vmatpush2.msra.mxu0 0.0
    %4658 = vmatprep.subr.mxu0 0.0
    %4659 = vmatpush2.msra.mxu0 0.0
    %4660 = vmatprep.subr.mxu0 0.0
    %4661 = vmatpush2.msra.mxu0 0.0
    %4662 = vmatprep.subr.mxu0 0.0
    %4663 = vmatpush2.msra.mxu0 0.0
    %4664 = vmatprep.subr.mxu0 0.0
    %4665 = vmatpush2.msra.mxu0 0.0
    %4666 = vmatprep.subr.mxu0 0.0
    %4667 = vmatpush2.msra.mxu0 0.0
    %4668 = vmatprep.mubr.f32.mxu0 0.0
    %4669 = vmatmul.mubr.f32.gmra.mxu0 %v4581
    %v4670 = vpop.f32.mrf.mxu0
    %v4671 = vadd.f32 0.0, %v4670
    %v4672 = vpop.f32.mrf.mxu0
    %4673 = vmatprep.mubr.f32.mxu0 0.0
    %4674 = vmatmul.mubr.f32.gmra.mxu0 %v4584
    %v4675 = vpop.f32.mrf.mxu0
    %v4676 = vadd.f32 0.0, %v4675
    %v4677 = vpop.f32.mrf.mxu0
    %4678 = vmatprep.mubr.f32.mxu0 0.0
    %4679 = vmatmul.mubr.f32.gmra.mxu0 %v4587
    %v4680 = vpop.f32.mrf.mxu0
    %v4681 = vadd.f32 0.0, %v4680
    %v4682 = vpop.f32.mrf.mxu0
    %4683 = vmatprep.mubr.f32.mxu0 0.0
    %4684 = vmatmul.mubr.f32.gmra.mxu0 %v4590
    %v4685 = vpop.f32.mrf.mxu0
    %v4686 = vadd.f32 0.0, %v4685
    %v4687 = vpop.f32.mrf.mxu0
    %4688 = vmatprep.mubr.f32.mxu0 0.0
    %4689 = vmatmul.mubr.f32.gmra.mxu0 %v4593
    %v4690 = vpop.f32.mrf.mxu0
    %v4691 = vadd.f32 0.0, %v4690
    %v4692 = vpop.f32.mrf.mxu0
    %4693 = vmatprep.mubr.f32.mxu0 0.0
    %4694 = vmatmul.mubr.f32.gmra.mxu0 %v4596
    %v4695 = vpop.f32.mrf.mxu0
    %v4696 = vadd.f32 0.0, %v4695
    %v4697 = vpop.f32.mrf.mxu0
    %4698 = vmatprep.mubr.f32.mxu0 0.0
    %4699 = vmatmul.mubr.f32.gmra.mxu0 %v4599
    %v4700 = vpop.f32.mrf.mxu0
    %v4701 = vadd.f32 0.0, %v4700
    %v4702 = vpop.f32.mrf.mxu0
    %4703 = vmatprep.mubr.f32.mxu0 0.0
    %4704 = vmatmul.mubr.f32.gmra.mxu0 %v4602
    %v4705 = vpop.f32.mrf.mxu0
    %v4706 = vadd.f32 0.0, %v4705
    %v4707 = vpop.f32.mrf.mxu0
    %4708 = vdwg.mxu0
    %v4709 = vld [vmem:[%s11 + $0x18] sm:$0xff]
    %v4711 = vsel %vm241, %v4671, 0
    %v4714 = vsel %vm241, %v4676, 0
    %v4717 = vsel %vm241, %v4681, 0
    %v4720 = vsel %vm241, %v4686, 0
    %v4723 = vsel %vm241, %v4691, 0
    %v4726 = vsel %vm241, %v4696, 0
    %v4729 = vsel %vm241, %v4701, 0
    %v4732 = vsel %vm241, %v4706, 0
    %4734 = vmatprep.subr.mxu0 0.0
    %4735 = vmatpush1.msra.mxu0 0.0
    %4736 = vmatprep.subr.mxu0 0.0
    %4737 = vmatpush1.msra.mxu0 0.0
    %4738 = vmatprep.subr.mxu0 0.0
    %4739 = vmatpush1.msra.mxu0 0.0
    %4740 = vmatprep.subr.mxu0 0.0
    %4741 = vmatpush1.msra.mxu0 0.0
    %4742 = vmatprep.subr.mxu0 0.0
    %4743 = vmatpush1.msra.mxu0 0.0
    %4744 = vmatprep.subr.mxu0 0.0
    %4745 = vmatpush1.msra.mxu0 0.0
    %4746 = vmatprep.subr.mxu0 0.0
    %4747 = vmatpush1.msra.mxu0 0.0
    %4748 = vmatprep.subr.mxu0 0.0
    %4749 = vmatpush1.msra.mxu0 0.0
    %4750 = vmatprep.subr.mxu0 0.0
    %4751 = vmatpush1.msra.mxu0 0.0
    %4752 = vmatprep.subr.mxu0 0.0
    %4753 = vmatpush1.msra.mxu0 0.0
    %4754 = vmatprep.subr.mxu0 0.0
    %4755 = vmatpush1.msra.mxu0 0.0
    %4756 = vmatprep.subr.mxu0 0.0
    %4757 = vmatpush1.msra.mxu0 0.0
    %4758 = vmatprep.subr.mxu0 0.0
    %4759 = vmatpush1.msra.mxu0 0.0
    %4760 = vmatprep.subr.mxu0 0.0
    %4761 = vmatpush1.msra.mxu0 0.0
    %4762 = vmatprep.subr.mxu0 0.0
    %4763 = vmatpush1.msra.mxu0 0.0
    %4764 = vmatprep.subr.mxu0 0.0
    %4765 = vmatpush1.msra.mxu0 %v4709
    %4766 = vmatprep.subr.mxu0 0.0
    %4767 = vmatpush2.msra.mxu0 0.0
    %4768 = vmatprep.subr.mxu0 0.0
    %4769 = vmatpush2.msra.mxu0 0.0
    %4770 = vmatprep.subr.mxu0 0.0
    %4771 = vmatpush2.msra.mxu0 0.0
    %4772 = vmatprep.subr.mxu0 0.0
    %4773 = vmatpush2.msra.mxu0 0.0
    %4774 = vmatprep.subr.mxu0 0.0
    %4775 = vmatpush2.msra.mxu0 0.0
    %4776 = vmatprep.subr.mxu0 0.0
    %4777 = vmatpush2.msra.mxu0 0.0
    %4778 = vmatprep.subr.mxu0 0.0
    %4779 = vmatpush2.msra.mxu0 0.0
    %4780 = vmatprep.subr.mxu0 0.0
    %4781 = vmatpush2.msra.mxu0 0.0
    %4782 = vmatprep.subr.mxu0 0.0
    %4783 = vmatpush2.msra.mxu0 0.0
    %4784 = vmatprep.subr.mxu0 0.0
    %4785 = vmatpush2.msra.mxu0 0.0
    %4786 = vmatprep.subr.mxu0 0.0
    %4787 = vmatpush2.msra.mxu0 0.0
    %4788 = vmatprep.subr.mxu0 0.0
    %4789 = vmatpush2.msra.mxu0 0.0
    %4790 = vmatprep.subr.mxu0 0.0
    %4791 = vmatpush2.msra.mxu0 0.0
    %4792 = vmatprep.subr.mxu0 0.0
    %4793 = vmatpush2.msra.mxu0 0.0
    %4794 = vmatprep.subr.mxu0 0.0
    %4795 = vmatpush2.msra.mxu0 0.0
    %4796 = vmatprep.subr.mxu0 0.0
    %4797 = vmatpush2.msra.mxu0 0.0
    %4798 = vmatprep.mubr.f32.mxu0 0.0
    %4799 = vmatmul.mubr.f32.gmra.mxu0 %v4711
    %v4800 = vpop.f32.mrf.mxu0
    %v4801 = vadd.f32 0.0, %v4800
    %v4802 = vpop.f32.mrf.mxu0
    %4803 = vmatprep.mubr.f32.mxu0 0.0
    %4804 = vmatmul.mubr.f32.gmra.mxu0 %v4714
    %v4805 = vpop.f32.mrf.mxu0
    %v4806 = vadd.f32 0.0, %v4805
    %v4807 = vpop.f32.mrf.mxu0
    %4808 = vmatprep.mubr.f32.mxu0 0.0
    %4809 = vmatmul.mubr.f32.gmra.mxu0 %v4717
    %v4810 = vpop.f32.mrf.mxu0
    %v4811 = vadd.f32 0.0, %v4810
    %v4812 = vpop.f32.mrf.mxu0
    %4813 = vmatprep.mubr.f32.mxu0 0.0
    %4814 = vmatmul.mubr.f32.gmra.mxu0 %v4720
    %v4815 = vpop.f32.mrf.mxu0
    %v4816 = vadd.f32 0.0, %v4815
    %v4817 = vpop.f32.mrf.mxu0
    %4818 = vmatprep.mubr.f32.mxu0 0.0
    %4819 = vmatmul.mubr.f32.gmra.mxu0 %v4723
    %v4820 = vpop.f32.mrf.mxu0
    %v4821 = vadd.f32 0.0, %v4820
    %v4822 = vpop.f32.mrf.mxu0
    %4823 = vmatprep.mubr.f32.mxu0 0.0
    %4824 = vmatmul.mubr.f32.gmra.mxu0 %v4726
    %v4825 = vpop.f32.mrf.mxu0
    %v4826 = vadd.f32 0.0, %v4825
    %v4827 = vpop.f32.mrf.mxu0
    %4828 = vmatprep.mubr.f32.mxu0 0.0
    %4829 = vmatmul.mubr.f32.gmra.mxu0 %v4729
    %v4830 = vpop.f32.mrf.mxu0
    %v4831 = vadd.f32 0.0, %v4830
    %v4832 = vpop.f32.mrf.mxu0
    %4833 = vmatprep.mubr.f32.mxu0 0.0
    %4834 = vmatmul.mubr.f32.gmra.mxu0 %v4732
    %v4835 = vpop.f32.mrf.mxu0
    %v4836 = vadd.f32 0.0, %v4835
    %v4837 = vpop.f32.mrf.mxu0
    %4838 = vdwg.mxu0
    %v4839 = vadd.f32 %v4275, %v4801
    %v4840 = vadd.f32 %v4276, %v4806
    %v4841 = vadd.f32 %v4277, %v4811
    %v4842 = vadd.f32 %v4278, %v4816
    %v4843 = vadd.f32 %v4279, %v4821
    %v4844 = vadd.f32 %v4280, %v4826
    %v4845 = vadd.f32 %v4281, %v4831
    %v4846 = vadd.f32 %v4282, %v4836
    %v4847 = vld [vmem:[%s12] sm:$0x1]
    %v4849 = vlaneseq
    %v4850 = vshrl.u32 %v4849, 7
    %v4851 = vsub.s32 0, %v4850
    %v4852 = vrot.slane %v4847, %v4851
    %v4854 = vadd.f32 %v4839, %v4852
    %v4855 = vadd.f32 %v4840, %v4852
    %v4856 = vadd.f32 %v4841, %v4852
    %v4857 = vadd.f32 %v4842, %v4852
    %v4858 = vadd.f32 %v4843, %v4852
    %v4859 = vadd.f32 %v4844, %v4852
    %v4860 = vadd.f32 %v4845, %v4852
    %v4861 = vadd.f32 %v4846, %v4852
    %v4862 = vld [vmem:[%s13] sm:$0x1]
    %v4864 = vlaneseq
    %v4865 = vshrl.u32 %v4864, 7
    %v4866 = vsub.s32 0, %v4865
    %v4867 = vrot.slane %v4862, %v4866
    %v4869 = vmul.f32 %v4854, %v4867
    %v4870 = vmul.f32 %v4855, %v4867
    %v4871 = vmul.f32 %v4856, %v4867
    %v4872 = vmul.f32 %v4857, %v4867
    %v4873 = vmul.f32 %v4858, %v4867
    %v4874 = vmul.f32 %v4859, %v4867
    %v4875 = vmul.f32 %v4860, %v4867
    %v4876 = vmul.f32 %v4861, %v4867
    %v4877 = vsel %vm2485, %v4869, 0.0
    %4878 = vadd.xlane.f32.xlu0 %v4877
    %v4879 = vpop.xlane.xlu0 %4878
    %v4880 = vsel %vm2485, %v4870, 0.0
    %4881 = vadd.xlane.f32.xlu0 %v4880
    %v4882 = vpop.xlane.xlu0 %4881
    %v4883 = vsel %vm2485, %v4871, 0.0
    %4884 = vadd.xlane.f32.xlu0 %v4883
    %v4885 = vpop.xlane.xlu0 %4884
    %v4886 = vsel %vm2485, %v4872, 0.0
    %4887 = vadd.xlane.f32.xlu0 %v4886
    %v4888 = vpop.xlane.xlu0 %4887
    %v4889 = vsel %vm2485, %v4873, 0.0
    %4890 = vadd.xlane.f32.xlu0 %v4889
    %v4891 = vpop.xlane.xlu0 %4890
    %v4892 = vsel %vm2485, %v4874, 0.0
    %4893 = vadd.xlane.f32.xlu0 %v4892
    %v4894 = vpop.xlane.xlu0 %4893
    %v4895 = vsel %vm2485, %v4875, 0.0
    %4896 = vadd.xlane.f32.xlu0 %v4895
    %v4897 = vpop.xlane.xlu0 %4896
    %v4898 = vsel %vm2485, %v4876, 0.0
    %4899 = vadd.xlane.f32.xlu0 %v4898
    %v4900 = vpop.xlane.xlu0 %4899
    %v4901 = vld [vmem:[#allocation2] sm:$0x1]
    %v4903 = vlaneseq
    %v4904 = vshrl.u32 %v4903, 7
    %v4905 = vsub.s32 0, %v4904
    %v4906 = vrot.slane %v4901, %v4905
    %4907 = vset.pattern.permute.xlu0 0
    %4908 = vperm.xlu0 %4907, %v4906
    %v4909 = vpop.permute.xlu0 %4908
    %v4911 = vadd.f32 %v4879, %v4909
    %v4912 = vadd.f32 %v4882, %v4909
    %v4913 = vadd.f32 %v4885, %v4909
    %v4914 = vadd.f32 %v4888, %v4909
    %v4915 = vadd.f32 %v4891, %v4909
    %v4916 = vadd.f32 %v4894, %v4909
    %v4917 = vadd.f32 %v4897, %v4909
    %v4918 = vadd.f32 %v4900, %v4909
    %v4927 = vlaneseq
    %v4928 = vand.u32 %v4927, 127
    %v4929 = vlaneseq
    %v4930 = vshrl.u32 %v4929, 7
    %v4931 = vsub.s32 %v4928, %v4930
    %v4932 = vrot.slane %v4911, %v4931
    %v4933 = vlaneseq
    %v4934 = vshrl.u32 %v4933, 7
    %v4935 = vsub.s32 %v4928, %v4934
    %v4936 = vrot.slane %v4912, %v4935
    %v4937 = vlaneseq
    %v4938 = vshrl.u32 %v4937, 7
    %v4939 = vsub.s32 %v4928, %v4938
    %v4940 = vrot.slane %v4913, %v4939
    %v4941 = vlaneseq
    %v4942 = vshrl.u32 %v4941, 7
    %v4943 = vsub.s32 %v4928, %v4942
    %v4944 = vrot.slane %v4914, %v4943
    %v4945 = vlaneseq
    %v4946 = vshrl.u32 %v4945, 7
    %v4947 = vsub.s32 %v4928, %v4946
    %v4948 = vrot.slane %v4915, %v4947
    %v4949 = vlaneseq
    %v4950 = vshrl.u32 %v4949, 7
    %v4951 = vsub.s32 %v4928, %v4950
    %v4952 = vrot.slane %v4916, %v4951
    %v4953 = vlaneseq
    %v4954 = vshrl.u32 %v4953, 7
    %v4955 = vsub.s32 %v4928, %v4954
    %v4956 = vrot.slane %v4917, %v4955
    %v4957 = vlaneseq
    %v4958 = vshrl.u32 %v4957, 7
    %v4959 = vsub.s32 %v4928, %v4958
    %v4960 = vrot.slane %v4918, %v4959
    %vm4961 = vcmask 1041409
    %v4962 = vsel %vm4961, %v4936, %v4932
    %vm4963 = vcmask 1042434
    %v4964 = vsel %vm4963, %v4940, %v4962
    %vm4965 = vcmask 1043459
    %v4966 = vsel %vm4965, %v4944, %v4964
    %vm4967 = vcmask 1044484
    %v4968 = vsel %vm4967, %v4948, %v4966
    %vm4969 = vcmask 1045509
    %v4970 = vsel %vm4969, %v4952, %v4968
    %vm4971 = vcmask 1046534
    %v4972 = vsel %vm4971, %v4956, %v4970
    %vm4973 = vcmask 1047559
    %v4974 = vsel %vm4973, %v4960, %v4972
    %4976 = vst.msk [vmem:[#allocation3] sm:$0xff] %vm241, %v4974
    // Predicated region
    $region62: #{decoder_forward.1} parent=1 // pred_check
      _
    $region63: #{decoder_forward.1} parent=1 // pred_check_branch
      %4978 = sbr.rel (0) target = $region65
    $region64: #{decoder_forward.1} parent=1 // pred_region
      %s4980 = ssub.s32 128, 128
      %4981 = vsyncadd [#allocation4], %s4980
      %s4983 = sshll.u32 [#allocation3], 4
      %s4984 = int_to_ptr.vmem [resolvable:$true] %s4983
      %4986 = dma.vmem_to_hbm [thread:$0]  %s4984, 128, %s15, [#allocation4]
    $region65: #{decoder_forward.1} parent=1 // pred_fallthru
      _
    // Predicated region
    $region66: #{decoder_forward.1} parent=1 // pred_check
      _
    $region67: #{decoder_forward.1} parent=1 // pred_check_branch
      %4988 = sbr.rel (0) target = $region69
    $region68: #{decoder_forward.1} parent=1 // pred_region
      %4989 = dma.done [#allocation4], 128
    $region69: #{decoder_forward.1} parent=1 // pred_fallthru
      _
    %4990 = vsyncpa [#allocation4], 1

</llo_original>
